<compile_context>
chip_gen: v7x
topology: tpu7x:2x2x1
jax: 0.10.0
libtpu: 0.0.40
codegen_flags: <defaults>
</compile_context>

<pallas_src>
import math
import functools

import jax
import jax.numpy as jnp
from jax.experimental import pallas as pl
from jax.experimental.pallas import tpu as pltpu  # noqa: F401  (imported per convention)

# ----------------------------- config ---------------------------------------
VOCAB    = 32
HEIGHT   = 4
WIDTH    = 4
SEQ_LEN  = HEIGHT * WIDTH          # 16
BATCH    = 2
D_MODEL  = 32
N_LAYERS = 2
N_HEADS  = 4
D_FF     = 4 * D_MODEL             # 128
HEAD_DIM = D_MODEL // N_HEADS      # 8
EPS      = 1e-5
NEG_INF  = -1e30                   # additive mask value (exp() -> exactly 0.0)
LANE     = 128                     # lane-dense padded output width
V_PAD    = LANE

assert 3 * D_MODEL <= LANE and D_FF == LANE and VOCAB <= V_PAD

# rows of the per-layer bias / LayerNorm bundle (each padded to 128 lanes)
_BQKV, _BO, _B1, _B2, _G1, _BE1, _G2, _BE2 = range(8)


# --------------------------- kernel helpers ----------------------------------
def _layer_norm(x, gamma, beta):
    # PyTorch LayerNorm: biased variance over last dim, eps inside sqrt.
    mean = jnp.mean(x, axis=-1, keepdims=True)
    xc = x - mean
    var = jnp.mean(xc * xc, axis=-1, keepdims=True)
    return xc * jax.lax.rsqrt(var + EPS) * gamma + beta


def _divmod_const(x, d):
    # Trace-time specialization: power-of-two divisor lowers to shift/and.
    if d & (d - 1) == 0:
        s = d.bit_length() - 1
        return jax.lax.shift_right_logical(x, s), jax.lax.bitwise_and(x, d - 1)
    return x // d, x % d


# ---------------------- fused whole-forward kernel ----------------------------
def fused_forward_kernel(x_ref, w32_ref, w128_ref, vec_ref, out_ref, *, seq_len):
    n_tok = x_ref.shape[0]                 # N = B * L (flattened token slab)
    hn = N_HEADS * n_tok                   # head-stacked row count
    x = x_ref[...]                         # (N, D) fp32

    # ---- masks (built once from iota, reused by every layer) ---------------
    # Stacked row index r = h*(B*L) + b*L + p  =>  "same head AND same batch"
    # is simply "same group of seq_len consecutive indices"; causal inside it.
    r = jax.lax.broadcasted_iota(jnp.int32, (hn, hn), 0)
    c = jax.lax.broadcasted_iota(jnp.int32, (hn, hn), 1)
    rg, rp = _divmod_const(r, seq_len)
    cg, cp = _divmod_const(c, seq_len)
    score_mask = jnp.where((rg == cg) & (cp <= rp),
                           jnp.float32(0.0), jnp.float32(NEG_INF))

    # Per-head feature mask for the stacked K / V: row-block h keeps only the
    # HEAD_DIM lanes belonging to head h (so the score contraction and PV
    # matmul realize per-head attention without any per-head slicing).
    sr = jax.lax.broadcasted_iota(jnp.int32, (hn, D_MODEL), 0)
    sc = jax.lax.broadcasted_iota(jnp.int32, (hn, D_MODEL), 1)
    h_row, _ = _divmod_const(sr, n_tok)
    h_lane, _ = _divmod_const(sc, HEAD_DIM)
    head_mask = (h_row == h_lane).astype(jnp.float32)

    for l in range(N_LAYERS):              # static unroll (N_LAYERS == 2)
        vl = vec_ref[l]                    # (8, 128) bias / LN bundle

        # --- QKV projection: one K=D matmul into the 128-lane padded slab ---
        qkv = (jnp.dot(x, w32_ref[3 * l + 0], preferred_element_type=jnp.float32)
               + vl[_BQKV:_BQKV + 1, :])
        q = qkv[:, 0:D_MODEL]                       # 1/sqrt(head_dim) pre-folded
        k = qkv[:, D_MODEL:2 * D_MODEL]
        v = qkv[:, 2 * D_MODEL:3 * D_MODEL]

        # --- head-stacked block-diagonal attention ---
        q_rep = jnp.concatenate([q] * N_HEADS, axis=0)               # (HN, D)
        k_rep = jnp.concatenate([k] * N_HEADS, axis=0) * head_mask   # (HN, D)
        v_rep = jnp.concatenate([v] * N_HEADS, axis=0) * head_mask   # (HN, D)

        s = jax.lax.dot_general(q_rep, k_rep, (((1,), (1,)), ((), ())),
                                preferred_element_type=jnp.float32) + score_mask
        s = s - jnp.max(s, axis=-1, keepdims=True)
        p = jnp.exp(s)
        p = p / jnp.sum(p, axis=-1, keepdims=True)   # exact division (fp32 parity)
        o_stack = jnp.dot(p, v_rep, preferred_element_type=jnp.float32)  # (HN, D)

        # Fold the H sublane blocks back: the sum equals concat(heads) in lanes.
        o = o_stack[0:n_tok]
        for h in range(1, N_HEADS):
            o = o + o_stack[h * n_tok:(h + 1) * n_tok]

        attn = (jnp.dot(o, w32_ref[3 * l + 1],
                        preferred_element_type=jnp.float32)[:, :D_MODEL]
                + vl[_BO:_BO + 1, :D_MODEL])

        # --- post-norm residual blocks (norm_first=False, ReLU FFN, dropout=0) ---
        x1 = _layer_norm(x + attn,
                         vl[_G1:_G1 + 1, :D_MODEL], vl[_BE1:_BE1 + 1, :D_MODEL])
        hmid = jnp.maximum(
            jnp.dot(x1, w32_ref[3 * l + 2], preferred_element_type=jnp.float32)
            + vl[_B1:_B1 + 1, :], 0.0)                                  # (N, D_FF)
        x2 = (jnp.dot(hmid, w128_ref[l], preferred_element_type=jnp.float32)
              + vl[_B2:_B2 + 1, :D_MODEL])
        x = _layer_norm(x1 + x2,
                        vl[_G2:_G2 + 1, :D_MODEL], vl[_BE2:_BE2 + 1, :D_MODEL])

    # --- head (bias-free Linear), 128-lane padded => one unmasked store ---
    out_ref[...] = jnp.dot(x, w32_ref[3 * N_LAYERS],
                           preferred_element_type=jnp.float32)


# ------------------------------ parameters -----------------------------------
def init_params(key):
    ks = jax.random.split(key, 12)
    std = 0.02
    nrm = lambda k, shape: jax.random.normal(k, shape, jnp.float32) * std
    return {
        'tok_emb': nrm(ks[0], (VOCAB, D_MODEL)),
        'row_emb': nrm(ks[1], (HEIGHT, D_MODEL)),
        'col_emb': nrm(ks[2], (WIDTH, D_MODEL)),
        'head_w':  nrm(ks[3], (VOCAB, D_MODEL)),                 # (out, in)
        'wqkv': nrm(ks[4], (N_LAYERS, 3 * D_MODEL, D_MODEL)),    # packed in_proj
        'bqkv': nrm(ks[5], (N_LAYERS, 3 * D_MODEL)),
        'wo':   nrm(ks[6], (N_LAYERS, D_MODEL, D_MODEL)),
        'bo':   nrm(ks[7], (N_LAYERS, D_MODEL)),
        'w1':   nrm(ks[8], (N_LAYERS, D_FF, D_MODEL)),
        'b1':   nrm(ks[9], (N_LAYERS, D_FF)),
        'w2':   nrm(ks[10], (N_LAYERS, D_MODEL, D_FF)),
        'b2':   nrm(ks[11], (N_LAYERS, D_MODEL)),
        'g1':   jnp.ones((N_LAYERS, D_MODEL), jnp.float32),
        'be1':  jnp.zeros((N_LAYERS, D_MODEL), jnp.float32),
        'g2':   jnp.ones((N_LAYERS, D_MODEL), jnp.float32),
        'be2':  jnp.zeros((N_LAYERS, D_MODEL), jnp.float32),
    }


def _pad_cols(w, width):
    out = jnp.zeros((w.shape[0], width), jnp.float32)
    return out.at[:, :w.shape[1]].set(w)


def _pad_row(v, width):
    out = jnp.zeros((width,), jnp.float32)
    return out.at[:v.shape[0]].set(v)


def prepare_params(params):
    """One-time packing: transpose to (in, out), pad to 128 lanes, fold the
    query scale, and stack everything into 3 kernel operand bundles."""
    scale = 1.0 / math.sqrt(HEAD_DIM)
    q_scale = jnp.concatenate([jnp.full((D_MODEL,), scale, jnp.float32),
                               jnp.ones((2 * D_MODEL,), jnp.float32)])
    w32, vecs = [], []
    for l in range(N_LAYERS):
        wqkv_s = params['wqkv'][l] * q_scale[:, None]            # fold 1/sqrt(d_h)
        bqkv_s = params['bqkv'][l] * q_scale
        w32.append(_pad_cols(wqkv_s.T, LANE))                    # (D, 128) [q|k|v|0]
        w32.append(_pad_cols(params['wo'][l].T, LANE))           # (D, 128)
        w32.append(params['w1'][l].T)                            # (D, 128)
        vecs.append(jnp.stack([
            _pad_row(bqkv_s, LANE),
            _pad_row(params['bo'][l], LANE),
            _pad_row(params['b1'][l], LANE),
            _pad_row(params['b2'][l], LANE),
            _pad_row(params['g1'][l], LANE),
            _pad_row(params['be1'][l], LANE),
            _pad_row(params['g2'][l], LANE),
            _pad_row(params['be2'][l], LANE),
        ]))
    w32.append(_pad_cols(params['head_w'].T, V_PAD))             # head slab
    return {
        'tok_emb': params['tok_emb'],
        'row_emb': params['row_emb'],
        'col_emb': params['col_emb'],
        'w32':  jnp.stack(w32),                                       # (3L+1, D, 128)
        'w128': jnp.stack([params['w2'][l].T for l in range(N_LAYERS)]),  # (L, 128, D)
        'vecs': jnp.stack(vecs),                                      # (L, 8, 128)
    }


# ------------------------------- forward -------------------------------------
@jax.jit
def grid_transformer_forward(idx, prep):
    """idx: (B, L) int tokens -> logits (B, L, VOCAB)."""
    B, L = idx.shape
    assert L <= SEQ_LEN

    # Embedding gathers + 2D grid positional embeddings (JAX glue; tiny gathers
    # have no clean rectangular BlockSpec form).
    tok = jnp.take(prep['tok_emb'], idx, axis=0)                       # (B, L, D)
    positions = jnp.arange(L)
    pos = (jnp.take(prep['row_emb'], positions // WIDTH, axis=0)
           + jnp.take(prep['col_emb'], positions % WIDTH, axis=0))     # (L, D)
    x = (tok + pos[None]).astype(jnp.float32).reshape(B * L, D_MODEL)

    n = B * L
    hn = N_HEADS * n
    mm = lambda m, kk, nn: 2 * m * kk * nn
    flops = N_LAYERS * (mm(n, D_MODEL, LANE) + mm(hn, D_MODEL, hn)
                        + mm(hn, hn, D_MODEL) + mm(n, D_MODEL, LANE)
                        + mm(n, D_MODEL, D_FF) + mm(n, D_FF, D_MODEL)) \
        + mm(n, D_MODEL, V_PAD)
    cost = pl.CostEstimate(
        flops=flops,
        transcendentals=N_LAYERS * (hn * hn + 2 * n),
        bytes_accessed=4 * (x.size + prep['w32'].size + prep['w128'].size
                            + prep['vecs'].size + n * V_PAD))

    logits_pad = pl.pallas_call(
        functools.partial(fused_forward_kernel, seq_len=L),
        out_shape=jax.ShapeDtypeStruct((n, V_PAD), jnp.float32),
        cost_estimate=cost,
    )(x, prep['w32'], prep['w128'], prep['vecs'])

    return logits_pad[:, :VOCAB].reshape(B, L, VOCAB)


# --------------------------- pure-JAX reference -------------------------------
def _reference_forward(idx, params):
    B, L = idx.shape
    hp = 'highest'
    tok = params['tok_emb'][idx]
    positions = jnp.arange(L)
    pos = params['row_emb'][positions // WIDTH] + params['col_emb'][positions % WIDTH]
    h = (tok + pos[None]).astype(jnp.float32)
    causal = jnp.where(jnp.arange(L)[None, :] <= jnp.arange(L)[:, None], 0.0, -jnp.inf)
    scale = 1.0 / math.sqrt(HEAD_DIM)
    split_heads = lambda t: t.reshape(B, L, N_HEADS, HEAD_DIM).transpose(0, 2, 1, 3)
    for l in range(N_LAYERS):
        qkv = jnp.einsum('bld,ed->ble', h, params['wqkv'][l], precision=hp) + params['bqkv'][l]
        q, k, v = jnp.split(qkv, 3, axis=-1)
        q, k, v = split_heads(q) * scale, split_heads(k), split_heads(v)
        s = jnp.einsum('bhqd,bhkd->bhqk', q, k, precision=hp) + causal
        p = jax.nn.softmax(s, axis=-1)
        o = jnp.einsum('bhqk,bhkd->bhqd', p, v, precision=hp)
        o = o.transpose(0, 2, 1, 3).reshape(B, L, D_MODEL)
        attn = jnp.einsum('bld,ed->ble', o, params['wo'][l], precision=hp) + params['bo'][l]
        h1 = _layer_norm(h + attn, params['g1'][l], params['be1'][l])
        ff1 = jax.nn.relu(jnp.einsum('bld,ed->ble', h1, params['w1'][l], precision=hp)
                          + params['b1'][l])
        ff = jnp.einsum('bld,ed->ble', ff1, params['w2'][l], precision=hp) + params['b2'][l]
        h = _layer_norm(h1 + ff, params['g2'][l], params['be2'][l])
    return jnp.einsum('bld,ed->ble', h, params['head_w'], precision=hp)


# --------------------------------- main --------------------------------------
if __name__ == "__main__":
    key = jax.random.PRNGKey(0)
    pkey, ikey = jax.random.split(key)
    params = init_params(pkey)
    prep = prepare_params(params)          # one-time packing (outside the jit)
    idx = jax.random.randint(ikey, (BATCH, SEQ_LEN), 0, VOCAB, dtype=jnp.int32)

    logits = grid_transformer_forward(idx, prep)
    jax.block_until_ready(logits)

    assert logits.shape == (BATCH, SEQ_LEN, VOCAB)
    assert logits.dtype == jnp.float32
    assert bool(jnp.all(jnp.isfinite(logits)))

    ref = _reference_forward(idx, params)
    err = float(jnp.max(jnp.abs(logits - ref)))
    assert err < 1e-2, f"kernel/reference mismatch: max abs err = {err}"

    print("KERNEL_OK")
</pallas_src>

<mosaic_0001>
module attributes {stable_mosaic.version = 11 : i64} {
  func.func @fused_forward_kernel(%arg0: memref<32x32xf32, #tpu.memory_space<vmem>>, %arg1: memref<7x32x128xf32, #tpu.memory_space<vmem>>, %arg2: memref<2x128x32xf32, #tpu.memory_space<vmem>>, %arg3: memref<2x8x128xf32, #tpu.memory_space<vmem>>, %arg4: memref<32x128xf32, #tpu.memory_space<vmem>>) attributes {dimension_semantics = [], scalar_prefetch = 0 : i64, scratch_operands = 0 : i64, tpu.core_type = #tpu.core_type<tc>} {
    %c0 = arith.constant 0 : index
    %c0_0 = arith.constant 0 : index
    %0 = vector.load %arg0[%c0, %c0_0] : memref<32x32xf32, #tpu.memory_space<vmem>>, vector<32x32xf32>
    %1 = tpu.iota {dimensions = array<i32: 0>} : vector<128x128xi32>
    %2 = tpu.iota {dimensions = array<i32: 1>} : vector<128x128xi32>
    %c4_i32 = arith.constant 4 : i32
    %3 = vector.broadcast %c4_i32 : i32 to vector<128x128xi32>
    %4 = arith.shrui %1, %3 : vector<128x128xi32>
    %c15_i32 = arith.constant 15 : i32
    %5 = vector.broadcast %c15_i32 : i32 to vector<128x128xi32>
    %6 = arith.andi %1, %5 : vector<128x128xi32>
    %c4_i32_1 = arith.constant 4 : i32
    %7 = vector.broadcast %c4_i32_1 : i32 to vector<128x128xi32>
    %8 = arith.shrui %2, %7 : vector<128x128xi32>
    %c15_i32_2 = arith.constant 15 : i32
    %9 = vector.broadcast %c15_i32_2 : i32 to vector<128x128xi32>
    %10 = arith.andi %2, %9 : vector<128x128xi32>
    %11 = arith.cmpi eq, %4, %8 : vector<128x128xi32>
    %12 = arith.cmpi sle, %10, %6 : vector<128x128xi32>
    %13 = arith.andi %11, %12 : vector<128x128xi1>
    %cst = arith.constant 0.000000e+00 : f32
    %cst_3 = arith.constant -1.000000e+30 : f32
    %14 = vector.broadcast %cst : f32 to vector<128x128xf32>
    %15 = vector.broadcast %cst_3 : f32 to vector<128x128xf32>
    %16 = arith.select %13, %14, %15 : vector<128x128xi1>, vector<128x128xf32>
    %17 = tpu.iota {dimensions = array<i32: 0>} : vector<128x32xi32>
    %18 = tpu.iota {dimensions = array<i32: 1>} : vector<128x32xi32>
    %c5_i32 = arith.constant 5 : i32
    %19 = vector.broadcast %c5_i32 : i32 to vector<128x32xi32>
    %20 = arith.shrui %17, %19 : vector<128x32xi32>
    %c3_i32 = arith.constant 3 : i32
    %21 = vector.broadcast %c3_i32 : i32 to vector<128x32xi32>
    %22 = arith.shrui %18, %21 : vector<128x32xi32>
    %23 = arith.cmpi eq, %20, %22 : vector<128x32xi32>
    %24 = arith.extui %23 : vector<128x32xi1> to vector<128x32xi32>
    %25 = arith.sitofp %24 : vector<128x32xi32> to vector<128x32xf32>
    %c0_4 = arith.constant 0 : index
    %c0_5 = arith.constant 0 : index
    %c0_6 = arith.constant 0 : index
    %26 = vector.load %arg3[%c0_4, %c0_5, %c0_6] : memref<2x8x128xf32, #tpu.memory_space<vmem>>, vector<1x8x128xf32>
    %27 = vector.shape_cast %26 : vector<1x8x128xf32> to vector<8x128xf32>
    %c0_7 = arith.constant 0 : index
    %c0_8 = arith.constant 0 : index
    %c0_9 = arith.constant 0 : index
    %28 = vector.load %arg1[%c0_7, %c0_8, %c0_9] : memref<7x32x128xf32, #tpu.memory_space<vmem>>, vector<1x32x128xf32>
    %29 = vector.shape_cast %28 : vector<1x32x128xf32> to vector<32x128xf32>
    %cst_10 = arith.constant dense<0.000000e+00> : vector<32x128xf32>
    %30 = tpu.matmul %0, %29, %cst_10 {dimension_numbers = #tpu.dot_dimension_numbers<[1], [0], [0], [1], [0, 0, 1, 1], [], []>} : vector<32x32xf32>, vector<32x128xf32>, vector<32x128xf32> -> vector<32x128xf32>
    %31 = vector.extract_strided_slice %27 {offsets = [0, 0], sizes = [1, 128], strides = [1, 1]} : vector<8x128xf32> to vector<1x128xf32>
    %32 = vector.broadcast %31 : vector<1x128xf32> to vector<32x128xf32>
    %33 = arith.addf %30, %32 : vector<32x128xf32>
    %34 = vector.extract_strided_slice %33 {offsets = [0, 0], sizes = [32, 32], strides = [1, 1]} : vector<32x128xf32> to vector<32x32xf32>
    %35 = vector.extract_strided_slice %33 {offsets = [0, 32], sizes = [32, 32], strides = [1, 1]} : vector<32x128xf32> to vector<32x32xf32>
    %36 = vector.extract_strided_slice %33 {offsets = [0, 64], sizes = [32, 32], strides = [1, 1]} : vector<32x128xf32> to vector<32x32xf32>
    %37 = tpu.concatenate %34, %34, %34, %34 in 0 : vector<32x32xf32>, vector<32x32xf32>, vector<32x32xf32>, vector<32x32xf32> -> vector<128x32xf32>
    %38 = tpu.concatenate %35, %35, %35, %35 in 0 : vector<32x32xf32>, vector<32x32xf32>, vector<32x32xf32>, vector<32x32xf32> -> vector<128x32xf32>
    %39 = arith.mulf %38, %25 : vector<128x32xf32>
    %40 = tpu.concatenate %36, %36, %36, %36 in 0 : vector<32x32xf32>, vector<32x32xf32>, vector<32x32xf32>, vector<32x32xf32> -> vector<128x32xf32>
    %41 = arith.mulf %40, %25 : vector<128x32xf32>
    %cst_11 = arith.constant dense<0.000000e+00> : vector<128x128xf32>
    %42 = tpu.matmul %37, %39, %cst_11 {dimension_numbers = #tpu.dot_dimension_numbers<[1], [1], [0], [0], [0, 0, 1, 0], [], []>} : vector<128x32xf32>, vector<128x32xf32>, vector<128x128xf32> -> vector<128x128xf32>
    %43 = arith.addf %42, %16 : vector<128x128xf32>
    %cst_12 = arith.constant dense<0xFF800000> : vector<128xf32>
    %44 = vector.multi_reduction <maximumf>, %43, %cst_12 [1] : vector<128x128xf32> to vector<128xf32>
    %45 = vector.shape_cast %44 : vector<128xf32> to vector<128x1xf32>
    %46 = vector.broadcast %45 : vector<128x1xf32> to vector<128x128xf32>
    %47 = arith.subf %43, %46 : vector<128x128xf32>
    %48 = math.exp %47 : vector<128x128xf32>
    %cst_13 = arith.constant dense<0.000000e+00> : vector<128xf32>
    %49 = vector.multi_reduction <add>, %48, %cst_13 [1] : vector<128x128xf32> to vector<128xf32>
    %50 = vector.shape_cast %49 : vector<128xf32> to vector<128x1xf32>
    %51 = vector.broadcast %50 : vector<128x1xf32> to vector<128x128xf32>
    %52 = arith.divf %48, %51 : vector<128x128xf32>
    %cst_14 = arith.constant dense<0.000000e+00> : vector<128x32xf32>
    %53 = tpu.matmul %52, %41, %cst_14 {dimension_numbers = #tpu.dot_dimension_numbers<[1], [0], [0], [1], [0, 0, 1, 1], [], []>} : vector<128x128xf32>, vector<128x32xf32>, vector<128x32xf32> -> vector<128x32xf32>
    %54 = vector.extract_strided_slice %53 {offsets = [0, 0], sizes = [32, 32], strides = [1, 1]} : vector<128x32xf32> to vector<32x32xf32>
    %55 = vector.extract_strided_slice %53 {offsets = [32, 0], sizes = [32, 32], strides = [1, 1]} : vector<128x32xf32> to vector<32x32xf32>
    %56 = arith.addf %54, %55 : vector<32x32xf32>
    %57 = vector.extract_strided_slice %53 {offsets = [64, 0], sizes = [32, 32], strides = [1, 1]} : vector<128x32xf32> to vector<32x32xf32>
    %58 = arith.addf %56, %57 : vector<32x32xf32>
    %59 = vector.extract_strided_slice %53 {offsets = [96, 0], sizes = [32, 32], strides = [1, 1]} : vector<128x32xf32> to vector<32x32xf32>
    %60 = arith.addf %58, %59 : vector<32x32xf32>
    %c1 = arith.constant 1 : index
    %c0_15 = arith.constant 0 : index
    %c0_16 = arith.constant 0 : index
    %61 = vector.load %arg1[%c1, %c0_15, %c0_16] : memref<7x32x128xf32, #tpu.memory_space<vmem>>, vector<1x32x128xf32>
    %62 = vector.shape_cast %61 : vector<1x32x128xf32> to vector<32x128xf32>
    %cst_17 = arith.constant dense<0.000000e+00> : vector<32x128xf32>
    %63 = tpu.matmul %60, %62, %cst_17 {dimension_numbers = #tpu.dot_dimension_numbers<[1], [0], [0], [1], [0, 0, 1, 1], [], []>} : vector<32x32xf32>, vector<32x128xf32>, vector<32x128xf32> -> vector<32x128xf32>
    %64 = vector.extract_strided_slice %63 {offsets = [0, 0], sizes = [32, 32], strides = [1, 1]} : vector<32x128xf32> to vector<32x32xf32>
    %65 = vector.extract_strided_slice %27 {offsets = [1, 0], sizes = [1, 32], strides = [1, 1]} : vector<8x128xf32> to vector<1x32xf32>
    %66 = vector.broadcast %65 : vector<1x32xf32> to vector<32x32xf32>
    %67 = arith.addf %64, %66 : vector<32x32xf32>
    %68 = arith.addf %0, %67 : vector<32x32xf32>
    %69 = vector.extract_strided_slice %27 {offsets = [4, 0], sizes = [1, 32], strides = [1, 1]} : vector<8x128xf32> to vector<1x32xf32>
    %70 = vector.extract_strided_slice %27 {offsets = [5, 0], sizes = [1, 32], strides = [1, 1]} : vector<8x128xf32> to vector<1x32xf32>
    %cst_18 = arith.constant dense<0.000000e+00> : vector<32xf32>
    %71 = vector.multi_reduction <add>, %68, %cst_18 [1] : vector<32x32xf32> to vector<32xf32>
    %72 = vector.shape_cast %71 : vector<32xf32> to vector<32x1xf32>
    %cst_19 = arith.constant 3.200000e+01 : f32
    %73 = vector.broadcast %cst_19 : f32 to vector<32x1xf32>
    %74 = arith.divf %72, %73 : vector<32x1xf32>
    %75 = vector.broadcast %74 : vector<32x1xf32> to vector<32x32xf32>
    %76 = arith.subf %68, %75 : vector<32x32xf32>
    %77 = arith.mulf %76, %76 : vector<32x32xf32>
    %cst_20 = arith.constant dense<0.000000e+00> : vector<32xf32>
    %78 = vector.multi_reduction <add>, %77, %cst_20 [1] : vector<32x32xf32> to vector<32xf32>
    %79 = vector.shape_cast %78 : vector<32xf32> to vector<32x1xf32>
    %cst_21 = arith.constant 3.200000e+01 : f32
    %80 = vector.broadcast %cst_21 : f32 to vector<32x1xf32>
    %81 = arith.divf %79, %80 : vector<32x1xf32>
    %cst_22 = arith.constant 9.99999974E-6 : f32
    %82 = vector.broadcast %cst_22 : f32 to vector<32x1xf32>
    %83 = arith.addf %81, %82 : vector<32x1xf32>
    %84 = math.rsqrt %83 : vector<32x1xf32>
    %85 = vector.broadcast %84 : vector<32x1xf32> to vector<32x32xf32>
    %86 = arith.mulf %76, %85 : vector<32x32xf32>
    %87 = vector.broadcast %69 : vector<1x32xf32> to vector<32x32xf32>
    %88 = arith.mulf %86, %87 : vector<32x32xf32>
    %89 = vector.broadcast %70 : vector<1x32xf32> to vector<32x32xf32>
    %90 = arith.addf %88, %89 : vector<32x32xf32>
    %c2 = arith.constant 2 : index
    %c0_23 = arith.constant 0 : index
    %c0_24 = arith.constant 0 : index
    %91 = vector.load %arg1[%c2, %c0_23, %c0_24] : memref<7x32x128xf32, #tpu.memory_space<vmem>>, vector<1x32x128xf32>
    %92 = vector.shape_cast %91 : vector<1x32x128xf32> to vector<32x128xf32>
    %cst_25 = arith.constant dense<0.000000e+00> : vector<32x128xf32>
    %93 = tpu.matmul %90, %92, %cst_25 {dimension_numbers = #tpu.dot_dimension_numbers<[1], [0], [0], [1], [0, 0, 1, 1], [], []>} : vector<32x32xf32>, vector<32x128xf32>, vector<32x128xf32> -> vector<32x128xf32>
    %94 = vector.extract_strided_slice %27 {offsets = [2, 0], sizes = [1, 128], strides = [1, 1]} : vector<8x128xf32> to vector<1x128xf32>
    %95 = vector.broadcast %94 : vector<1x128xf32> to vector<32x128xf32>
    %96 = arith.addf %93, %95 : vector<32x128xf32>
    %cst_26 = arith.constant 0.000000e+00 : f32
    %97 = vector.broadcast %cst_26 : f32 to vector<32x128xf32>
    %98 = arith.maximumf %96, %97 : vector<32x128xf32>
    %c0_27 = arith.constant 0 : index
    %c0_28 = arith.constant 0 : index
    %c0_29 = arith.constant 0 : index
    %99 = vector.load %arg2[%c0_27, %c0_28, %c0_29] : memref<2x128x32xf32, #tpu.memory_space<vmem>>, vector<1x128x32xf32>
    %100 = vector.shape_cast %99 : vector<1x128x32xf32> to vector<128x32xf32>
    %cst_30 = arith.constant dense<0.000000e+00> : vector<32x32xf32>
    %101 = tpu.matmul %98, %100, %cst_30 {dimension_numbers = #tpu.dot_dimension_numbers<[1], [0], [0], [1], [0, 0, 1, 1], [], []>} : vector<32x128xf32>, vector<128x32xf32>, vector<32x32xf32> -> vector<32x32xf32>
    %102 = vector.extract_strided_slice %27 {offsets = [3, 0], sizes = [1, 32], strides = [1, 1]} : vector<8x128xf32> to vector<1x32xf32>
    %103 = vector.broadcast %102 : vector<1x32xf32> to vector<32x32xf32>
    %104 = arith.addf %101, %103 : vector<32x32xf32>
    %105 = arith.addf %90, %104 : vector<32x32xf32>
    %106 = vector.extract_strided_slice %27 {offsets = [6, 0], sizes = [1, 32], strides = [1, 1]} : vector<8x128xf32> to vector<1x32xf32>
    %107 = vector.extract_strided_slice %27 {offsets = [7, 0], sizes = [1, 32], strides = [1, 1]} : vector<8x128xf32> to vector<1x32xf32>
    %cst_31 = arith.constant dense<0.000000e+00> : vector<32xf32>
    %108 = vector.multi_reduction <add>, %105, %cst_31 [1] : vector<32x32xf32> to vector<32xf32>
    %109 = vector.shape_cast %108 : vector<32xf32> to vector<32x1xf32>
    %cst_32 = arith.constant 3.200000e+01 : f32
    %110 = vector.broadcast %cst_32 : f32 to vector<32x1xf32>
    %111 = arith.divf %109, %110 : vector<32x1xf32>
    %112 = vector.broadcast %111 : vector<32x1xf32> to vector<32x32xf32>
    %113 = arith.subf %105, %112 : vector<32x32xf32>
    %114 = arith.mulf %113, %113 : vector<32x32xf32>
    %cst_33 = arith.constant dense<0.000000e+00> : vector<32xf32>
    %115 = vector.multi_reduction <add>, %114, %cst_33 [1] : vector<32x32xf32> to vector<32xf32>
    %116 = vector.shape_cast %115 : vector<32xf32> to vector<32x1xf32>
    %cst_34 = arith.constant 3.200000e+01 : f32
    %117 = vector.broadcast %cst_34 : f32 to vector<32x1xf32>
    %118 = arith.divf %116, %117 : vector<32x1xf32>
    %cst_35 = arith.constant 9.99999974E-6 : f32
    %119 = vector.broadcast %cst_35 : f32 to vector<32x1xf32>
    %120 = arith.addf %118, %119 : vector<32x1xf32>
    %121 = math.rsqrt %120 : vector<32x1xf32>
    %122 = vector.broadcast %121 : vector<32x1xf32> to vector<32x32xf32>
    %123 = arith.mulf %113, %122 : vector<32x32xf32>
    %124 = vector.broadcast %106 : vector<1x32xf32> to vector<32x32xf32>
    %125 = arith.mulf %123, %124 : vector<32x32xf32>
    %126 = vector.broadcast %107 : vector<1x32xf32> to vector<32x32xf32>
    %127 = arith.addf %125, %126 : vector<32x32xf32>
    %c1_36 = arith.constant 1 : index
    %c0_37 = arith.constant 0 : index
    %c0_38 = arith.constant 0 : index
    %128 = vector.load %arg3[%c1_36, %c0_37, %c0_38] : memref<2x8x128xf32, #tpu.memory_space<vmem>>, vector<1x8x128xf32>
    %129 = vector.shape_cast %128 : vector<1x8x128xf32> to vector<8x128xf32>
    %c3 = arith.constant 3 : index
    %c0_39 = arith.constant 0 : index
    %c0_40 = arith.constant 0 : index
    %130 = vector.load %arg1[%c3, %c0_39, %c0_40] : memref<7x32x128xf32, #tpu.memory_space<vmem>>, vector<1x32x128xf32>
    %131 = vector.shape_cast %130 : vector<1x32x128xf32> to vector<32x128xf32>
    %cst_41 = arith.constant dense<0.000000e+00> : vector<32x128xf32>
    %132 = tpu.matmul %127, %131, %cst_41 {dimension_numbers = #tpu.dot_dimension_numbers<[1], [0], [0], [1], [0, 0, 1, 1], [], []>} : vector<32x32xf32>, vector<32x128xf32>, vector<32x128xf32> -> vector<32x128xf32>
    %133 = vector.extract_strided_slice %129 {offsets = [0, 0], sizes = [1, 128], strides = [1, 1]} : vector<8x128xf32> to vector<1x128xf32>
    %134 = vector.broadcast %133 : vector<1x128xf32> to vector<32x128xf32>
    %135 = arith.addf %132, %134 : vector<32x128xf32>
    %136 = vector.extract_strided_slice %135 {offsets = [0, 0], sizes = [32, 32], strides = [1, 1]} : vector<32x128xf32> to vector<32x32xf32>
    %137 = vector.extract_strided_slice %135 {offsets = [0, 32], sizes = [32, 32], strides = [1, 1]} : vector<32x128xf32> to vector<32x32xf32>
    %138 = vector.extract_strided_slice %135 {offsets = [0, 64], sizes = [32, 32], strides = [1, 1]} : vector<32x128xf32> to vector<32x32xf32>
    %139 = tpu.concatenate %136, %136, %136, %136 in 0 : vector<32x32xf32>, vector<32x32xf32>, vector<32x32xf32>, vector<32x32xf32> -> vector<128x32xf32>
    %140 = tpu.concatenate %137, %137, %137, %137 in 0 : vector<32x32xf32>, vector<32x32xf32>, vector<32x32xf32>, vector<32x32xf32> -> vector<128x32xf32>
    %141 = arith.mulf %140, %25 : vector<128x32xf32>
    %142 = tpu.concatenate %138, %138, %138, %138 in 0 : vector<32x32xf32>, vector<32x32xf32>, vector<32x32xf32>, vector<32x32xf32> -> vector<128x32xf32>
    %143 = arith.mulf %142, %25 : vector<128x32xf32>
    %cst_42 = arith.constant dense<0.000000e+00> : vector<128x128xf32>
    %144 = tpu.matmul %139, %141, %cst_42 {dimension_numbers = #tpu.dot_dimension_numbers<[1], [1], [0], [0], [0, 0, 1, 0], [], []>} : vector<128x32xf32>, vector<128x32xf32>, vector<128x128xf32> -> vector<128x128xf32>
    %145 = arith.addf %144, %16 : vector<128x128xf32>
    %cst_43 = arith.constant dense<0xFF800000> : vector<128xf32>
    %146 = vector.multi_reduction <maximumf>, %145, %cst_43 [1] : vector<128x128xf32> to vector<128xf32>
    %147 = vector.shape_cast %146 : vector<128xf32> to vector<128x1xf32>
    %148 = vector.broadcast %147 : vector<128x1xf32> to vector<128x128xf32>
    %149 = arith.subf %145, %148 : vector<128x128xf32>
    %150 = math.exp %149 : vector<128x128xf32>
    %cst_44 = arith.constant dense<0.000000e+00> : vector<128xf32>
    %151 = vector.multi_reduction <add>, %150, %cst_44 [1] : vector<128x128xf32> to vector<128xf32>
    %152 = vector.shape_cast %151 : vector<128xf32> to vector<128x1xf32>
    %153 = vector.broadcast %152 : vector<128x1xf32> to vector<128x128xf32>
    %154 = arith.divf %150, %153 : vector<128x128xf32>
    %cst_45 = arith.constant dense<0.000000e+00> : vector<128x32xf32>
    %155 = tpu.matmul %154, %143, %cst_45 {dimension_numbers = #tpu.dot_dimension_numbers<[1], [0], [0], [1], [0, 0, 1, 1], [], []>} : vector<128x128xf32>, vector<128x32xf32>, vector<128x32xf32> -> vector<128x32xf32>
    %156 = vector.extract_strided_slice %155 {offsets = [0, 0], sizes = [32, 32], strides = [1, 1]} : vector<128x32xf32> to vector<32x32xf32>
    %157 = vector.extract_strided_slice %155 {offsets = [32, 0], sizes = [32, 32], strides = [1, 1]} : vector<128x32xf32> to vector<32x32xf32>
    %158 = arith.addf %156, %157 : vector<32x32xf32>
    %159 = vector.extract_strided_slice %155 {offsets = [64, 0], sizes = [32, 32], strides = [1, 1]} : vector<128x32xf32> to vector<32x32xf32>
    %160 = arith.addf %158, %159 : vector<32x32xf32>
    %161 = vector.extract_strided_slice %155 {offsets = [96, 0], sizes = [32, 32], strides = [1, 1]} : vector<128x32xf32> to vector<32x32xf32>
    %162 = arith.addf %160, %161 : vector<32x32xf32>
    %c4 = arith.constant 4 : index
    %c0_46 = arith.constant 0 : index
    %c0_47 = arith.constant 0 : index
    %163 = vector.load %arg1[%c4, %c0_46, %c0_47] : memref<7x32x128xf32, #tpu.memory_space<vmem>>, vector<1x32x128xf32>
    %164 = vector.shape_cast %163 : vector<1x32x128xf32> to vector<32x128xf32>
    %cst_48 = arith.constant dense<0.000000e+00> : vector<32x128xf32>
    %165 = tpu.matmul %162, %164, %cst_48 {dimension_numbers = #tpu.dot_dimension_numbers<[1], [0], [0], [1], [0, 0, 1, 1], [], []>} : vector<32x32xf32>, vector<32x128xf32>, vector<32x128xf32> -> vector<32x128xf32>
    %166 = vector.extract_strided_slice %165 {offsets = [0, 0], sizes = [32, 32], strides = [1, 1]} : vector<32x128xf32> to vector<32x32xf32>
    %167 = vector.extract_strided_slice %129 {offsets = [1, 0], sizes = [1, 32], strides = [1, 1]} : vector<8x128xf32> to vector<1x32xf32>
    %168 = vector.broadcast %167 : vector<1x32xf32> to vector<32x32xf32>
    %169 = arith.addf %166, %168 : vector<32x32xf32>
    %170 = arith.addf %127, %169 : vector<32x32xf32>
    %171 = vector.extract_strided_slice %129 {offsets = [4, 0], sizes = [1, 32], strides = [1, 1]} : vector<8x128xf32> to vector<1x32xf32>
    %172 = vector.extract_strided_slice %129 {offsets = [5, 0], sizes = [1, 32], strides = [1, 1]} : vector<8x128xf32> to vector<1x32xf32>
    %cst_49 = arith.constant dense<0.000000e+00> : vector<32xf32>
    %173 = vector.multi_reduction <add>, %170, %cst_49 [1] : vector<32x32xf32> to vector<32xf32>
    %174 = vector.shape_cast %173 : vector<32xf32> to vector<32x1xf32>
    %cst_50 = arith.constant 3.200000e+01 : f32
    %175 = vector.broadcast %cst_50 : f32 to vector<32x1xf32>
    %176 = arith.divf %174, %175 : vector<32x1xf32>
    %177 = vector.broadcast %176 : vector<32x1xf32> to vector<32x32xf32>
    %178 = arith.subf %170, %177 : vector<32x32xf32>
    %179 = arith.mulf %178, %178 : vector<32x32xf32>
    %cst_51 = arith.constant dense<0.000000e+00> : vector<32xf32>
    %180 = vector.multi_reduction <add>, %179, %cst_51 [1] : vector<32x32xf32> to vector<32xf32>
    %181 = vector.shape_cast %180 : vector<32xf32> to vector<32x1xf32>
    %cst_52 = arith.constant 3.200000e+01 : f32
    %182 = vector.broadcast %cst_52 : f32 to vector<32x1xf32>
    %183 = arith.divf %181, %182 : vector<32x1xf32>
    %cst_53 = arith.constant 9.99999974E-6 : f32
    %184 = vector.broadcast %cst_53 : f32 to vector<32x1xf32>
    %185 = arith.addf %183, %184 : vector<32x1xf32>
    %186 = math.rsqrt %185 : vector<32x1xf32>
    %187 = vector.broadcast %186 : vector<32x1xf32> to vector<32x32xf32>
    %188 = arith.mulf %178, %187 : vector<32x32xf32>
    %189 = vector.broadcast %171 : vector<1x32xf32> to vector<32x32xf32>
    %190 = arith.mulf %188, %189 : vector<32x32xf32>
    %191 = vector.broadcast %172 : vector<1x32xf32> to vector<32x32xf32>
    %192 = arith.addf %190, %191 : vector<32x32xf32>
    %c5 = arith.constant 5 : index
    %c0_54 = arith.constant 0 : index
    %c0_55 = arith.constant 0 : index
    %193 = vector.load %arg1[%c5, %c0_54, %c0_55] : memref<7x32x128xf32, #tpu.memory_space<vmem>>, vector<1x32x128xf32>
    %194 = vector.shape_cast %193 : vector<1x32x128xf32> to vector<32x128xf32>
    %cst_56 = arith.constant dense<0.000000e+00> : vector<32x128xf32>
    %195 = tpu.matmul %192, %194, %cst_56 {dimension_numbers = #tpu.dot_dimension_numbers<[1], [0], [0], [1], [0, 0, 1, 1], [], []>} : vector<32x32xf32>, vector<32x128xf32>, vector<32x128xf32> -> vector<32x128xf32>
    %196 = vector.extract_strided_slice %129 {offsets = [2, 0], sizes = [1, 128], strides = [1, 1]} : vector<8x128xf32> to vector<1x128xf32>
    %197 = vector.broadcast %196 : vector<1x128xf32> to vector<32x128xf32>
    %198 = arith.addf %195, %197 : vector<32x128xf32>
    %cst_57 = arith.constant 0.000000e+00 : f32
    %199 = vector.broadcast %cst_57 : f32 to vector<32x128xf32>
    %200 = arith.maximumf %198, %199 : vector<32x128xf32>
    %c1_58 = arith.constant 1 : index
    %c0_59 = arith.constant 0 : index
    %c0_60 = arith.constant 0 : index
    %201 = vector.load %arg2[%c1_58, %c0_59, %c0_60] : memref<2x128x32xf32, #tpu.memory_space<vmem>>, vector<1x128x32xf32>
    %202 = vector.shape_cast %201 : vector<1x128x32xf32> to vector<128x32xf32>
    %cst_61 = arith.constant dense<0.000000e+00> : vector<32x32xf32>
    %203 = tpu.matmul %200, %202, %cst_61 {dimension_numbers = #tpu.dot_dimension_numbers<[1], [0], [0], [1], [0, 0, 1, 1], [], []>} : vector<32x128xf32>, vector<128x32xf32>, vector<32x32xf32> -> vector<32x32xf32>
    %204 = vector.extract_strided_slice %129 {offsets = [3, 0], sizes = [1, 32], strides = [1, 1]} : vector<8x128xf32> to vector<1x32xf32>
    %205 = vector.broadcast %204 : vector<1x32xf32> to vector<32x32xf32>
    %206 = arith.addf %203, %205 : vector<32x32xf32>
    %207 = arith.addf %192, %206 : vector<32x32xf32>
    %208 = vector.extract_strided_slice %129 {offsets = [6, 0], sizes = [1, 32], strides = [1, 1]} : vector<8x128xf32> to vector<1x32xf32>
    %209 = vector.extract_strided_slice %129 {offsets = [7, 0], sizes = [1, 32], strides = [1, 1]} : vector<8x128xf32> to vector<1x32xf32>
    %cst_62 = arith.constant dense<0.000000e+00> : vector<32xf32>
    %210 = vector.multi_reduction <add>, %207, %cst_62 [1] : vector<32x32xf32> to vector<32xf32>
    %211 = vector.shape_cast %210 : vector<32xf32> to vector<32x1xf32>
    %cst_63 = arith.constant 3.200000e+01 : f32
    %212 = vector.broadcast %cst_63 : f32 to vector<32x1xf32>
    %213 = arith.divf %211, %212 : vector<32x1xf32>
    %214 = vector.broadcast %213 : vector<32x1xf32> to vector<32x32xf32>
    %215 = arith.subf %207, %214 : vector<32x32xf32>
    %216 = arith.mulf %215, %215 : vector<32x32xf32>
    %cst_64 = arith.constant dense<0.000000e+00> : vector<32xf32>
    %217 = vector.multi_reduction <add>, %216, %cst_64 [1] : vector<32x32xf32> to vector<32xf32>
    %218 = vector.shape_cast %217 : vector<32xf32> to vector<32x1xf32>
    %cst_65 = arith.constant 3.200000e+01 : f32
    %219 = vector.broadcast %cst_65 : f32 to vector<32x1xf32>
    %220 = arith.divf %218, %219 : vector<32x1xf32>
    %cst_66 = arith.constant 9.99999974E-6 : f32
    %221 = vector.broadcast %cst_66 : f32 to vector<32x1xf32>
    %222 = arith.addf %220, %221 : vector<32x1xf32>
    %223 = math.rsqrt %222 : vector<32x1xf32>
    %224 = vector.broadcast %223 : vector<32x1xf32> to vector<32x32xf32>
    %225 = arith.mulf %215, %224 : vector<32x32xf32>
    %226 = vector.broadcast %208 : vector<1x32xf32> to vector<32x32xf32>
    %227 = arith.mulf %225, %226 : vector<32x32xf32>
    %228 = vector.broadcast %209 : vector<1x32xf32> to vector<32x32xf32>
    %229 = arith.addf %227, %228 : vector<32x32xf32>
    %c6 = arith.constant 6 : index
    %c0_67 = arith.constant 0 : index
    %c0_68 = arith.constant 0 : index
    %230 = vector.load %arg1[%c6, %c0_67, %c0_68] : memref<7x32x128xf32, #tpu.memory_space<vmem>>, vector<1x32x128xf32>
    %231 = vector.shape_cast %230 : vector<1x32x128xf32> to vector<32x128xf32>
    %cst_69 = arith.constant dense<0.000000e+00> : vector<32x128xf32>
    %232 = tpu.matmul %229, %231, %cst_69 {dimension_numbers = #tpu.dot_dimension_numbers<[1], [0], [0], [1], [0, 0, 1, 1], [], []>} : vector<32x32xf32>, vector<32x128xf32>, vector<32x128xf32> -> vector<32x128xf32>
    %c0_70 = arith.constant 0 : index
    %c0_71 = arith.constant 0 : index
    %233 = vector.load %arg4[%c0_70, %c0_71] : memref<32x128xf32, #tpu.memory_space<vmem>>, vector<32x128xf32>
    tpu.vector_store %arg4[%c0_70, %c0_71], %232 {strides = array<i32>} : memref<32x128xf32, #tpu.memory_space<vmem>>, vector<32x128xf32>,
    return
  }
}

</mosaic_0001>

<llo_original>
// kernel: grid_transformer_forward.1
$region0: #{grid_transformer_forward.1}
  #allocation0 [shape = 'u32[]', space=smem, size = 0x4, offset = 0x4, fixed_abs, tag = 'smem constant byte address 0x4 - core index']
  #allocation1 [shape = 'u32[144,128]{1,0:T(1,128)}', space=vmem, size = 0x12000, scoped, tag = 'internal scratch']
  %s0 = inlined_call_operand.vmem [shape: f32[32,32], index: 0, kind: input, shape index: {}]
  %s1 = inlined_call_operand.vmem [shape: f32[7,32,128], index: 1, kind: input, shape index: {}]
  %s2 = inlined_call_operand.vmem [shape: f32[2,128,32], index: 2, kind: input, shape index: {}]
  %s3 = inlined_call_operand.vmem [shape: f32[2,8,128], index: 3, kind: input, shape index: {}]
  %s4 = inlined_call_operand.hbm [shape: f32[32,128], index: 4, kind: output, shape index: {}]
  %s5 = sld [smem:[#allocation0]]
  $region26: #{grid_transformer_forward.1} parent=0
    _
  %s7 = ssub.s32 1, %s5
  %s8 = scalar_select 0, %s7, %s5
  $region1: #{grid_transformer_forward.1} parent=0
    #allocation2 [shape = 'u8[16384]{0}', space=vmem, size = 0x4000, scoped, tag = 'output window, operand 0, single buffered']
    #allocation3 [shape = 's32[1]{0}', space=sflag, size = 0x4, scoped, tag = 'scoped memory for grid_transformer_forward.1']
    %9 = vsyncpa [#allocation3], 0
    // Predicated region
    $region2: #{grid_transformer_forward.1} parent=1 // pred_check
      _
    $region3: #{grid_transformer_forward.1} parent=1 // pred_check_branch
      %11 = sbr.rel (0) target = $region5
    $region4: #{grid_transformer_forward.1} parent=1 // pred_region
      _
    $region5: #{grid_transformer_forward.1} parent=1 // pred_fallthru
      _
    // Predicated region
    $region6: #{grid_transformer_forward.1} parent=1 // pred_check
      _
    $region7: #{grid_transformer_forward.1} parent=1 // pred_check_branch
      %13 = sbr.rel (0) target = $region9
    $region8: #{grid_transformer_forward.1} parent=1 // pred_region
      _
    $region9: #{grid_transformer_forward.1} parent=1 // pred_fallthru
      _
    // Predicated region
    $region10: #{grid_transformer_forward.1} parent=1 // pred_check
      _
    $region11: #{grid_transformer_forward.1} parent=1 // pred_check_branch
      %15 = sbr.rel (0) target = $region13
    $region12: #{grid_transformer_forward.1} parent=1 // pred_region
      _
    $region13: #{grid_transformer_forward.1} parent=1 // pred_fallthru
      _
    // Predicated region
    $region14: #{grid_transformer_forward.1} parent=1 // pred_check
      _
    $region15: #{grid_transformer_forward.1} parent=1 // pred_check_branch
      %17 = sbr.rel (0) target = $region17
    $region16: #{grid_transformer_forward.1} parent=1 // pred_region
      _
    $region17: #{grid_transformer_forward.1} parent=1 // pred_fallthru
      _
    %v18 = vld [vmem:[%s0] sm:$0xff]
    %v19 = vld [vmem:[%s0 + $0x8] sm:$0xff]
    %v20 = vld [vmem:[%s0 + $0x10] sm:$0xff]
    %v21 = vld [vmem:[%s0 + $0x18] sm:$0xff]
    %v22 = vlaneseq
    %v23 = vshrl.u32 %v22, 7
    %v24 = vadd.s32 %v23, 8
    %v25 = vadd.s32 %v23, 16
    %v26 = vadd.s32 %v23, 24
    %v27 = vadd.s32 %v23, 32
    %v28 = vadd.s32 %v23, 40
    %v29 = vadd.s32 %v23, 48
    %v30 = vadd.s32 %v23, 56
    %v31 = vadd.s32 %v23, 64
    %v32 = vadd.s32 %v23, 72
    %v33 = vadd.s32 %v23, 80
    %v34 = vadd.s32 %v23, 88
    %v35 = vadd.s32 %v23, 96
    %v36 = vadd.s32 %v23, 104
    %v37 = vadd.s32 %v23, 112
    %v38 = vadd.s32 %v23, 120
    %v39 = vlaneseq
    %v40 = vand.u32 %v39, 127
    %v41 = vshrl.u32 %v23, 4
    %v42 = vshrl.u32 %v24, 4
    %v43 = vshrl.u32 %v25, 4
    %v44 = vshrl.u32 %v26, 4
    %v45 = vshrl.u32 %v27, 4
    %v46 = vshrl.u32 %v28, 4
    %v47 = vshrl.u32 %v29, 4
    %v48 = vshrl.u32 %v30, 4
    %v49 = vshrl.u32 %v31, 4
    %v50 = vshrl.u32 %v32, 4
    %v51 = vshrl.u32 %v33, 4
    %v52 = vshrl.u32 %v34, 4
    %v53 = vshrl.u32 %v35, 4
    %v54 = vshrl.u32 %v36, 4
    %v55 = vshrl.u32 %v37, 4
    %v56 = vshrl.u32 %v38, 4
    %v57 = vand.u32 %v23, 15
    %v58 = vand.u32 %v24, 15
    %v59 = vand.u32 %v25, 15
    %v60 = vand.u32 %v26, 15
    %v61 = vand.u32 %v27, 15
    %v62 = vand.u32 %v28, 15
    %v63 = vand.u32 %v29, 15
    %v64 = vand.u32 %v30, 15
    %v65 = vand.u32 %v31, 15
    %v66 = vand.u32 %v32, 15
    %v67 = vand.u32 %v33, 15
    %v68 = vand.u32 %v34, 15
    %v69 = vand.u32 %v35, 15
    %v70 = vand.u32 %v36, 15
    %v71 = vand.u32 %v37, 15
    %v72 = vand.u32 %v38, 15
    %v73 = vshrl.u32 %v40, 4
    %v74 = vand.u32 %v40, 15
    %vm75 = vcmp.eq.s32.totalorder %v41, %v73
    %vm76 = vcmp.eq.s32.totalorder %v42, %v73
    %vm77 = vcmp.eq.s32.totalorder %v43, %v73
    %vm78 = vcmp.eq.s32.totalorder %v44, %v73
    %vm79 = vcmp.eq.s32.totalorder %v45, %v73
    %vm80 = vcmp.eq.s32.totalorder %v46, %v73
    %vm81 = vcmp.eq.s32.totalorder %v47, %v73
    %vm82 = vcmp.eq.s32.totalorder %v48, %v73
    %vm83 = vcmp.eq.s32.totalorder %v49, %v73
    %vm84 = vcmp.eq.s32.totalorder %v50, %v73
    %vm85 = vcmp.eq.s32.totalorder %v51, %v73
    %vm86 = vcmp.eq.s32.totalorder %v52, %v73
    %vm87 = vcmp.eq.s32.totalorder %v53, %v73
    %vm88 = vcmp.eq.s32.totalorder %v54, %v73
    %vm89 = vcmp.eq.s32.totalorder %v55, %v73
    %vm90 = vcmp.eq.s32.totalorder %v56, %v73
    %vm91 = vcmp.le.s32.totalorder %v74, %v57
    %vm92 = vcmp.le.s32.totalorder %v74, %v58
    %vm93 = vcmp.le.s32.totalorder %v74, %v59
    %vm94 = vcmp.le.s32.totalorder %v74, %v60
    %vm95 = vcmp.le.s32.totalorder %v74, %v61
    %vm96 = vcmp.le.s32.totalorder %v74, %v62
    %vm97 = vcmp.le.s32.totalorder %v74, %v63
    %vm98 = vcmp.le.s32.totalorder %v74, %v64
    %vm99 = vcmp.le.s32.totalorder %v74, %v65
    %vm100 = vcmp.le.s32.totalorder %v74, %v66
    %vm101 = vcmp.le.s32.totalorder %v74, %v67
    %vm102 = vcmp.le.s32.totalorder %v74, %v68
    %vm103 = vcmp.le.s32.totalorder %v74, %v69
    %vm104 = vcmp.le.s32.totalorder %v74, %v70
    %vm105 = vcmp.le.s32.totalorder %v74, %v71
    %vm106 = vcmp.le.s32.totalorder %v74, %v72
    %vm107 = vmand %vm75, %vm91
    %vm108 = vmand %vm76, %vm92
    %vm109 = vmand %vm77, %vm93
    %vm110 = vmand %vm78, %vm94
    %vm111 = vmand %vm79, %vm95
    %vm112 = vmand %vm80, %vm96
    %vm113 = vmand %vm81, %vm97
    %vm114 = vmand %vm82, %vm98
    %vm115 = vmand %vm83, %vm99
    %vm116 = vmand %vm84, %vm100
    %vm117 = vmand %vm85, %vm101
    %vm118 = vmand %vm86, %vm102
    %vm119 = vmand %vm87, %vm103
    %vm120 = vmand %vm88, %vm104
    %vm121 = vmand %vm89, %vm105
    %vm122 = vmand %vm90, %vm106
    %v123 = vsel %vm107, 0.0, -1e+30
    %v124 = vsel %vm108, 0.0, -1e+30
    %v125 = vsel %vm109, 0.0, -1e+30
    %v126 = vsel %vm110, 0.0, -1e+30
    %v127 = vsel %vm111, 0.0, -1e+30
    %v128 = vsel %vm112, 0.0, -1e+30
    %v129 = vsel %vm113, 0.0, -1e+30
    %v130 = vsel %vm114, 0.0, -1e+30
    %v131 = vsel %vm115, 0.0, -1e+30
    %v132 = vsel %vm116, 0.0, -1e+30
    %v133 = vsel %vm117, 0.0, -1e+30
    %v134 = vsel %vm118, 0.0, -1e+30
    %v135 = vsel %vm119, 0.0, -1e+30
    %v136 = vsel %vm120, 0.0, -1e+30
    %v137 = vsel %vm121, 0.0, -1e+30
    %v138 = vsel %vm122, 0.0, -1e+30
    %v139 = vshrl.u32 %v23, 5
    %v140 = vshrl.u32 %v24, 5
    %v141 = vshrl.u32 %v25, 5
    %v142 = vshrl.u32 %v26, 5
    %v143 = vshrl.u32 %v27, 5
    %v144 = vshrl.u32 %v28, 5
    %v145 = vshrl.u32 %v29, 5
    %v146 = vshrl.u32 %v30, 5
    %v147 = vshrl.u32 %v31, 5
    %v148 = vshrl.u32 %v32, 5
    %v149 = vshrl.u32 %v33, 5
    %v150 = vshrl.u32 %v34, 5
    %v151 = vshrl.u32 %v35, 5
    %v152 = vshrl.u32 %v36, 5
    %v153 = vshrl.u32 %v37, 5
    %v154 = vshrl.u32 %v38, 5
    %v155 = vshrl.u32 %v40, 3
    %vm156 = vcmp.eq.s32.totalorder %v139, %v155
    %vm157 = vcmp.eq.s32.totalorder %v140, %v155
    %vm158 = vcmp.eq.s32.totalorder %v141, %v155
    %vm159 = vcmp.eq.s32.totalorder %v142, %v155
    %vm160 = vcmp.eq.s32.totalorder %v143, %v155
    %vm161 = vcmp.eq.s32.totalorder %v144, %v155
    %vm162 = vcmp.eq.s32.totalorder %v145, %v155
    %vm163 = vcmp.eq.s32.totalorder %v146, %v155
    %vm164 = vcmp.eq.s32.totalorder %v147, %v155
    %vm165 = vcmp.eq.s32.totalorder %v148, %v155
    %vm166 = vcmp.eq.s32.totalorder %v149, %v155
    %vm167 = vcmp.eq.s32.totalorder %v150, %v155
    %vm168 = vcmp.eq.s32.totalorder %v151, %v155
    %vm169 = vcmp.eq.s32.totalorder %v152, %v155
    %vm170 = vcmp.eq.s32.totalorder %v153, %v155
    %vm171 = vcmp.eq.s32.totalorder %v154, %v155
    %v172 = vsel %vm156, 1, 0
    %v173 = vsel %vm157, 1, 0
    %v174 = vsel %vm158, 1, 0
    %v175 = vsel %vm159, 1, 0
    %v176 = vsel %vm160, 1, 0
    %v177 = vsel %vm161, 1, 0
    %v178 = vsel %vm162, 1, 0
    %v179 = vsel %vm163, 1, 0
    %v180 = vsel %vm164, 1, 0
    %v181 = vsel %vm165, 1, 0
    %v182 = vsel %vm166, 1, 0
    %v183 = vsel %vm167, 1, 0
    %v184 = vsel %vm168, 1, 0
    %v185 = vsel %vm169, 1, 0
    %v186 = vsel %vm170, 1, 0
    %v187 = vsel %vm171, 1, 0
    %v188 = vcvt.s32.f32 %v172
    %v189 = vcvt.s32.f32 %v173
    %v190 = vcvt.s32.f32 %v174
    %v191 = vcvt.s32.f32 %v175
    %v192 = vcvt.s32.f32 %v176
    %v193 = vcvt.s32.f32 %v177
    %v194 = vcvt.s32.f32 %v178
    %v195 = vcvt.s32.f32 %v179
    %v196 = vcvt.s32.f32 %v180
    %v197 = vcvt.s32.f32 %v181
    %v198 = vcvt.s32.f32 %v182
    %v199 = vcvt.s32.f32 %v183
    %v200 = vcvt.s32.f32 %v184
    %v201 = vcvt.s32.f32 %v185
    %v202 = vcvt.s32.f32 %v186
    %v203 = vcvt.s32.f32 %v187
    %v204 = vld [vmem:[%s3] sm:$0xff]
    %v205 = vld [vmem:[%s1] sm:$0xff]
    %v206 = vld [vmem:[%s1 + $0x8] sm:$0xff]
    %v207 = vld [vmem:[%s1 + $0x10] sm:$0xff]
    %v208 = vld [vmem:[%s1 + $0x18] sm:$0xff]
    %v209 = vlaneseq
    %v210 = vshrl.u32 %v209, 7
    %v211 = vsub.s32 0, %v210
    %v212 = vrot.slane %v204, %v211
    %vm213 = vcmask 261120
    %v215 = vsel %vm213, %v18, 0
    %v218 = vsel %vm213, %v19, 0
    %v221 = vsel %vm213, %v20, 0
    %v224 = vsel %vm213, %v21, 0
    %226 = vmatprep.subr.mxu0 0.0
    %227 = vmatpush1.msra.mxu0 %v205
    %228 = vmatprep.subr.mxu0 0.0
    %229 = vmatpush1.msra.mxu0 %v206
    %230 = vmatprep.subr.mxu0 0.0
    %231 = vmatpush1.msra.mxu0 %v207
    %232 = vmatprep.subr.mxu0 0.0
    %233 = vmatpush1.msra.mxu0 %v208
    %234 = vmatprep.subr.mxu0 0.0
    %235 = vmatpush1.msra.mxu0 0.0
    %236 = vmatprep.subr.mxu0 0.0
    %237 = vmatpush1.msra.mxu0 0.0
    %238 = vmatprep.subr.mxu0 0.0
    %239 = vmatpush1.msra.mxu0 0.0
    %240 = vmatprep.subr.mxu0 0.0
    %241 = vmatpush1.msra.mxu0 0.0
    %242 = vmatprep.subr.mxu0 0.0
    %243 = vmatpush1.msra.mxu0 0.0
    %244 = vmatprep.subr.mxu0 0.0
    %245 = vmatpush1.msra.mxu0 0.0
    %246 = vmatprep.subr.mxu0 0.0
    %247 = vmatpush1.msra.mxu0 0.0
    %248 = vmatprep.subr.mxu0 0.0
    %249 = vmatpush1.msra.mxu0 0.0
    %250 = vmatprep.subr.mxu0 0.0
    %251 = vmatpush1.msra.mxu0 0.0
    %252 = vmatprep.subr.mxu0 0.0
    %253 = vmatpush1.msra.mxu0 0.0
    %254 = vmatprep.subr.mxu0 0.0
    %255 = vmatpush1.msra.mxu0 0.0
    %256 = vmatprep.subr.mxu0 0.0
    %257 = vmatpush1.msra.mxu0 0.0
    %258 = vmatprep.subr.mxu0 0.0
    %259 = vmatpush1.msra.mxu0 0.0
    %260 = vmatprep.subr.mxu0 0.0
    %261 = vmatpush1.msra.mxu0 0.0
    %262 = vmatprep.subr.mxu0 0.0
    %263 = vmatpush1.msra.mxu0 0.0
    %264 = vmatprep.subr.mxu0 0.0
    %265 = vmatpush1.msra.mxu0 0.0
    %266 = vmatprep.subr.mxu0 0.0
    %267 = vmatpush1.msra.mxu0 0.0
    %268 = vmatprep.subr.mxu0 0.0
    %269 = vmatpush1.msra.mxu0 0.0
    %270 = vmatprep.subr.mxu0 0.0
    %271 = vmatpush1.msra.mxu0 0.0
    %272 = vmatprep.subr.mxu0 0.0
    %273 = vmatpush1.msra.mxu0 0.0
    %274 = vmatprep.subr.mxu0 0.0
    %275 = vmatpush1.msra.mxu0 0.0
    %276 = vmatprep.subr.mxu0 0.0
    %277 = vmatpush1.msra.mxu0 0.0
    %278 = vmatprep.subr.mxu0 0.0
    %279 = vmatpush1.msra.mxu0 0.0
    %280 = vmatprep.subr.mxu0 0.0
    %281 = vmatpush1.msra.mxu0 0.0
    %282 = vmatprep.subr.mxu0 0.0
    %283 = vmatpush1.msra.mxu0 0.0
    %284 = vmatprep.subr.mxu0 0.0
    %285 = vmatpush1.msra.mxu0 0.0
    %286 = vmatprep.subr.mxu0 0.0
    %287 = vmatpush1.msra.mxu0 0.0
    %288 = vmatprep.subr.mxu0 0.0
    %289 = vmatpush1.msra.mxu0 0.0
    %290 = vmatprep.mubr.f32.mxu0 0.0
    %291 = vmatmul.mubr.f32.gmra.mrb[0].mxu0 %v215
    %v292 = vpop.f32.mrb[0].mxu0
    %v293 = vadd.f32 %v212, %v292
    %v294 = vpop.f32.mrb[0].mxu0
    %295 = vmatprep.mubr.f32.mxu0 0.0
    %296 = vmatmul.mubr.f32.gmra.mrb[0].mxu0 %v218
    %v297 = vpop.f32.mrb[0].mxu0
    %v298 = vadd.f32 %v212, %v297
    %v299 = vpop.f32.mrb[0].mxu0
    %300 = vmatprep.mubr.f32.mxu0 0.0
    %301 = vmatmul.mubr.f32.gmra.mrb[0].mxu0 %v221
    %v302 = vpop.f32.mrb[0].mxu0
    %v303 = vadd.f32 %v212, %v302
    %v304 = vpop.f32.mrb[0].mxu0
    %305 = vmatprep.mubr.f32.mxu0 0.0
    %306 = vmatmul.mubr.f32.gmra.mrb[0].mxu0 %v224
    %v307 = vpop.f32.mrb[0].mxu0
    %v308 = vadd.f32 %v212, %v307
    %v309 = vpop.f32.mrb[0].mxu0
    %310 = vdwg.mxu0
    %327 = vrot.lane.b32.xlu0 %v188, 32
    %v328 = vpop.permute.xlu0 %327
    %329 = vrot.lane.b32.xlu0 %v189, 32
    %v330 = vpop.permute.xlu0 %329
    %331 = vrot.lane.b32.xlu0 %v190, 32
    %v332 = vpop.permute.xlu0 %331
    %333 = vrot.lane.b32.xlu0 %v191, 32
    %v334 = vpop.permute.xlu0 %333
    %335 = vrot.lane.b32.xlu0 %v192, 32
    %v336 = vpop.permute.xlu0 %335
    %337 = vrot.lane.b32.xlu0 %v193, 32
    %v338 = vpop.permute.xlu0 %337
    %339 = vrot.lane.b32.xlu0 %v194, 32
    %v340 = vpop.permute.xlu0 %339
    %341 = vrot.lane.b32.xlu0 %v195, 32
    %v342 = vpop.permute.xlu0 %341
    %343 = vrot.lane.b32.xlu0 %v196, 32
    %v344 = vpop.permute.xlu0 %343
    %345 = vrot.lane.b32.xlu0 %v197, 32
    %v346 = vpop.permute.xlu0 %345
    %347 = vrot.lane.b32.xlu0 %v198, 32
    %v348 = vpop.permute.xlu0 %347
    %349 = vrot.lane.b32.xlu0 %v199, 32
    %v350 = vpop.permute.xlu0 %349
    %351 = vrot.lane.b32.xlu0 %v200, 32
    %v352 = vpop.permute.xlu0 %351
    %353 = vrot.lane.b32.xlu0 %v201, 32
    %v354 = vpop.permute.xlu0 %353
    %355 = vrot.lane.b32.xlu0 %v202, 32
    %v356 = vpop.permute.xlu0 %355
    %357 = vrot.lane.b32.xlu0 %v203, 32
    %v358 = vpop.permute.xlu0 %357
    %v375 = vmul.f32 %v293, %v328
    %v376 = vmul.f32 %v298, %v330
    %v377 = vmul.f32 %v303, %v332
    %v378 = vmul.f32 %v308, %v334
    %v379 = vmul.f32 %v293, %v336
    %v380 = vmul.f32 %v298, %v338
    %v381 = vmul.f32 %v303, %v340
    %v382 = vmul.f32 %v308, %v342
    %v383 = vmul.f32 %v293, %v344
    %v384 = vmul.f32 %v298, %v346
    %v385 = vmul.f32 %v303, %v348
    %v386 = vmul.f32 %v308, %v350
    %v387 = vmul.f32 %v293, %v352
    %v388 = vmul.f32 %v298, %v354
    %v389 = vmul.f32 %v303, %v356
    %v390 = vmul.f32 %v308, %v358
    %391 = vrot.lane.b32.xlu0 %v188, 64
    %v392 = vpop.permute.xlu0 %391
    %393 = vrot.lane.b32.xlu0 %v189, 64
    %v394 = vpop.permute.xlu0 %393
    %395 = vrot.lane.b32.xlu0 %v190, 64
    %v396 = vpop.permute.xlu0 %395
    %397 = vrot.lane.b32.xlu0 %v191, 64
    %v398 = vpop.permute.xlu0 %397
    %399 = vrot.lane.b32.xlu0 %v192, 64
    %v400 = vpop.permute.xlu0 %399
    %401 = vrot.lane.b32.xlu0 %v193, 64
    %v402 = vpop.permute.xlu0 %401
    %403 = vrot.lane.b32.xlu0 %v194, 64
    %v404 = vpop.permute.xlu0 %403
    %405 = vrot.lane.b32.xlu0 %v195, 64
    %v406 = vpop.permute.xlu0 %405
    %407 = vrot.lane.b32.xlu0 %v196, 64
    %v408 = vpop.permute.xlu0 %407
    %409 = vrot.lane.b32.xlu0 %v197, 64
    %v410 = vpop.permute.xlu0 %409
    %411 = vrot.lane.b32.xlu0 %v198, 64
    %v412 = vpop.permute.xlu0 %411
    %413 = vrot.lane.b32.xlu0 %v199, 64
    %v414 = vpop.permute.xlu0 %413
    %415 = vrot.lane.b32.xlu0 %v200, 64
    %v416 = vpop.permute.xlu0 %415
    %417 = vrot.lane.b32.xlu0 %v201, 64
    %v418 = vpop.permute.xlu0 %417
    %419 = vrot.lane.b32.xlu0 %v202, 64
    %v420 = vpop.permute.xlu0 %419
    %421 = vrot.lane.b32.xlu0 %v203, 64
    %v422 = vpop.permute.xlu0 %421
    %v439 = vmul.f32 %v293, %v392
    %v440 = vmul.f32 %v298, %v394
    %v441 = vmul.f32 %v303, %v396
    %v442 = vmul.f32 %v308, %v398
    %v443 = vmul.f32 %v293, %v400
    %v444 = vmul.f32 %v298, %v402
    %v445 = vmul.f32 %v303, %v404
    %v446 = vmul.f32 %v308, %v406
    %v447 = vmul.f32 %v293, %v408
    %v448 = vmul.f32 %v298, %v410
    %v449 = vmul.f32 %v303, %v412
    %v450 = vmul.f32 %v308, %v414
    %v451 = vmul.f32 %v293, %v416
    %v452 = vmul.f32 %v298, %v418
    %v453 = vmul.f32 %v303, %v420
    %v454 = vmul.f32 %v308, %v422
    %471 = vrot.lane.b32.xlu0 %v375, 96
    %v472 = vpop.permute.xlu0 %471
    %473 = vrot.lane.b32.xlu0 %v376, 96
    %v474 = vpop.permute.xlu0 %473
    %475 = vrot.lane.b32.xlu0 %v377, 96
    %v476 = vpop.permute.xlu0 %475
    %477 = vrot.lane.b32.xlu0 %v378, 96
    %v478 = vpop.permute.xlu0 %477
    %479 = vrot.lane.b32.xlu0 %v379, 96
    %v480 = vpop.permute.xlu0 %479
    %481 = vrot.lane.b32.xlu0 %v380, 96
    %v482 = vpop.permute.xlu0 %481
    %483 = vrot.lane.b32.xlu0 %v381, 96
    %v484 = vpop.permute.xlu0 %483
    %485 = vrot.lane.b32.xlu0 %v382, 96
    %v486 = vpop.permute.xlu0 %485
    %487 = vrot.lane.b32.xlu0 %v383, 96
    %v488 = vpop.permute.xlu0 %487
    %489 = vrot.lane.b32.xlu0 %v384, 96
    %v490 = vpop.permute.xlu0 %489
    %491 = vrot.lane.b32.xlu0 %v385, 96
    %v492 = vpop.permute.xlu0 %491
    %493 = vrot.lane.b32.xlu0 %v386, 96
    %v494 = vpop.permute.xlu0 %493
    %495 = vrot.lane.b32.xlu0 %v387, 96
    %v496 = vpop.permute.xlu0 %495
    %497 = vrot.lane.b32.xlu0 %v388, 96
    %v498 = vpop.permute.xlu0 %497
    %499 = vrot.lane.b32.xlu0 %v389, 96
    %v500 = vpop.permute.xlu0 %499
    %501 = vrot.lane.b32.xlu0 %v390, 96
    %v502 = vpop.permute.xlu0 %501
    %v504 = vsel %vm213, %v293, 0
    %v507 = vsel %vm213, %v298, 0
    %v510 = vsel %vm213, %v303, 0
    %v513 = vsel %vm213, %v308, 0
    %v515 = vsel %vm213, %v472, 0
    %v517 = vsel %vm213, %v474, 0
    %v519 = vsel %vm213, %v476, 0
    %v521 = vsel %vm213, %v478, 0
    %v523 = vsel %vm213, %v480, 0
    %v525 = vsel %vm213, %v482, 0
    %v527 = vsel %vm213, %v484, 0
    %v529 = vsel %vm213, %v486, 0
    %v531 = vsel %vm213, %v488, 0
    %v533 = vsel %vm213, %v490, 0
    %v535 = vsel %vm213, %v492, 0
    %v537 = vsel %vm213, %v494, 0
    %v539 = vsel %vm213, %v496, 0
    %v541 = vsel %vm213, %v498, 0
    %v543 = vsel %vm213, %v500, 0
    %v545 = vsel %vm213, %v502, 0
    %547 = vmatprep.subr.mxu0 0.0
    %548 = vmatpush1.xpose.msra.mxu0 %v515
    %549 = vmatprep.subr.mxu0 0.0
    %550 = vmatpush1.xpose.msra.mxu0 %v517
    %551 = vmatprep.subr.mxu0 0.0
    %552 = vmatpush1.xpose.msra.mxu0 %v519
    %553 = vmatprep.subr.mxu0 0.0
    %554 = vmatpush1.xpose.msra.mxu0 %v521
    %555 = vmatprep.subr.mxu0 0.0
    %556 = vmatpush1.xpose.msra.mxu0 %v523
    %557 = vmatprep.subr.mxu0 0.0
    %558 = vmatpush1.xpose.msra.mxu0 %v525
    %559 = vmatprep.subr.mxu0 0.0
    %560 = vmatpush1.xpose.msra.mxu0 %v527
    %561 = vmatprep.subr.mxu0 0.0
    %562 = vmatpush1.xpose.msra.mxu0 %v529
    %563 = vmatprep.subr.mxu0 0.0
    %564 = vmatpush1.xpose.msra.mxu0 %v531
    %565 = vmatprep.subr.mxu0 0.0
    %566 = vmatpush1.xpose.msra.mxu0 %v533
    %567 = vmatprep.subr.mxu0 0.0
    %568 = vmatpush1.xpose.msra.mxu0 %v535
    %569 = vmatprep.subr.mxu0 0.0
    %570 = vmatpush1.xpose.msra.mxu0 %v537
    %571 = vmatprep.subr.mxu0 0.0
    %572 = vmatpush1.xpose.msra.mxu0 %v539
    %573 = vmatprep.subr.mxu0 0.0
    %574 = vmatpush1.xpose.msra.mxu0 %v541
    %575 = vmatprep.subr.mxu0 0.0
    %576 = vmatpush1.xpose.msra.mxu0 %v543
    %577 = vmatprep.subr.mxu0 0.0
    %578 = vmatpush1.xpose.msra.mxu0 %v545
    %579 = vmatprep.subr.mxu0 0.0
    %580 = vmatpush1.xpose.msra.mxu0 0.0
    %581 = vmatprep.subr.mxu0 0.0
    %582 = vmatpush1.xpose.msra.mxu0 0.0
    %583 = vmatprep.subr.mxu0 0.0
    %584 = vmatpush1.xpose.msra.mxu0 0.0
    %585 = vmatprep.subr.mxu0 0.0
    %586 = vmatpush1.xpose.msra.mxu0 0.0
    %587 = vmatprep.subr.mxu0 0.0
    %588 = vmatpush1.xpose.msra.mxu0 0.0
    %589 = vmatprep.subr.mxu0 0.0
    %590 = vmatpush1.xpose.msra.mxu0 0.0
    %591 = vmatprep.subr.mxu0 0.0
    %592 = vmatpush1.xpose.msra.mxu0 0.0
    %593 = vmatprep.subr.mxu0 0.0
    %594 = vmatpush1.xpose.msra.mxu0 0.0
    %595 = vmatprep.subr.mxu0 0.0
    %596 = vmatpush1.xpose.msra.mxu0 0.0
    %597 = vmatprep.subr.mxu0 0.0
    %598 = vmatpush1.xpose.msra.mxu0 0.0
    %599 = vmatprep.subr.mxu0 0.0
    %600 = vmatpush1.xpose.msra.mxu0 0.0
    %601 = vmatprep.subr.mxu0 0.0
    %602 = vmatpush1.xpose.msra.mxu0 0.0
    %603 = vmatprep.subr.mxu0 0.0
    %604 = vmatpush1.xpose.msra.mxu0 0.0
    %605 = vmatprep.subr.mxu0 0.0
    %606 = vmatpush1.xpose.msra.mxu0 0.0
    %607 = vmatprep.subr.mxu0 0.0
    %608 = vmatpush1.xpose.msra.mxu0 0.0
    %609 = vmatprep.subr.mxu0 0.0
    %610 = vmatpush1.xpose.msra.mxu0 0.0
    %611 = vmatprep.mubr.f32.mxu0 0.0
    %612 = vmatmul.mubr.f32.gmra.mrb[0].mxu0 %v504
    %v613 = vpop.f32.mrb[0].mxu0
    %v614 = vadd.f32 %v123, %v613
    %v615 = vpop.f32.mrb[0].mxu0
    %616 = vmatprep.mubr.f32.mxu0 0.0
    %617 = vmatmul.mubr.f32.gmra.mrb[0].mxu0 %v507
    %v618 = vpop.f32.mrb[0].mxu0
    %v619 = vadd.f32 %v124, %v618
    %v620 = vpop.f32.mrb[0].mxu0
    %621 = vmatprep.mubr.f32.mxu0 0.0
    %622 = vmatmul.mubr.f32.gmra.mrb[0].mxu0 %v510
    %v623 = vpop.f32.mrb[0].mxu0
    %v624 = vadd.f32 %v125, %v623
    %v625 = vpop.f32.mrb[0].mxu0
    %626 = vmatprep.mubr.f32.mxu0 0.0
    %627 = vmatmul.mubr.f32.gmra.mrb[0].mxu0 %v513
    %v628 = vpop.f32.mrb[0].mxu0
    %v629 = vadd.f32 %v126, %v628
    %v630 = vpop.f32.mrb[0].mxu0
    %631 = vmatprep.mubr.f32.mxu0 0.0
    %632 = vmatmul.mubr.f32.gmra.mrb[0].mxu0 %v504
    %v633 = vpop.f32.mrb[0].mxu0
    %v634 = vadd.f32 %v127, %v633
    %v635 = vpop.f32.mrb[0].mxu0
    %636 = vmatprep.mubr.f32.mxu0 0.0
    %637 = vmatmul.mubr.f32.gmra.mrb[0].mxu0 %v507
    %v638 = vpop.f32.mrb[0].mxu0
    %v639 = vadd.f32 %v128, %v638
    %v640 = vpop.f32.mrb[0].mxu0
    %641 = vmatprep.mubr.f32.mxu0 0.0
    %642 = vmatmul.mubr.f32.gmra.mrb[0].mxu0 %v510
    %v643 = vpop.f32.mrb[0].mxu0
    %v644 = vadd.f32 %v129, %v643
    %v645 = vpop.f32.mrb[0].mxu0
    %646 = vmatprep.mubr.f32.mxu0 0.0
    %647 = vmatmul.mubr.f32.gmra.mrb[0].mxu0 %v513
    %v648 = vpop.f32.mrb[0].mxu0
    %v649 = vadd.f32 %v130, %v648
    %v650 = vpop.f32.mrb[0].mxu0
    %651 = vmatprep.mubr.f32.mxu0 0.0
    %652 = vmatmul.mubr.f32.gmra.mrb[0].mxu0 %v504
    %v653 = vpop.f32.mrb[0].mxu0
    %v654 = vadd.f32 %v131, %v653
    %v655 = vpop.f32.mrb[0].mxu0
    %656 = vmatprep.mubr.f32.mxu0 0.0
    %657 = vmatmul.mubr.f32.gmra.mrb[0].mxu0 %v507
    %v658 = vpop.f32.mrb[0].mxu0
    %v659 = vadd.f32 %v132, %v658
    %v660 = vpop.f32.mrb[0].mxu0
    %661 = vmatprep.mubr.f32.mxu0 0.0
    %662 = vmatmul.mubr.f32.gmra.mrb[0].mxu0 %v510
    %v663 = vpop.f32.mrb[0].mxu0
    %v664 = vadd.f32 %v133, %v663
    %v665 = vpop.f32.mrb[0].mxu0
    %666 = vmatprep.mubr.f32.mxu0 0.0
    %667 = vmatmul.mubr.f32.gmra.mrb[0].mxu0 %v513
    %v668 = vpop.f32.mrb[0].mxu0
    %v669 = vadd.f32 %v134, %v668
    %v670 = vpop.f32.mrb[0].mxu0
    %671 = vmatprep.mubr.f32.mxu0 0.0
    %672 = vmatmul.mubr.f32.gmra.mrb[0].mxu0 %v504
    %v673 = vpop.f32.mrb[0].mxu0
    %v674 = vadd.f32 %v135, %v673
    %v675 = vpop.f32.mrb[0].mxu0
    %676 = vmatprep.mubr.f32.mxu0 0.0
    %677 = vmatmul.mubr.f32.gmra.mrb[0].mxu0 %v507
    %v678 = vpop.f32.mrb[0].mxu0
    %v679 = vadd.f32 %v136, %v678
    %v680 = vpop.f32.mrb[0].mxu0
    %681 = vmatprep.mubr.f32.mxu0 0.0
    %682 = vmatmul.mubr.f32.gmra.mrb[0].mxu0 %v510
    %v683 = vpop.f32.mrb[0].mxu0
    %v684 = vadd.f32 %v137, %v683
    %v685 = vpop.f32.mrb[0].mxu0
    %686 = vmatprep.mubr.f32.mxu0 0.0
    %687 = vmatmul.mubr.f32.gmra.mrb[0].mxu0 %v513
    %v688 = vpop.f32.mrb[0].mxu0
    %v689 = vadd.f32 %v138, %v688
    %v690 = vpop.f32.mrb[0].mxu0
    %691 = vdwg.mxu0
    %692 = vmax.xlane.f32.xlu0 %v614
    %v693 = vpop.xlane.xlu0 %692
    %694 = vmax.xlane.f32.xlu0 %v619
    %v695 = vpop.xlane.xlu0 %694
    %696 = vmax.xlane.f32.xlu0 %v624
    %v697 = vpop.xlane.xlu0 %696
    %698 = vmax.xlane.f32.xlu0 %v629
    %v699 = vpop.xlane.xlu0 %698
    %700 = vmax.xlane.f32.xlu0 %v634
    %v701 = vpop.xlane.xlu0 %700
    %702 = vmax.xlane.f32.xlu0 %v639
    %v703 = vpop.xlane.xlu0 %702
    %704 = vmax.xlane.f32.xlu0 %v644
    %v705 = vpop.xlane.xlu0 %704
    %706 = vmax.xlane.f32.xlu0 %v649
    %v707 = vpop.xlane.xlu0 %706
    %708 = vmax.xlane.f32.xlu0 %v654
    %v709 = vpop.xlane.xlu0 %708
    %710 = vmax.xlane.f32.xlu0 %v659
    %v711 = vpop.xlane.xlu0 %710
    %712 = vmax.xlane.f32.xlu0 %v664
    %v713 = vpop.xlane.xlu0 %712
    %714 = vmax.xlane.f32.xlu0 %v669
    %v715 = vpop.xlane.xlu0 %714
    %716 = vmax.xlane.f32.xlu0 %v674
    %v717 = vpop.xlane.xlu0 %716
    %718 = vmax.xlane.f32.xlu0 %v679
    %v719 = vpop.xlane.xlu0 %718
    %720 = vmax.xlane.f32.xlu0 %v684
    %v721 = vpop.xlane.xlu0 %720
    %722 = vmax.xlane.f32.xlu0 %v689
    %v723 = vpop.xlane.xlu0 %722
    %v724 = vsub.f32 %v614, %v693
    %v725 = vsub.f32 %v619, %v695
    %v726 = vsub.f32 %v624, %v697
    %v727 = vsub.f32 %v629, %v699
    %v728 = vsub.f32 %v634, %v701
    %v729 = vsub.f32 %v639, %v703
    %v730 = vsub.f32 %v644, %v705
    %v731 = vsub.f32 %v649, %v707
    %v732 = vsub.f32 %v654, %v709
    %v733 = vsub.f32 %v659, %v711
    %v734 = vsub.f32 %v664, %v713
    %v735 = vsub.f32 %v669, %v715
    %v736 = vsub.f32 %v674, %v717
    %v737 = vsub.f32 %v679, %v719
    %v738 = vsub.f32 %v684, %v721
    %v739 = vsub.f32 %v689, %v723
    %v740 = vmul.f32 %v724, 1.442695
    %v741 = vpow.pop %v740
    %v742 = vmul.f32 %v725, 1.442695
    %v743 = vpow.pop %v742
    %v744 = vmul.f32 %v726, 1.442695
    %v745 = vpow.pop %v744
    %v746 = vmul.f32 %v727, 1.442695
    %v747 = vpow.pop %v746
    %v748 = vmul.f32 %v728, 1.442695
    %v749 = vpow.pop %v748
    %v750 = vmul.f32 %v729, 1.442695
    %v751 = vpow.pop %v750
    %v752 = vmul.f32 %v730, 1.442695
    %v753 = vpow.pop %v752
    %v754 = vmul.f32 %v731, 1.442695
    %v755 = vpow.pop %v754
    %v756 = vmul.f32 %v732, 1.442695
    %v757 = vpow.pop %v756
    %v758 = vmul.f32 %v733, 1.442695
    %v759 = vpow.pop %v758
    %v760 = vmul.f32 %v734, 1.442695
    %v761 = vpow.pop %v760
    %v762 = vmul.f32 %v735, 1.442695
    %v763 = vpow.pop %v762
    %v764 = vmul.f32 %v736, 1.442695
    %v765 = vpow.pop %v764
    %v766 = vmul.f32 %v737, 1.442695
    %v767 = vpow.pop %v766
    %v768 = vmul.f32 %v738, 1.442695
    %v769 = vpow.pop %v768
    %v770 = vmul.f32 %v739, 1.442695
    %v771 = vpow.pop %v770
    %772 = vadd.xlane.f32.xlu0 %v741
    %v773 = vpop.xlane.xlu0 %772
    %774 = vadd.xlane.f32.xlu0 %v743
    %v775 = vpop.xlane.xlu0 %774
    %776 = vadd.xlane.f32.xlu0 %v745
    %v777 = vpop.xlane.xlu0 %776
    %778 = vadd.xlane.f32.xlu0 %v747
    %v779 = vpop.xlane.xlu0 %778
    %780 = vadd.xlane.f32.xlu0 %v749
    %v781 = vpop.xlane.xlu0 %780
    %782 = vadd.xlane.f32.xlu0 %v751
    %v783 = vpop.xlane.xlu0 %782
    %784 = vadd.xlane.f32.xlu0 %v753
    %v785 = vpop.xlane.xlu0 %784
    %786 = vadd.xlane.f32.xlu0 %v755
    %v787 = vpop.xlane.xlu0 %786
    %788 = vadd.xlane.f32.xlu0 %v757
    %v789 = vpop.xlane.xlu0 %788
    %790 = vadd.xlane.f32.xlu0 %v759
    %v791 = vpop.xlane.xlu0 %790
    %792 = vadd.xlane.f32.xlu0 %v761
    %v793 = vpop.xlane.xlu0 %792
    %794 = vadd.xlane.f32.xlu0 %v763
    %v795 = vpop.xlane.xlu0 %794
    %796 = vadd.xlane.f32.xlu0 %v765
    %v797 = vpop.xlane.xlu0 %796
    %798 = vadd.xlane.f32.xlu0 %v767
    %v799 = vpop.xlane.xlu0 %798
    %800 = vadd.xlane.f32.xlu0 %v769
    %v801 = vpop.xlane.xlu0 %800
    %802 = vadd.xlane.f32.xlu0 %v771
    %v803 = vpop.xlane.xlu0 %802
    %v804 = vrcp.pop %v773
    %v805 = vmul.f32 %v741, %v804
    %v806 = vrcp.pop %v775
    %v807 = vmul.f32 %v743, %v806
    %v808 = vrcp.pop %v777
    %v809 = vmul.f32 %v745, %v808
    %v810 = vrcp.pop %v779
    %v811 = vmul.f32 %v747, %v810
    %v812 = vrcp.pop %v781
    %v813 = vmul.f32 %v749, %v812
    %v814 = vrcp.pop %v783
    %v815 = vmul.f32 %v751, %v814
    %v816 = vrcp.pop %v785
    %v817 = vmul.f32 %v753, %v816
    %v818 = vrcp.pop %v787
    %v819 = vmul.f32 %v755, %v818
    %v820 = vrcp.pop %v789
    %v821 = vmul.f32 %v757, %v820
    %v822 = vrcp.pop %v791
    %v823 = vmul.f32 %v759, %v822
    %v824 = vrcp.pop %v793
    %v825 = vmul.f32 %v761, %v824
    %v826 = vrcp.pop %v795
    %v827 = vmul.f32 %v763, %v826
    %v828 = vrcp.pop %v797
    %v829 = vmul.f32 %v765, %v828
    %v830 = vrcp.pop %v799
    %v831 = vmul.f32 %v767, %v830
    %v832 = vrcp.pop %v801
    %v833 = vmul.f32 %v769, %v832
    %v834 = vrcp.pop %v803
    %v835 = vmul.f32 %v771, %v834
    %852 = vrot.lane.b32.xlu0 %v439, 64
    %v853 = vpop.permute.xlu0 %852
    %854 = vrot.lane.b32.xlu0 %v440, 64
    %v855 = vpop.permute.xlu0 %854
    %856 = vrot.lane.b32.xlu0 %v441, 64
    %v857 = vpop.permute.xlu0 %856
    %858 = vrot.lane.b32.xlu0 %v442, 64
    %v859 = vpop.permute.xlu0 %858
    %860 = vrot.lane.b32.xlu0 %v443, 64
    %v861 = vpop.permute.xlu0 %860
    %862 = vrot.lane.b32.xlu0 %v444, 64
    %v863 = vpop.permute.xlu0 %862
    %864 = vrot.lane.b32.xlu0 %v445, 64
    %v865 = vpop.permute.xlu0 %864
    %866 = vrot.lane.b32.xlu0 %v446, 64
    %v867 = vpop.permute.xlu0 %866
    %868 = vrot.lane.b32.xlu0 %v447, 64
    %v869 = vpop.permute.xlu0 %868
    %870 = vrot.lane.b32.xlu0 %v448, 64
    %v871 = vpop.permute.xlu0 %870
    %872 = vrot.lane.b32.xlu0 %v449, 64
    %v873 = vpop.permute.xlu0 %872
    %874 = vrot.lane.b32.xlu0 %v450, 64
    %v875 = vpop.permute.xlu0 %874
    %876 = vrot.lane.b32.xlu0 %v451, 64
    %v877 = vpop.permute.xlu0 %876
    %878 = vrot.lane.b32.xlu0 %v452, 64
    %v879 = vpop.permute.xlu0 %878
    %880 = vrot.lane.b32.xlu0 %v453, 64
    %v881 = vpop.permute.xlu0 %880
    %882 = vrot.lane.b32.xlu0 %v454, 64
    %v883 = vpop.permute.xlu0 %882
    %900 = vmatprep.subr.mxu0 0.0
    %901 = vmatpush1.msra.mxu0 %v853
    %902 = vmatprep.subr.mxu0 0.0
    %903 = vmatpush1.msra.mxu0 %v855
    %904 = vmatprep.subr.mxu0 0.0
    %905 = vmatpush1.msra.mxu0 %v857
    %906 = vmatprep.subr.mxu0 0.0
    %907 = vmatpush1.msra.mxu0 %v859
    %908 = vmatprep.subr.mxu0 0.0
    %909 = vmatpush1.msra.mxu0 %v861
    %910 = vmatprep.subr.mxu0 0.0
    %911 = vmatpush1.msra.mxu0 %v863
    %912 = vmatprep.subr.mxu0 0.0
    %913 = vmatpush1.msra.mxu0 %v865
    %914 = vmatprep.subr.mxu0 0.0
    %915 = vmatpush1.msra.mxu0 %v867
    %916 = vmatprep.subr.mxu0 0.0
    %917 = vmatpush1.msra.mxu0 %v869
    %918 = vmatprep.subr.mxu0 0.0
    %919 = vmatpush1.msra.mxu0 %v871
    %920 = vmatprep.subr.mxu0 0.0
    %921 = vmatpush1.msra.mxu0 %v873
    %922 = vmatprep.subr.mxu0 0.0
    %923 = vmatpush1.msra.mxu0 %v875
    %924 = vmatprep.subr.mxu0 0.0
    %925 = vmatpush1.msra.mxu0 %v877
    %926 = vmatprep.subr.mxu0 0.0
    %927 = vmatpush1.msra.mxu0 %v879
    %928 = vmatprep.subr.mxu0 0.0
    %929 = vmatpush1.msra.mxu0 %v881
    %930 = vmatprep.subr.mxu0 0.0
    %931 = vmatpush1.msra.mxu0 %v883
    %932 = vmatprep.subr.mxu0 0.0
    %933 = vmatpush1.msra.mxu0 0.0
    %934 = vmatprep.subr.mxu0 0.0
    %935 = vmatpush1.msra.mxu0 0.0
    %936 = vmatprep.subr.mxu0 0.0
    %937 = vmatpush1.msra.mxu0 0.0
    %938 = vmatprep.subr.mxu0 0.0
    %939 = vmatpush1.msra.mxu0 0.0
    %940 = vmatprep.subr.mxu0 0.0
    %941 = vmatpush1.msra.mxu0 0.0
    %942 = vmatprep.subr.mxu0 0.0
    %943 = vmatpush1.msra.mxu0 0.0
    %944 = vmatprep.subr.mxu0 0.0
    %945 = vmatpush1.msra.mxu0 0.0
    %946 = vmatprep.subr.mxu0 0.0
    %947 = vmatpush1.msra.mxu0 0.0
    %948 = vmatprep.subr.mxu0 0.0
    %949 = vmatpush1.msra.mxu0 0.0
    %950 = vmatprep.subr.mxu0 0.0
    %951 = vmatpush1.msra.mxu0 0.0
    %952 = vmatprep.subr.mxu0 0.0
    %953 = vmatpush1.msra.mxu0 0.0
    %954 = vmatprep.subr.mxu0 0.0
    %955 = vmatpush1.msra.mxu0 0.0
    %956 = vmatprep.subr.mxu0 0.0
    %957 = vmatpush1.msra.mxu0 0.0
    %958 = vmatprep.subr.mxu0 0.0
    %959 = vmatpush1.msra.mxu0 0.0
    %960 = vmatprep.subr.mxu0 0.0
    %961 = vmatpush1.msra.mxu0 0.0
    %962 = vmatprep.subr.mxu0 0.0
    %963 = vmatpush1.msra.mxu0 0.0
    %964 = vmatprep.mubr.f32.mxu0 0.0
    %965 = vmatmul.mubr.f32.gmra.mrb[0].mxu0 %v805
    %v966 = vpop.f32.mrb[0].mxu0
    %v967 = vadd.f32 0.0, %v966
    %v968 = vpop.f32.mrb[0].mxu0
    %969 = vmatprep.mubr.f32.mxu0 0.0
    %970 = vmatmul.mubr.f32.gmra.mrb[0].mxu0 %v807
    %v971 = vpop.f32.mrb[0].mxu0
    %v972 = vadd.f32 0.0, %v971
    %v973 = vpop.f32.mrb[0].mxu0
    %974 = vmatprep.mubr.f32.mxu0 0.0
    %975 = vmatmul.mubr.f32.gmra.mrb[0].mxu0 %v809
    %v976 = vpop.f32.mrb[0].mxu0
    %v977 = vadd.f32 0.0, %v976
    %v978 = vpop.f32.mrb[0].mxu0
    %979 = vmatprep.mubr.f32.mxu0 0.0
    %980 = vmatmul.mubr.f32.gmra.mrb[0].mxu0 %v811
    %v981 = vpop.f32.mrb[0].mxu0
    %v982 = vadd.f32 0.0, %v981
    %v983 = vpop.f32.mrb[0].mxu0
    %984 = vmatprep.mubr.f32.mxu0 0.0
    %985 = vmatmul.mubr.f32.gmra.mrb[0].mxu0 %v813
    %v986 = vpop.f32.mrb[0].mxu0
    %v987 = vadd.f32 0.0, %v986
    %v988 = vpop.f32.mrb[0].mxu0
    %989 = vmatprep.mubr.f32.mxu0 0.0
    %990 = vmatmul.mubr.f32.gmra.mrb[0].mxu0 %v815
    %v991 = vpop.f32.mrb[0].mxu0
    %v992 = vadd.f32 0.0, %v991
    %v993 = vpop.f32.mrb[0].mxu0
    %994 = vmatprep.mubr.f32.mxu0 0.0
    %995 = vmatmul.mubr.f32.gmra.mrb[0].mxu0 %v817
    %v996 = vpop.f32.mrb[0].mxu0
    %v997 = vadd.f32 0.0, %v996
    %v998 = vpop.f32.mrb[0].mxu0
    %999 = vmatprep.mubr.f32.mxu0 0.0
    %1000 = vmatmul.mubr.f32.gmra.mrb[0].mxu0 %v819
    %v1001 = vpop.f32.mrb[0].mxu0
    %v1002 = vadd.f32 0.0, %v1001
    %v1003 = vpop.f32.mrb[0].mxu0
    %1004 = vmatprep.mubr.f32.mxu0 0.0
    %1005 = vmatmul.mubr.f32.gmra.mrb[0].mxu0 %v821
    %v1006 = vpop.f32.mrb[0].mxu0
    %v1007 = vadd.f32 0.0, %v1006
    %v1008 = vpop.f32.mrb[0].mxu0
    %1009 = vmatprep.mubr.f32.mxu0 0.0
    %1010 = vmatmul.mubr.f32.gmra.mrb[0].mxu0 %v823
    %v1011 = vpop.f32.mrb[0].mxu0
    %v1012 = vadd.f32 0.0, %v1011
    %v1013 = vpop.f32.mrb[0].mxu0
    %1014 = vmatprep.mubr.f32.mxu0 0.0
    %1015 = vmatmul.mubr.f32.gmra.mrb[0].mxu0 %v825
    %v1016 = vpop.f32.mrb[0].mxu0
    %v1017 = vadd.f32 0.0, %v1016
    %v1018 = vpop.f32.mrb[0].mxu0
    %1019 = vmatprep.mubr.f32.mxu0 0.0
    %1020 = vmatmul.mubr.f32.gmra.mrb[0].mxu0 %v827
    %v1021 = vpop.f32.mrb[0].mxu0
    %v1022 = vadd.f32 0.0, %v1021
    %v1023 = vpop.f32.mrb[0].mxu0
    %1024 = vmatprep.mubr.f32.mxu0 0.0
    %1025 = vmatmul.mubr.f32.gmra.mrb[0].mxu0 %v829
    %v1026 = vpop.f32.mrb[0].mxu0
    %v1027 = vadd.f32 0.0, %v1026
    %v1028 = vpop.f32.mrb[0].mxu0
    %1029 = vmatprep.mubr.f32.mxu0 0.0
    %1030 = vmatmul.mubr.f32.gmra.mrb[0].mxu0 %v831
    %v1031 = vpop.f32.mrb[0].mxu0
    %v1032 = vadd.f32 0.0, %v1031
    %v1033 = vpop.f32.mrb[0].mxu0
    %1034 = vmatprep.mubr.f32.mxu0 0.0
    %1035 = vmatmul.mubr.f32.gmra.mrb[0].mxu0 %v833
    %v1036 = vpop.f32.mrb[0].mxu0
    %v1037 = vadd.f32 0.0, %v1036
    %v1038 = vpop.f32.mrb[0].mxu0
    %1039 = vmatprep.mubr.f32.mxu0 0.0
    %1040 = vmatmul.mubr.f32.gmra.mrb[0].mxu0 %v835
    %v1041 = vpop.f32.mrb[0].mxu0
    %v1042 = vadd.f32 0.0, %v1041
    %v1043 = vpop.f32.mrb[0].mxu0
    %1044 = vdwg.mxu0
    %v1045 = vadd.f32 %v967, %v987
    %v1046 = vadd.f32 %v972, %v992
    %v1047 = vadd.f32 %v977, %v997
    %v1048 = vadd.f32 %v982, %v1002
    %v1049 = vadd.f32 %v1045, %v1007
    %v1050 = vadd.f32 %v1046, %v1012
    %v1051 = vadd.f32 %v1047, %v1017
    %v1052 = vadd.f32 %v1048, %v1022
    %v1053 = vadd.f32 %v1049, %v1027
    %v1054 = vadd.f32 %v1050, %v1032
    %v1055 = vadd.f32 %v1051, %v1037
    %v1056 = vadd.f32 %v1052, %v1042
    %s1057 = scalar_lea.vmem %s1, 32
    %v1058 = vld [vmem:[%s1057] sm:$0xff]
    %v1059 = vld [vmem:[%s1057 + $0x8] sm:$0xff]
    %v1060 = vld [vmem:[%s1057 + $0x10] sm:$0xff]
    %v1061 = vld [vmem:[%s1057 + $0x18] sm:$0xff]
    %v1063 = vsel %vm213, %v1053, 0
    %v1066 = vsel %vm213, %v1054, 0
    %v1069 = vsel %vm213, %v1055, 0
    %v1072 = vsel %vm213, %v1056, 0
    %1074 = vmatprep.subr.mxu0 0.0
    %1075 = vmatpush1.msra.mxu0 %v1058
    %1076 = vmatprep.subr.mxu0 0.0
    %1077 = vmatpush1.msra.mxu0 %v1059
    %1078 = vmatprep.subr.mxu0 0.0
    %1079 = vmatpush1.msra.mxu0 %v1060
    %1080 = vmatprep.subr.mxu0 0.0
    %1081 = vmatpush1.msra.mxu0 %v1061
    %1082 = vmatprep.subr.mxu0 0.0
    %1083 = vmatpush1.msra.mxu0 0.0
    %1084 = vmatprep.subr.mxu0 0.0
    %1085 = vmatpush1.msra.mxu0 0.0
    %1086 = vmatprep.subr.mxu0 0.0
    %1087 = vmatpush1.msra.mxu0 0.0
    %1088 = vmatprep.subr.mxu0 0.0
    %1089 = vmatpush1.msra.mxu0 0.0
    %1090 = vmatprep.subr.mxu0 0.0
    %1091 = vmatpush1.msra.mxu0 0.0
    %1092 = vmatprep.subr.mxu0 0.0
    %1093 = vmatpush1.msra.mxu0 0.0
    %1094 = vmatprep.subr.mxu0 0.0
    %1095 = vmatpush1.msra.mxu0 0.0
    %1096 = vmatprep.subr.mxu0 0.0
    %1097 = vmatpush1.msra.mxu0 0.0
    %1098 = vmatprep.subr.mxu0 0.0
    %1099 = vmatpush1.msra.mxu0 0.0
    %1100 = vmatprep.subr.mxu0 0.0
    %1101 = vmatpush1.msra.mxu0 0.0
    %1102 = vmatprep.subr.mxu0 0.0
    %1103 = vmatpush1.msra.mxu0 0.0
    %1104 = vmatprep.subr.mxu0 0.0
    %1105 = vmatpush1.msra.mxu0 0.0
    %1106 = vmatprep.subr.mxu0 0.0
    %1107 = vmatpush1.msra.mxu0 0.0
    %1108 = vmatprep.subr.mxu0 0.0
    %1109 = vmatpush1.msra.mxu0 0.0
    %1110 = vmatprep.subr.mxu0 0.0
    %1111 = vmatpush1.msra.mxu0 0.0
    %1112 = vmatprep.subr.mxu0 0.0
    %1113 = vmatpush1.msra.mxu0 0.0
    %1114 = vmatprep.subr.mxu0 0.0
    %1115 = vmatpush1.msra.mxu0 0.0
    %1116 = vmatprep.subr.mxu0 0.0
    %1117 = vmatpush1.msra.mxu0 0.0
    %1118 = vmatprep.subr.mxu0 0.0
    %1119 = vmatpush1.msra.mxu0 0.0
    %1120 = vmatprep.subr.mxu0 0.0
    %1121 = vmatpush1.msra.mxu0 0.0
    %1122 = vmatprep.subr.mxu0 0.0
    %1123 = vmatpush1.msra.mxu0 0.0
    %1124 = vmatprep.subr.mxu0 0.0
    %1125 = vmatpush1.msra.mxu0 0.0
    %1126 = vmatprep.subr.mxu0 0.0
    %1127 = vmatpush1.msra.mxu0 0.0
    %1128 = vmatprep.subr.mxu0 0.0
    %1129 = vmatpush1.msra.mxu0 0.0
    %1130 = vmatprep.subr.mxu0 0.0
    %1131 = vmatpush1.msra.mxu0 0.0
    %1132 = vmatprep.subr.mxu0 0.0
    %1133 = vmatpush1.msra.mxu0 0.0
    %1134 = vmatprep.subr.mxu0 0.0
    %1135 = vmatpush1.msra.mxu0 0.0
    %1136 = vmatprep.subr.mxu0 0.0
    %1137 = vmatpush1.msra.mxu0 0.0
    %1138 = vmatprep.mubr.f32.mxu0 0.0
    %1139 = vmatmul.mubr.f32.gmra.mrb[0].mxu0 %v1063
    %v1140 = vpop.f32.mrb[0].mxu0
    %v1141 = vadd.f32 0.0, %v1140
    %v1142 = vpop.f32.mrb[0].mxu0
    %1143 = vmatprep.mubr.f32.mxu0 0.0
    %1144 = vmatmul.mubr.f32.gmra.mrb[0].mxu0 %v1066
    %v1145 = vpop.f32.mrb[0].mxu0
    %v1146 = vadd.f32 0.0, %v1145
    %v1147 = vpop.f32.mrb[0].mxu0
    %1148 = vmatprep.mubr.f32.mxu0 0.0
    %1149 = vmatmul.mubr.f32.gmra.mrb[0].mxu0 %v1069
    %v1150 = vpop.f32.mrb[0].mxu0
    %v1151 = vadd.f32 0.0, %v1150
    %v1152 = vpop.f32.mrb[0].mxu0
    %1153 = vmatprep.mubr.f32.mxu0 0.0
    %1154 = vmatmul.mubr.f32.gmra.mrb[0].mxu0 %v1072
    %v1155 = vpop.f32.mrb[0].mxu0
    %v1156 = vadd.f32 0.0, %v1155
    %v1157 = vpop.f32.mrb[0].mxu0
    %1158 = vdwg.mxu0
    %v1159 = vlaneseq
    %v1160 = vshrl.u32 %v1159, 7
    %v1161 = vsub.s32 1, %v1160
    %v1162 = vrot.slane %v204, %v1161
    %v1163 = vadd.f32 %v1141, %v1162
    %v1164 = vadd.f32 %v1146, %v1162
    %v1165 = vadd.f32 %v1151, %v1162
    %v1166 = vadd.f32 %v1156, %v1162
    %v1167 = vadd.f32 %v18, %v1163
    %v1168 = vadd.f32 %v19, %v1164
    %v1169 = vadd.f32 %v20, %v1165
    %v1170 = vadd.f32 %v21, %v1166
    %v1171 = vsel %vm213, %v1167, 0.0
    %1172 = vadd.xlane.f32.xlu0 %v1171
    %v1173 = vpop.xlane.xlu0 %1172
    %v1174 = vsel %vm213, %v1168, 0.0
    %1175 = vadd.xlane.f32.xlu0 %v1174
    %v1176 = vpop.xlane.xlu0 %1175
    %v1177 = vsel %vm213, %v1169, 0.0
    %1178 = vadd.xlane.f32.xlu0 %v1177
    %v1179 = vpop.xlane.xlu0 %1178
    %v1180 = vsel %vm213, %v1170, 0.0
    %1181 = vadd.xlane.f32.xlu0 %v1180
    %v1182 = vpop.xlane.xlu0 %1181
    %v1183 = vrcp.pop 32.0
    %v1184 = vmul.f32 %v1173, %v1183
    %v1185 = vmul.f32 %v1176, %v1183
    %v1186 = vmul.f32 %v1179, %v1183
    %v1187 = vmul.f32 %v1182, %v1183
    %v1188 = vsub.f32 %v1167, %v1184
    %v1189 = vsub.f32 %v1168, %v1185
    %v1190 = vsub.f32 %v1169, %v1186
    %v1191 = vsub.f32 %v1170, %v1187
    %v1192 = vmul.f32 %v1188, %v1188
    %v1193 = vmul.f32 %v1189, %v1189
    %v1194 = vmul.f32 %v1190, %v1190
    %v1195 = vmul.f32 %v1191, %v1191
    %v1196 = vsel %vm213, %v1192, 0.0
    %1197 = vadd.xlane.f32.xlu0 %v1196
    %v1198 = vpop.xlane.xlu0 %1197
    %v1199 = vsel %vm213, %v1193, 0.0
    %1200 = vadd.xlane.f32.xlu0 %v1199
    %v1201 = vpop.xlane.xlu0 %1200
    %v1202 = vsel %vm213, %v1194, 0.0
    %1203 = vadd.xlane.f32.xlu0 %v1202
    %v1204 = vpop.xlane.xlu0 %1203
    %v1205 = vsel %vm213, %v1195, 0.0
    %1206 = vadd.xlane.f32.xlu0 %v1205
    %v1207 = vpop.xlane.xlu0 %1206
    %v1208 = vmul.f32 %v1198, %v1183
    %v1209 = vmul.f32 %v1201, %v1183
    %v1210 = vmul.f32 %v1204, %v1183
    %v1211 = vmul.f32 %v1207, %v1183
    %v1212 = vadd.f32 %v1208, 1e-05
    %v1213 = vadd.f32 %v1209, 1e-05
    %v1214 = vadd.f32 %v1210, 1e-05
    %v1215 = vadd.f32 %v1211, 1e-05
    %v1216 = vrsqrt.pop %v1212
    %v1217 = vrsqrt.pop %v1213
    %v1218 = vrsqrt.pop %v1214
    %v1219 = vrsqrt.pop %v1215
    %v1220 = vmul.f32 %v1188, %v1216
    %v1221 = vmul.f32 %v1189, %v1217
    %v1222 = vmul.f32 %v1190, %v1218
    %v1223 = vmul.f32 %v1191, %v1219
    %v1224 = vlaneseq
    %v1225 = vshrl.u32 %v1224, 7
    %v1226 = vsub.s32 4, %v1225
    %v1227 = vrot.slane %v204, %v1226
    %v1228 = vmul.f32 %v1220, %v1227
    %v1229 = vmul.f32 %v1221, %v1227
    %v1230 = vmul.f32 %v1222, %v1227
    %v1231 = vmul.f32 %v1223, %v1227
    %v1232 = vlaneseq
    %v1233 = vshrl.u32 %v1232, 7
    %v1234 = vsub.s32 5, %v1233
    %v1235 = vrot.slane %v204, %v1234
    %v1236 = vadd.f32 %v1228, %v1235
    %v1237 = vadd.f32 %v1229, %v1235
    %v1238 = vadd.f32 %v1230, %v1235
    %v1239 = vadd.f32 %v1231, %v1235
    %s1240 = scalar_lea.vmem %s1, 64
    %v1241 = vld [vmem:[%s1240] sm:$0xff]
    %v1242 = vld [vmem:[%s1240 + $0x8] sm:$0xff]
    %v1243 = vld [vmem:[%s1240 + $0x10] sm:$0xff]
    %v1244 = vld [vmem:[%s1240 + $0x18] sm:$0xff]
    %v1245 = vlaneseq
    %v1246 = vshrl.u32 %v1245, 7
    %v1247 = vsub.s32 2, %v1246
    %v1248 = vrot.slane %v204, %v1247
    %v1250 = vsel %vm213, %v1236, 0
    %v1253 = vsel %vm213, %v1237, 0
    %v1256 = vsel %vm213, %v1238, 0
    %v1259 = vsel %vm213, %v1239, 0
    %1261 = vmatprep.subr.mxu0 0.0
    %1262 = vmatpush1.msra.mxu0 %v1241
    %1263 = vmatprep.subr.mxu0 0.0
    %1264 = vmatpush1.msra.mxu0 %v1242
    %1265 = vmatprep.subr.mxu0 0.0
    %1266 = vmatpush1.msra.mxu0 %v1243
    %1267 = vmatprep.subr.mxu0 0.0
    %1268 = vmatpush1.msra.mxu0 %v1244
    %1269 = vmatprep.subr.mxu0 0.0
    %1270 = vmatpush1.msra.mxu0 0.0
    %1271 = vmatprep.subr.mxu0 0.0
    %1272 = vmatpush1.msra.mxu0 0.0
    %1273 = vmatprep.subr.mxu0 0.0
    %1274 = vmatpush1.msra.mxu0 0.0
    %1275 = vmatprep.subr.mxu0 0.0
    %1276 = vmatpush1.msra.mxu0 0.0
    %1277 = vmatprep.subr.mxu0 0.0
    %1278 = vmatpush1.msra.mxu0 0.0
    %1279 = vmatprep.subr.mxu0 0.0
    %1280 = vmatpush1.msra.mxu0 0.0
    %1281 = vmatprep.subr.mxu0 0.0
    %1282 = vmatpush1.msra.mxu0 0.0
    %1283 = vmatprep.subr.mxu0 0.0
    %1284 = vmatpush1.msra.mxu0 0.0
    %1285 = vmatprep.subr.mxu0 0.0
    %1286 = vmatpush1.msra.mxu0 0.0
    %1287 = vmatprep.subr.mxu0 0.0
    %1288 = vmatpush1.msra.mxu0 0.0
    %1289 = vmatprep.subr.mxu0 0.0
    %1290 = vmatpush1.msra.mxu0 0.0
    %1291 = vmatprep.subr.mxu0 0.0
    %1292 = vmatpush1.msra.mxu0 0.0
    %1293 = vmatprep.subr.mxu0 0.0
    %1294 = vmatpush1.msra.mxu0 0.0
    %1295 = vmatprep.subr.mxu0 0.0
    %1296 = vmatpush1.msra.mxu0 0.0
    %1297 = vmatprep.subr.mxu0 0.0
    %1298 = vmatpush1.msra.mxu0 0.0
    %1299 = vmatprep.subr.mxu0 0.0
    %1300 = vmatpush1.msra.mxu0 0.0
    %1301 = vmatprep.subr.mxu0 0.0
    %1302 = vmatpush1.msra.mxu0 0.0
    %1303 = vmatprep.subr.mxu0 0.0
    %1304 = vmatpush1.msra.mxu0 0.0
    %1305 = vmatprep.subr.mxu0 0.0
    %1306 = vmatpush1.msra.mxu0 0.0
    %1307 = vmatprep.subr.mxu0 0.0
    %1308 = vmatpush1.msra.mxu0 0.0
    %1309 = vmatprep.subr.mxu0 0.0
    %1310 = vmatpush1.msra.mxu0 0.0
    %1311 = vmatprep.subr.mxu0 0.0
    %1312 = vmatpush1.msra.mxu0 0.0
    %1313 = vmatprep.subr.mxu0 0.0
    %1314 = vmatpush1.msra.mxu0 0.0
    %1315 = vmatprep.subr.mxu0 0.0
    %1316 = vmatpush1.msra.mxu0 0.0
    %1317 = vmatprep.subr.mxu0 0.0
    %1318 = vmatpush1.msra.mxu0 0.0
    %1319 = vmatprep.subr.mxu0 0.0
    %1320 = vmatpush1.msra.mxu0 0.0
    %1321 = vmatprep.subr.mxu0 0.0
    %1322 = vmatpush1.msra.mxu0 0.0
    %1323 = vmatprep.subr.mxu0 0.0
    %1324 = vmatpush1.msra.mxu0 0.0
    %1325 = vmatprep.mubr.f32.mxu0 0.0
    %1326 = vmatmul.mubr.f32.gmra.mrb[0].mxu0 %v1250
    %v1327 = vpop.f32.mrb[0].mxu0
    %v1328 = vadd.f32 %v1248, %v1327
    %v1329 = vpop.f32.mrb[0].mxu0
    %1330 = vmatprep.mubr.f32.mxu0 0.0
    %1331 = vmatmul.mubr.f32.gmra.mrb[0].mxu0 %v1253
    %v1332 = vpop.f32.mrb[0].mxu0
    %v1333 = vadd.f32 %v1248, %v1332
    %v1334 = vpop.f32.mrb[0].mxu0
    %1335 = vmatprep.mubr.f32.mxu0 0.0
    %1336 = vmatmul.mubr.f32.gmra.mrb[0].mxu0 %v1256
    %v1337 = vpop.f32.mrb[0].mxu0
    %v1338 = vadd.f32 %v1248, %v1337
    %v1339 = vpop.f32.mrb[0].mxu0
    %1340 = vmatprep.mubr.f32.mxu0 0.0
    %1341 = vmatmul.mubr.f32.gmra.mrb[0].mxu0 %v1259
    %v1342 = vpop.f32.mrb[0].mxu0
    %v1343 = vadd.f32 %v1248, %v1342
    %v1344 = vpop.f32.mrb[0].mxu0
    %1345 = vdwg.mxu0
    %v1346 = vmax.f32 %v1328, 0.0
    %v1347 = vmax.f32 %v1333, 0.0
    %v1348 = vmax.f32 %v1338, 0.0
    %v1349 = vmax.f32 %v1343, 0.0
    %v1350 = vld [vmem:[%s2] sm:$0xff]
    %v1351 = vld [vmem:[%s2 + $0x8] sm:$0xff]
    %v1352 = vld [vmem:[%s2 + $0x10] sm:$0xff]
    %v1353 = vld [vmem:[%s2 + $0x18] sm:$0xff]
    %v1354 = vld [vmem:[%s2 + $0x20] sm:$0xff]
    %v1355 = vld [vmem:[%s2 + $0x28] sm:$0xff]
    %v1356 = vld [vmem:[%s2 + $0x30] sm:$0xff]
    %v1357 = vld [vmem:[%s2 + $0x38] sm:$0xff]
    %v1358 = vld [vmem:[%s2 + $0x40] sm:$0xff]
    %v1359 = vld [vmem:[%s2 + $0x48] sm:$0xff]
    %v1360 = vld [vmem:[%s2 + $0x50] sm:$0xff]
    %v1361 = vld [vmem:[%s2 + $0x58] sm:$0xff]
    %v1362 = vld [vmem:[%s2 + $0x60] sm:$0xff]
    %v1363 = vld [vmem:[%s2 + $0x68] sm:$0xff]
    %v1364 = vld [vmem:[%s2 + $0x70] sm:$0xff]
    %v1365 = vld [vmem:[%s2 + $0x78] sm:$0xff]
    %v1366 = vlaneseq
    %v1367 = vshrl.u32 %v1366, 7
    %v1368 = vsub.s32 3, %v1367
    %v1369 = vrot.slane %v204, %v1368
    %1370 = vmatprep.subr.mxu0 0.0
    %1371 = vmatpush1.msra.mxu0 %v1350
    %1372 = vmatprep.subr.mxu0 0.0
    %1373 = vmatpush1.msra.mxu0 %v1351
    %1374 = vmatprep.subr.mxu0 0.0
    %1375 = vmatpush1.msra.mxu0 %v1352
    %1376 = vmatprep.subr.mxu0 0.0
    %1377 = vmatpush1.msra.mxu0 %v1353
    %1378 = vmatprep.subr.mxu0 0.0
    %1379 = vmatpush1.msra.mxu0 %v1354
    %1380 = vmatprep.subr.mxu0 0.0
    %1381 = vmatpush1.msra.mxu0 %v1355
    %1382 = vmatprep.subr.mxu0 0.0
    %1383 = vmatpush1.msra.mxu0 %v1356
    %1384 = vmatprep.subr.mxu0 0.0
    %1385 = vmatpush1.msra.mxu0 %v1357
    %1386 = vmatprep.subr.mxu0 0.0
    %1387 = vmatpush1.msra.mxu0 %v1358
    %1388 = vmatprep.subr.mxu0 0.0
    %1389 = vmatpush1.msra.mxu0 %v1359
    %1390 = vmatprep.subr.mxu0 0.0
    %1391 = vmatpush1.msra.mxu0 %v1360
    %1392 = vmatprep.subr.mxu0 0.0
    %1393 = vmatpush1.msra.mxu0 %v1361
    %1394 = vmatprep.subr.mxu0 0.0
    %1395 = vmatpush1.msra.mxu0 %v1362
    %1396 = vmatprep.subr.mxu0 0.0
    %1397 = vmatpush1.msra.mxu0 %v1363
    %1398 = vmatprep.subr.mxu0 0.0
    %1399 = vmatpush1.msra.mxu0 %v1364
    %1400 = vmatprep.subr.mxu0 0.0
    %1401 = vmatpush1.msra.mxu0 %v1365
    %1402 = vmatprep.subr.mxu0 0.0
    %1403 = vmatpush1.msra.mxu0 0.0
    %1404 = vmatprep.subr.mxu0 0.0
    %1405 = vmatpush1.msra.mxu0 0.0
    %1406 = vmatprep.subr.mxu0 0.0
    %1407 = vmatpush1.msra.mxu0 0.0
    %1408 = vmatprep.subr.mxu0 0.0
    %1409 = vmatpush1.msra.mxu0 0.0
    %1410 = vmatprep.subr.mxu0 0.0
    %1411 = vmatpush1.msra.mxu0 0.0
    %1412 = vmatprep.subr.mxu0 0.0
    %1413 = vmatpush1.msra.mxu0 0.0
    %1414 = vmatprep.subr.mxu0 0.0
    %1415 = vmatpush1.msra.mxu0 0.0
    %1416 = vmatprep.subr.mxu0 0.0
    %1417 = vmatpush1.msra.mxu0 0.0
    %1418 = vmatprep.subr.mxu0 0.0
    %1419 = vmatpush1.msra.mxu0 0.0
    %1420 = vmatprep.subr.mxu0 0.0
    %1421 = vmatpush1.msra.mxu0 0.0
    %1422 = vmatprep.subr.mxu0 0.0
    %1423 = vmatpush1.msra.mxu0 0.0
    %1424 = vmatprep.subr.mxu0 0.0
    %1425 = vmatpush1.msra.mxu0 0.0
    %1426 = vmatprep.subr.mxu0 0.0
    %1427 = vmatpush1.msra.mxu0 0.0
    %1428 = vmatprep.subr.mxu0 0.0
    %1429 = vmatpush1.msra.mxu0 0.0
    %1430 = vmatprep.subr.mxu0 0.0
    %1431 = vmatpush1.msra.mxu0 0.0
    %1432 = vmatprep.subr.mxu0 0.0
    %1433 = vmatpush1.msra.mxu0 0.0
    %1434 = vmatprep.mubr.f32.mxu0 0.0
    %1435 = vmatmul.mubr.f32.gmra.mrb[0].mxu0 %v1346
    %v1436 = vpop.f32.mrb[0].mxu0
    %v1437 = vadd.f32 %v1369, %v1436
    %v1438 = vpop.f32.mrb[0].mxu0
    %1439 = vmatprep.mubr.f32.mxu0 0.0
    %1440 = vmatmul.mubr.f32.gmra.mrb[0].mxu0 %v1347
    %v1441 = vpop.f32.mrb[0].mxu0
    %v1442 = vadd.f32 %v1369, %v1441
    %v1443 = vpop.f32.mrb[0].mxu0
    %1444 = vmatprep.mubr.f32.mxu0 0.0
    %1445 = vmatmul.mubr.f32.gmra.mrb[0].mxu0 %v1348
    %v1446 = vpop.f32.mrb[0].mxu0
    %v1447 = vadd.f32 %v1369, %v1446
    %v1448 = vpop.f32.mrb[0].mxu0
    %1449 = vmatprep.mubr.f32.mxu0 0.0
    %1450 = vmatmul.mubr.f32.gmra.mrb[0].mxu0 %v1349
    %v1451 = vpop.f32.mrb[0].mxu0
    %v1452 = vadd.f32 %v1369, %v1451
    %v1453 = vpop.f32.mrb[0].mxu0
    %1454 = vdwg.mxu0
    %v1455 = vadd.f32 %v1236, %v1437
    %v1456 = vadd.f32 %v1237, %v1442
    %v1457 = vadd.f32 %v1238, %v1447
    %v1458 = vadd.f32 %v1239, %v1452
    %v1459 = vsel %vm213, %v1455, 0.0
    %1460 = vadd.xlane.f32.xlu0 %v1459
    %v1461 = vpop.xlane.xlu0 %1460
    %v1462 = vsel %vm213, %v1456, 0.0
    %1463 = vadd.xlane.f32.xlu0 %v1462
    %v1464 = vpop.xlane.xlu0 %1463
    %v1465 = vsel %vm213, %v1457, 0.0
    %1466 = vadd.xlane.f32.xlu0 %v1465
    %v1467 = vpop.xlane.xlu0 %1466
    %v1468 = vsel %vm213, %v1458, 0.0
    %1469 = vadd.xlane.f32.xlu0 %v1468
    %v1470 = vpop.xlane.xlu0 %1469
    %v1471 = vmul.f32 %v1461, %v1183
    %v1472 = vmul.f32 %v1464, %v1183
    %v1473 = vmul.f32 %v1467, %v1183
    %v1474 = vmul.f32 %v1470, %v1183
    %v1475 = vsub.f32 %v1455, %v1471
    %v1476 = vsub.f32 %v1456, %v1472
    %v1477 = vsub.f32 %v1457, %v1473
    %v1478 = vsub.f32 %v1458, %v1474
    %v1479 = vmul.f32 %v1475, %v1475
    %v1480 = vmul.f32 %v1476, %v1476
    %v1481 = vmul.f32 %v1477, %v1477
    %v1482 = vmul.f32 %v1478, %v1478
    %v1483 = vsel %vm213, %v1479, 0.0
    %1484 = vadd.xlane.f32.xlu0 %v1483
    %v1485 = vpop.xlane.xlu0 %1484
    %v1486 = vsel %vm213, %v1480, 0.0
    %1487 = vadd.xlane.f32.xlu0 %v1486
    %v1488 = vpop.xlane.xlu0 %1487
    %v1489 = vsel %vm213, %v1481, 0.0
    %1490 = vadd.xlane.f32.xlu0 %v1489
    %v1491 = vpop.xlane.xlu0 %1490
    %v1492 = vsel %vm213, %v1482, 0.0
    %1493 = vadd.xlane.f32.xlu0 %v1492
    %v1494 = vpop.xlane.xlu0 %1493
    %v1495 = vmul.f32 %v1485, %v1183
    %v1496 = vmul.f32 %v1488, %v1183
    %v1497 = vmul.f32 %v1491, %v1183
    %v1498 = vmul.f32 %v1494, %v1183
    %v1499 = vadd.f32 %v1495, 1e-05
    %v1500 = vadd.f32 %v1496, 1e-05
    %v1501 = vadd.f32 %v1497, 1e-05
    %v1502 = vadd.f32 %v1498, 1e-05
    %v1503 = vrsqrt.pop %v1499
    %v1504 = vrsqrt.pop %v1500
    %v1505 = vrsqrt.pop %v1501
    %v1506 = vrsqrt.pop %v1502
    %v1507 = vmul.f32 %v1475, %v1503
    %v1508 = vmul.f32 %v1476, %v1504
    %v1509 = vmul.f32 %v1477, %v1505
    %v1510 = vmul.f32 %v1478, %v1506
    %v1511 = vlaneseq
    %v1512 = vshrl.u32 %v1511, 7
    %v1513 = vsub.s32 6, %v1512
    %v1514 = vrot.slane %v204, %v1513
    %v1515 = vmul.f32 %v1507, %v1514
    %v1516 = vmul.f32 %v1508, %v1514
    %v1517 = vmul.f32 %v1509, %v1514
    %v1518 = vmul.f32 %v1510, %v1514
    %v1519 = vlaneseq
    %v1520 = vshrl.u32 %v1519, 7
    %v1521 = vsub.s32 7, %v1520
    %v1522 = vrot.slane %v204, %v1521
    %v1523 = vadd.f32 %v1515, %v1522
    %v1524 = vadd.f32 %v1516, %v1522
    %v1525 = vadd.f32 %v1517, %v1522
    %v1526 = vadd.f32 %v1518, %v1522
    %s1527 = scalar_lea.vmem %s3, 8
    %v1528 = vld [vmem:[%s1527] sm:$0xff]
    %s1529 = scalar_lea.vmem %s1, 96
    %v1530 = vld [vmem:[%s1529] sm:$0xff]
    %v1531 = vld [vmem:[%s1529 + $0x8] sm:$0xff]
    %v1532 = vld [vmem:[%s1529 + $0x10] sm:$0xff]
    %v1533 = vld [vmem:[%s1529 + $0x18] sm:$0xff]
    %v1534 = vlaneseq
    %v1535 = vshrl.u32 %v1534, 7
    %v1536 = vsub.s32 0, %v1535
    %v1537 = vrot.slane %v1528, %v1536
    %v1539 = vsel %vm213, %v1523, 0
    %v1542 = vsel %vm213, %v1524, 0
    %v1545 = vsel %vm213, %v1525, 0
    %v1548 = vsel %vm213, %v1526, 0
    %1550 = vmatprep.subr.mxu0 0.0
    %1551 = vmatpush1.msra.mxu0 %v1530
    %1552 = vmatprep.subr.mxu0 0.0
    %1553 = vmatpush1.msra.mxu0 %v1531
    %1554 = vmatprep.subr.mxu0 0.0
    %1555 = vmatpush1.msra.mxu0 %v1532
    %1556 = vmatprep.subr.mxu0 0.0
    %1557 = vmatpush1.msra.mxu0 %v1533
    %1558 = vmatprep.subr.mxu0 0.0
    %1559 = vmatpush1.msra.mxu0 0.0
    %1560 = vmatprep.subr.mxu0 0.0
    %1561 = vmatpush1.msra.mxu0 0.0
    %1562 = vmatprep.subr.mxu0 0.0
    %1563 = vmatpush1.msra.mxu0 0.0
    %1564 = vmatprep.subr.mxu0 0.0
    %1565 = vmatpush1.msra.mxu0 0.0
    %1566 = vmatprep.subr.mxu0 0.0
    %1567 = vmatpush1.msra.mxu0 0.0
    %1568 = vmatprep.subr.mxu0 0.0
    %1569 = vmatpush1.msra.mxu0 0.0
    %1570 = vmatprep.subr.mxu0 0.0
    %1571 = vmatpush1.msra.mxu0 0.0
    %1572 = vmatprep.subr.mxu0 0.0
    %1573 = vmatpush1.msra.mxu0 0.0
    %1574 = vmatprep.subr.mxu0 0.0
    %1575 = vmatpush1.msra.mxu0 0.0
    %1576 = vmatprep.subr.mxu0 0.0
    %1577 = vmatpush1.msra.mxu0 0.0
    %1578 = vmatprep.subr.mxu0 0.0
    %1579 = vmatpush1.msra.mxu0 0.0
    %1580 = vmatprep.subr.mxu0 0.0
    %1581 = vmatpush1.msra.mxu0 0.0
    %1582 = vmatprep.subr.mxu0 0.0
    %1583 = vmatpush1.msra.mxu0 0.0
    %1584 = vmatprep.subr.mxu0 0.0
    %1585 = vmatpush1.msra.mxu0 0.0
    %1586 = vmatprep.subr.mxu0 0.0
    %1587 = vmatpush1.msra.mxu0 0.0
    %1588 = vmatprep.subr.mxu0 0.0
    %1589 = vmatpush1.msra.mxu0 0.0
    %1590 = vmatprep.subr.mxu0 0.0
    %1591 = vmatpush1.msra.mxu0 0.0
    %1592 = vmatprep.subr.mxu0 0.0
    %1593 = vmatpush1.msra.mxu0 0.0
    %1594 = vmatprep.subr.mxu0 0.0
    %1595 = vmatpush1.msra.mxu0 0.0
    %1596 = vmatprep.subr.mxu0 0.0
    %1597 = vmatpush1.msra.mxu0 0.0
    %1598 = vmatprep.subr.mxu0 0.0
    %1599 = vmatpush1.msra.mxu0 0.0
    %1600 = vmatprep.subr.mxu0 0.0
    %1601 = vmatpush1.msra.mxu0 0.0
    %1602 = vmatprep.subr.mxu0 0.0
    %1603 = vmatpush1.msra.mxu0 0.0
    %1604 = vmatprep.subr.mxu0 0.0
    %1605 = vmatpush1.msra.mxu0 0.0
    %1606 = vmatprep.subr.mxu0 0.0
    %1607 = vmatpush1.msra.mxu0 0.0
    %1608 = vmatprep.subr.mxu0 0.0
    %1609 = vmatpush1.msra.mxu0 0.0
    %1610 = vmatprep.subr.mxu0 0.0
    %1611 = vmatpush1.msra.mxu0 0.0
    %1612 = vmatprep.subr.mxu0 0.0
    %1613 = vmatpush1.msra.mxu0 0.0
    %1614 = vmatprep.mubr.f32.mxu0 0.0
    %1615 = vmatmul.mubr.f32.gmra.mrb[0].mxu0 %v1539
    %v1616 = vpop.f32.mrb[0].mxu0
    %v1617 = vadd.f32 %v1537, %v1616
    %v1618 = vpop.f32.mrb[0].mxu0
    %1619 = vmatprep.mubr.f32.mxu0 0.0
    %1620 = vmatmul.mubr.f32.gmra.mrb[0].mxu0 %v1542
    %v1621 = vpop.f32.mrb[0].mxu0
    %v1622 = vadd.f32 %v1537, %v1621
    %v1623 = vpop.f32.mrb[0].mxu0
    %1624 = vmatprep.mubr.f32.mxu0 0.0
    %1625 = vmatmul.mubr.f32.gmra.mrb[0].mxu0 %v1545
    %v1626 = vpop.f32.mrb[0].mxu0
    %v1627 = vadd.f32 %v1537, %v1626
    %v1628 = vpop.f32.mrb[0].mxu0
    %1629 = vmatprep.mubr.f32.mxu0 0.0
    %1630 = vmatmul.mubr.f32.gmra.mrb[0].mxu0 %v1548
    %v1631 = vpop.f32.mrb[0].mxu0
    %v1632 = vadd.f32 %v1537, %v1631
    %v1633 = vpop.f32.mrb[0].mxu0
    %1634 = vdwg.mxu0
    %v1635 = vmul.f32 %v1617, %v328
    %v1636 = vmul.f32 %v1622, %v330
    %v1637 = vmul.f32 %v1627, %v332
    %v1638 = vmul.f32 %v1632, %v334
    %v1639 = vmul.f32 %v1617, %v336
    %v1640 = vmul.f32 %v1622, %v338
    %v1641 = vmul.f32 %v1627, %v340
    %v1642 = vmul.f32 %v1632, %v342
    %v1643 = vmul.f32 %v1617, %v344
    %v1644 = vmul.f32 %v1622, %v346
    %v1645 = vmul.f32 %v1627, %v348
    %v1646 = vmul.f32 %v1632, %v350
    %v1647 = vmul.f32 %v1617, %v352
    %v1648 = vmul.f32 %v1622, %v354
    %v1649 = vmul.f32 %v1627, %v356
    %v1650 = vmul.f32 %v1632, %v358
    %v1651 = vmul.f32 %v1617, %v392
    %v1652 = vmul.f32 %v1622, %v394
    %v1653 = vmul.f32 %v1627, %v396
    %v1654 = vmul.f32 %v1632, %v398
    %v1655 = vmul.f32 %v1617, %v400
    %v1656 = vmul.f32 %v1622, %v402
    %v1657 = vmul.f32 %v1627, %v404
    %v1658 = vmul.f32 %v1632, %v406
    %v1659 = vmul.f32 %v1617, %v408
    %v1660 = vmul.f32 %v1622, %v410
    %v1661 = vmul.f32 %v1627, %v412
    %v1662 = vmul.f32 %v1632, %v414
    %v1663 = vmul.f32 %v1617, %v416
    %v1664 = vmul.f32 %v1622, %v418
    %v1665 = vmul.f32 %v1627, %v420
    %v1666 = vmul.f32 %v1632, %v422
    %1683 = vrot.lane.b32.xlu0 %v1635, 96
    %v1684 = vpop.permute.xlu0 %1683
    %1685 = vrot.lane.b32.xlu0 %v1636, 96
    %v1686 = vpop.permute.xlu0 %1685
    %1687 = vrot.lane.b32.xlu0 %v1637, 96
    %v1688 = vpop.permute.xlu0 %1687
    %1689 = vrot.lane.b32.xlu0 %v1638, 96
    %v1690 = vpop.permute.xlu0 %1689
    %1691 = vrot.lane.b32.xlu0 %v1639, 96
    %v1692 = vpop.permute.xlu0 %1691
    %1693 = vrot.lane.b32.xlu0 %v1640, 96
    %v1694 = vpop.permute.xlu0 %1693
    %1695 = vrot.lane.b32.xlu0 %v1641, 96
    %v1696 = vpop.permute.xlu0 %1695
    %1697 = vrot.lane.b32.xlu0 %v1642, 96
    %v1698 = vpop.permute.xlu0 %1697
    %1699 = vrot.lane.b32.xlu0 %v1643, 96
    %v1700 = vpop.permute.xlu0 %1699
    %1701 = vrot.lane.b32.xlu0 %v1644, 96
    %v1702 = vpop.permute.xlu0 %1701
    %1703 = vrot.lane.b32.xlu0 %v1645, 96
    %v1704 = vpop.permute.xlu0 %1703
    %1705 = vrot.lane.b32.xlu0 %v1646, 96
    %v1706 = vpop.permute.xlu0 %1705
    %1707 = vrot.lane.b32.xlu0 %v1647, 96
    %v1708 = vpop.permute.xlu0 %1707
    %1709 = vrot.lane.b32.xlu0 %v1648, 96
    %v1710 = vpop.permute.xlu0 %1709
    %1711 = vrot.lane.b32.xlu0 %v1649, 96
    %v1712 = vpop.permute.xlu0 %1711
    %1713 = vrot.lane.b32.xlu0 %v1650, 96
    %v1714 = vpop.permute.xlu0 %1713
    %v1716 = vsel %vm213, %v1617, 0
    %v1719 = vsel %vm213, %v1622, 0
    %v1722 = vsel %vm213, %v1627, 0
    %v1725 = vsel %vm213, %v1632, 0
    %v1727 = vsel %vm213, %v1684, 0
    %v1729 = vsel %vm213, %v1686, 0
    %v1731 = vsel %vm213, %v1688, 0
    %v1733 = vsel %vm213, %v1690, 0
    %v1735 = vsel %vm213, %v1692, 0
    %v1737 = vsel %vm213, %v1694, 0
    %v1739 = vsel %vm213, %v1696, 0
    %v1741 = vsel %vm213, %v1698, 0
    %v1743 = vsel %vm213, %v1700, 0
    %v1745 = vsel %vm213, %v1702, 0
    %v1747 = vsel %vm213, %v1704, 0
    %v1749 = vsel %vm213, %v1706, 0
    %v1751 = vsel %vm213, %v1708, 0
    %v1753 = vsel %vm213, %v1710, 0
    %v1755 = vsel %vm213, %v1712, 0
    %v1757 = vsel %vm213, %v1714, 0
    %1759 = vmatprep.subr.mxu0 0.0
    %1760 = vmatpush1.xpose.msra.mxu0 %v1727
    %1761 = vmatprep.subr.mxu0 0.0
    %1762 = vmatpush1.xpose.msra.mxu0 %v1729
    %1763 = vmatprep.subr.mxu0 0.0
    %1764 = vmatpush1.xpose.msra.mxu0 %v1731
    %1765 = vmatprep.subr.mxu0 0.0
    %1766 = vmatpush1.xpose.msra.mxu0 %v1733
    %1767 = vmatprep.subr.mxu0 0.0
    %1768 = vmatpush1.xpose.msra.mxu0 %v1735
    %1769 = vmatprep.subr.mxu0 0.0
    %1770 = vmatpush1.xpose.msra.mxu0 %v1737
    %1771 = vmatprep.subr.mxu0 0.0
    %1772 = vmatpush1.xpose.msra.mxu0 %v1739
    %1773 = vmatprep.subr.mxu0 0.0
    %1774 = vmatpush1.xpose.msra.mxu0 %v1741
    %1775 = vmatprep.subr.mxu0 0.0
    %1776 = vmatpush1.xpose.msra.mxu0 %v1743
    %1777 = vmatprep.subr.mxu0 0.0
    %1778 = vmatpush1.xpose.msra.mxu0 %v1745
    %1779 = vmatprep.subr.mxu0 0.0
    %1780 = vmatpush1.xpose.msra.mxu0 %v1747
    %1781 = vmatprep.subr.mxu0 0.0
    %1782 = vmatpush1.xpose.msra.mxu0 %v1749
    %1783 = vmatprep.subr.mxu0 0.0
    %1784 = vmatpush1.xpose.msra.mxu0 %v1751
    %1785 = vmatprep.subr.mxu0 0.0
    %1786 = vmatpush1.xpose.msra.mxu0 %v1753
    %1787 = vmatprep.subr.mxu0 0.0
    %1788 = vmatpush1.xpose.msra.mxu0 %v1755
    %1789 = vmatprep.subr.mxu0 0.0
    %1790 = vmatpush1.xpose.msra.mxu0 %v1757
    %1791 = vmatprep.subr.mxu0 0.0
    %1792 = vmatpush1.xpose.msra.mxu0 0.0
    %1793 = vmatprep.subr.mxu0 0.0
    %1794 = vmatpush1.xpose.msra.mxu0 0.0
    %1795 = vmatprep.subr.mxu0 0.0
    %1796 = vmatpush1.xpose.msra.mxu0 0.0
    %1797 = vmatprep.subr.mxu0 0.0
    %1798 = vmatpush1.xpose.msra.mxu0 0.0
    %1799 = vmatprep.subr.mxu0 0.0
    %1800 = vmatpush1.xpose.msra.mxu0 0.0
    %1801 = vmatprep.subr.mxu0 0.0
    %1802 = vmatpush1.xpose.msra.mxu0 0.0
    %1803 = vmatprep.subr.mxu0 0.0
    %1804 = vmatpush1.xpose.msra.mxu0 0.0
    %1805 = vmatprep.subr.mxu0 0.0
    %1806 = vmatpush1.xpose.msra.mxu0 0.0
    %1807 = vmatprep.subr.mxu0 0.0
    %1808 = vmatpush1.xpose.msra.mxu0 0.0
    %1809 = vmatprep.subr.mxu0 0.0
    %1810 = vmatpush1.xpose.msra.mxu0 0.0
    %1811 = vmatprep.subr.mxu0 0.0
    %1812 = vmatpush1.xpose.msra.mxu0 0.0
    %1813 = vmatprep.subr.mxu0 0.0
    %1814 = vmatpush1.xpose.msra.mxu0 0.0
    %1815 = vmatprep.subr.mxu0 0.0
    %1816 = vmatpush1.xpose.msra.mxu0 0.0
    %1817 = vmatprep.subr.mxu0 0.0
    %1818 = vmatpush1.xpose.msra.mxu0 0.0
    %1819 = vmatprep.subr.mxu0 0.0
    %1820 = vmatpush1.xpose.msra.mxu0 0.0
    %1821 = vmatprep.subr.mxu0 0.0
    %1822 = vmatpush1.xpose.msra.mxu0 0.0
    %1823 = vmatprep.mubr.f32.mxu0 0.0
    %1824 = vmatmul.mubr.f32.gmra.mrb[0].mxu0 %v1716
    %v1825 = vpop.f32.mrb[0].mxu0
    %v1826 = vadd.f32 %v123, %v1825
    %v1827 = vpop.f32.mrb[0].mxu0
    %1828 = vmatprep.mubr.f32.mxu0 0.0
    %1829 = vmatmul.mubr.f32.gmra.mrb[0].mxu0 %v1719
    %v1830 = vpop.f32.mrb[0].mxu0
    %v1831 = vadd.f32 %v124, %v1830
    %v1832 = vpop.f32.mrb[0].mxu0
    %1833 = vmatprep.mubr.f32.mxu0 0.0
    %1834 = vmatmul.mubr.f32.gmra.mrb[0].mxu0 %v1722
    %v1835 = vpop.f32.mrb[0].mxu0
    %v1836 = vadd.f32 %v125, %v1835
    %v1837 = vpop.f32.mrb[0].mxu0
    %1838 = vmatprep.mubr.f32.mxu0 0.0
    %1839 = vmatmul.mubr.f32.gmra.mrb[0].mxu0 %v1725
    %v1840 = vpop.f32.mrb[0].mxu0
    %v1841 = vadd.f32 %v126, %v1840
    %v1842 = vpop.f32.mrb[0].mxu0
    %1843 = vmatprep.mubr.f32.mxu0 0.0
    %1844 = vmatmul.mubr.f32.gmra.mrb[0].mxu0 %v1716
    %v1845 = vpop.f32.mrb[0].mxu0
    %v1846 = vadd.f32 %v127, %v1845
    %v1847 = vpop.f32.mrb[0].mxu0
    %1848 = vmatprep.mubr.f32.mxu0 0.0
    %1849 = vmatmul.mubr.f32.gmra.mrb[0].mxu0 %v1719
    %v1850 = vpop.f32.mrb[0].mxu0
    %v1851 = vadd.f32 %v128, %v1850
    %v1852 = vpop.f32.mrb[0].mxu0
    %1853 = vmatprep.mubr.f32.mxu0 0.0
    %1854 = vmatmul.mubr.f32.gmra.mrb[0].mxu0 %v1722
    %v1855 = vpop.f32.mrb[0].mxu0
    %v1856 = vadd.f32 %v129, %v1855
    %v1857 = vpop.f32.mrb[0].mxu0
    %1858 = vmatprep.mubr.f32.mxu0 0.0
    %1859 = vmatmul.mubr.f32.gmra.mrb[0].mxu0 %v1725
    %v1860 = vpop.f32.mrb[0].mxu0
    %v1861 = vadd.f32 %v130, %v1860
    %v1862 = vpop.f32.mrb[0].mxu0
    %1863 = vmatprep.mubr.f32.mxu0 0.0
    %1864 = vmatmul.mubr.f32.gmra.mrb[0].mxu0 %v1716
    %v1865 = vpop.f32.mrb[0].mxu0
    %v1866 = vadd.f32 %v131, %v1865
    %v1867 = vpop.f32.mrb[0].mxu0
    %1868 = vmatprep.mubr.f32.mxu0 0.0
    %1869 = vmatmul.mubr.f32.gmra.mrb[0].mxu0 %v1719
    %v1870 = vpop.f32.mrb[0].mxu0
    %v1871 = vadd.f32 %v132, %v1870
    %v1872 = vpop.f32.mrb[0].mxu0
    %1873 = vmatprep.mubr.f32.mxu0 0.0
    %1874 = vmatmul.mubr.f32.gmra.mrb[0].mxu0 %v1722
    %v1875 = vpop.f32.mrb[0].mxu0
    %v1876 = vadd.f32 %v133, %v1875
    %v1877 = vpop.f32.mrb[0].mxu0
    %1878 = vmatprep.mubr.f32.mxu0 0.0
    %1879 = vmatmul.mubr.f32.gmra.mrb[0].mxu0 %v1725
    %v1880 = vpop.f32.mrb[0].mxu0
    %v1881 = vadd.f32 %v134, %v1880
    %v1882 = vpop.f32.mrb[0].mxu0
    %1883 = vmatprep.mubr.f32.mxu0 0.0
    %1884 = vmatmul.mubr.f32.gmra.mrb[0].mxu0 %v1716
    %v1885 = vpop.f32.mrb[0].mxu0
    %v1886 = vadd.f32 %v135, %v1885
    %v1887 = vpop.f32.mrb[0].mxu0
    %1888 = vmatprep.mubr.f32.mxu0 0.0
    %1889 = vmatmul.mubr.f32.gmra.mrb[0].mxu0 %v1719
    %v1890 = vpop.f32.mrb[0].mxu0
    %v1891 = vadd.f32 %v136, %v1890
    %v1892 = vpop.f32.mrb[0].mxu0
    %1893 = vmatprep.mubr.f32.mxu0 0.0
    %1894 = vmatmul.mubr.f32.gmra.mrb[0].mxu0 %v1722
    %v1895 = vpop.f32.mrb[0].mxu0
    %v1896 = vadd.f32 %v137, %v1895
    %v1897 = vpop.f32.mrb[0].mxu0
    %1898 = vmatprep.mubr.f32.mxu0 0.0
    %1899 = vmatmul.mubr.f32.gmra.mrb[0].mxu0 %v1725
    %v1900 = vpop.f32.mrb[0].mxu0
    %v1901 = vadd.f32 %v138, %v1900
    %v1902 = vpop.f32.mrb[0].mxu0
    %1903 = vdwg.mxu0
    %1904 = vmax.xlane.f32.xlu0 %v1826
    %v1905 = vpop.xlane.xlu0 %1904
    %1906 = vmax.xlane.f32.xlu0 %v1831
    %v1907 = vpop.xlane.xlu0 %1906
    %1908 = vmax.xlane.f32.xlu0 %v1836
    %v1909 = vpop.xlane.xlu0 %1908
    %1910 = vmax.xlane.f32.xlu0 %v1841
    %v1911 = vpop.xlane.xlu0 %1910
    %1912 = vmax.xlane.f32.xlu0 %v1846
    %v1913 = vpop.xlane.xlu0 %1912
    %1914 = vmax.xlane.f32.xlu0 %v1851
    %v1915 = vpop.xlane.xlu0 %1914
    %1916 = vmax.xlane.f32.xlu0 %v1856
    %v1917 = vpop.xlane.xlu0 %1916
    %1918 = vmax.xlane.f32.xlu0 %v1861
    %v1919 = vpop.xlane.xlu0 %1918
    %1920 = vmax.xlane.f32.xlu0 %v1866
    %v1921 = vpop.xlane.xlu0 %1920
    %1922 = vmax.xlane.f32.xlu0 %v1871
    %v1923 = vpop.xlane.xlu0 %1922
    %1924 = vmax.xlane.f32.xlu0 %v1876
    %v1925 = vpop.xlane.xlu0 %1924
    %1926 = vmax.xlane.f32.xlu0 %v1881
    %v1927 = vpop.xlane.xlu0 %1926
    %1928 = vmax.xlane.f32.xlu0 %v1886
    %v1929 = vpop.xlane.xlu0 %1928
    %1930 = vmax.xlane.f32.xlu0 %v1891
    %v1931 = vpop.xlane.xlu0 %1930
    %1932 = vmax.xlane.f32.xlu0 %v1896
    %v1933 = vpop.xlane.xlu0 %1932
    %1934 = vmax.xlane.f32.xlu0 %v1901
    %v1935 = vpop.xlane.xlu0 %1934
    %v1936 = vsub.f32 %v1826, %v1905
    %v1937 = vsub.f32 %v1831, %v1907
    %v1938 = vsub.f32 %v1836, %v1909
    %v1939 = vsub.f32 %v1841, %v1911
    %v1940 = vsub.f32 %v1846, %v1913
    %v1941 = vsub.f32 %v1851, %v1915
    %v1942 = vsub.f32 %v1856, %v1917
    %v1943 = vsub.f32 %v1861, %v1919
    %v1944 = vsub.f32 %v1866, %v1921
    %v1945 = vsub.f32 %v1871, %v1923
    %v1946 = vsub.f32 %v1876, %v1925
    %v1947 = vsub.f32 %v1881, %v1927
    %v1948 = vsub.f32 %v1886, %v1929
    %v1949 = vsub.f32 %v1891, %v1931
    %v1950 = vsub.f32 %v1896, %v1933
    %v1951 = vsub.f32 %v1901, %v1935
    %v1952 = vmul.f32 %v1936, 1.442695
    %v1953 = vpow.pop %v1952
    %v1954 = vmul.f32 %v1937, 1.442695
    %v1955 = vpow.pop %v1954
    %v1956 = vmul.f32 %v1938, 1.442695
    %v1957 = vpow.pop %v1956
    %v1958 = vmul.f32 %v1939, 1.442695
    %v1959 = vpow.pop %v1958
    %v1960 = vmul.f32 %v1940, 1.442695
    %v1961 = vpow.pop %v1960
    %v1962 = vmul.f32 %v1941, 1.442695
    %v1963 = vpow.pop %v1962
    %v1964 = vmul.f32 %v1942, 1.442695
    %v1965 = vpow.pop %v1964
    %v1966 = vmul.f32 %v1943, 1.442695
    %v1967 = vpow.pop %v1966
    %v1968 = vmul.f32 %v1944, 1.442695
    %v1969 = vpow.pop %v1968
    %v1970 = vmul.f32 %v1945, 1.442695
    %v1971 = vpow.pop %v1970
    %v1972 = vmul.f32 %v1946, 1.442695
    %v1973 = vpow.pop %v1972
    %v1974 = vmul.f32 %v1947, 1.442695
    %v1975 = vpow.pop %v1974
    %v1976 = vmul.f32 %v1948, 1.442695
    %v1977 = vpow.pop %v1976
    %v1978 = vmul.f32 %v1949, 1.442695
    %v1979 = vpow.pop %v1978
    %v1980 = vmul.f32 %v1950, 1.442695
    %v1981 = vpow.pop %v1980
    %v1982 = vmul.f32 %v1951, 1.442695
    %v1983 = vpow.pop %v1982
    %1984 = vadd.xlane.f32.xlu0 %v1953
    %v1985 = vpop.xlane.xlu0 %1984
    %1986 = vadd.xlane.f32.xlu0 %v1955
    %v1987 = vpop.xlane.xlu0 %1986
    %1988 = vadd.xlane.f32.xlu0 %v1957
    %v1989 = vpop.xlane.xlu0 %1988
    %1990 = vadd.xlane.f32.xlu0 %v1959
    %v1991 = vpop.xlane.xlu0 %1990
    %1992 = vadd.xlane.f32.xlu0 %v1961
    %v1993 = vpop.xlane.xlu0 %1992
    %1994 = vadd.xlane.f32.xlu0 %v1963
    %v1995 = vpop.xlane.xlu0 %1994
    %1996 = vadd.xlane.f32.xlu0 %v1965
    %v1997 = vpop.xlane.xlu0 %1996
    %1998 = vadd.xlane.f32.xlu0 %v1967
    %v1999 = vpop.xlane.xlu0 %1998
    %2000 = vadd.xlane.f32.xlu0 %v1969
    %v2001 = vpop.xlane.xlu0 %2000
    %2002 = vadd.xlane.f32.xlu0 %v1971
    %v2003 = vpop.xlane.xlu0 %2002
    %2004 = vadd.xlane.f32.xlu0 %v1973
    %v2005 = vpop.xlane.xlu0 %2004
    %2006 = vadd.xlane.f32.xlu0 %v1975
    %v2007 = vpop.xlane.xlu0 %2006
    %2008 = vadd.xlane.f32.xlu0 %v1977
    %v2009 = vpop.xlane.xlu0 %2008
    %2010 = vadd.xlane.f32.xlu0 %v1979
    %v2011 = vpop.xlane.xlu0 %2010
    %2012 = vadd.xlane.f32.xlu0 %v1981
    %v2013 = vpop.xlane.xlu0 %2012
    %2014 = vadd.xlane.f32.xlu0 %v1983
    %v2015 = vpop.xlane.xlu0 %2014
    %v2016 = vrcp.pop %v1985
    %v2017 = vmul.f32 %v1953, %v2016
    %v2018 = vrcp.pop %v1987
    %v2019 = vmul.f32 %v1955, %v2018
    %v2020 = vrcp.pop %v1989
    %v2021 = vmul.f32 %v1957, %v2020
    %v2022 = vrcp.pop %v1991
    %v2023 = vmul.f32 %v1959, %v2022
    %v2024 = vrcp.pop %v1993
    %v2025 = vmul.f32 %v1961, %v2024
    %v2026 = vrcp.pop %v1995
    %v2027 = vmul.f32 %v1963, %v2026
    %v2028 = vrcp.pop %v1997
    %v2029 = vmul.f32 %v1965, %v2028
    %v2030 = vrcp.pop %v1999
    %v2031 = vmul.f32 %v1967, %v2030
    %v2032 = vrcp.pop %v2001
    %v2033 = vmul.f32 %v1969, %v2032
    %v2034 = vrcp.pop %v2003
    %v2035 = vmul.f32 %v1971, %v2034
    %v2036 = vrcp.pop %v2005
    %v2037 = vmul.f32 %v1973, %v2036
    %v2038 = vrcp.pop %v2007
    %v2039 = vmul.f32 %v1975, %v2038
    %v2040 = vrcp.pop %v2009
    %v2041 = vmul.f32 %v1977, %v2040
    %v2042 = vrcp.pop %v2011
    %v2043 = vmul.f32 %v1979, %v2042
    %v2044 = vrcp.pop %v2013
    %v2045 = vmul.f32 %v1981, %v2044
    %v2046 = vrcp.pop %v2015
    %v2047 = vmul.f32 %v1983, %v2046
    %2064 = vrot.lane.b32.xlu0 %v1651, 64
    %v2065 = vpop.permute.xlu0 %2064
    %2066 = vrot.lane.b32.xlu0 %v1652, 64
    %v2067 = vpop.permute.xlu0 %2066
    %2068 = vrot.lane.b32.xlu0 %v1653, 64
    %v2069 = vpop.permute.xlu0 %2068
    %2070 = vrot.lane.b32.xlu0 %v1654, 64
    %v2071 = vpop.permute.xlu0 %2070
    %2072 = vrot.lane.b32.xlu0 %v1655, 64
    %v2073 = vpop.permute.xlu0 %2072
    %2074 = vrot.lane.b32.xlu0 %v1656, 64
    %v2075 = vpop.permute.xlu0 %2074
    %2076 = vrot.lane.b32.xlu0 %v1657, 64
    %v2077 = vpop.permute.xlu0 %2076
    %2078 = vrot.lane.b32.xlu0 %v1658, 64
    %v2079 = vpop.permute.xlu0 %2078
    %2080 = vrot.lane.b32.xlu0 %v1659, 64
    %v2081 = vpop.permute.xlu0 %2080
    %2082 = vrot.lane.b32.xlu0 %v1660, 64
    %v2083 = vpop.permute.xlu0 %2082
    %2084 = vrot.lane.b32.xlu0 %v1661, 64
    %v2085 = vpop.permute.xlu0 %2084
    %2086 = vrot.lane.b32.xlu0 %v1662, 64
    %v2087 = vpop.permute.xlu0 %2086
    %2088 = vrot.lane.b32.xlu0 %v1663, 64
    %v2089 = vpop.permute.xlu0 %2088
    %2090 = vrot.lane.b32.xlu0 %v1664, 64
    %v2091 = vpop.permute.xlu0 %2090
    %2092 = vrot.lane.b32.xlu0 %v1665, 64
    %v2093 = vpop.permute.xlu0 %2092
    %2094 = vrot.lane.b32.xlu0 %v1666, 64
    %v2095 = vpop.permute.xlu0 %2094
    %2112 = vmatprep.subr.mxu0 0.0
    %2113 = vmatpush1.msra.mxu0 %v2065
    %2114 = vmatprep.subr.mxu0 0.0
    %2115 = vmatpush1.msra.mxu0 %v2067
    %2116 = vmatprep.subr.mxu0 0.0
    %2117 = vmatpush1.msra.mxu0 %v2069
    %2118 = vmatprep.subr.mxu0 0.0
    %2119 = vmatpush1.msra.mxu0 %v2071
    %2120 = vmatprep.subr.mxu0 0.0
    %2121 = vmatpush1.msra.mxu0 %v2073
    %2122 = vmatprep.subr.mxu0 0.0
    %2123 = vmatpush1.msra.mxu0 %v2075
    %2124 = vmatprep.subr.mxu0 0.0
    %2125 = vmatpush1.msra.mxu0 %v2077
    %2126 = vmatprep.subr.mxu0 0.0
    %2127 = vmatpush1.msra.mxu0 %v2079
    %2128 = vmatprep.subr.mxu0 0.0
    %2129 = vmatpush1.msra.mxu0 %v2081
    %2130 = vmatprep.subr.mxu0 0.0
    %2131 = vmatpush1.msra.mxu0 %v2083
    %2132 = vmatprep.subr.mxu0 0.0
    %2133 = vmatpush1.msra.mxu0 %v2085
    %2134 = vmatprep.subr.mxu0 0.0
    %2135 = vmatpush1.msra.mxu0 %v2087
    %2136 = vmatprep.subr.mxu0 0.0
    %2137 = vmatpush1.msra.mxu0 %v2089
    %2138 = vmatprep.subr.mxu0 0.0
    %2139 = vmatpush1.msra.mxu0 %v2091
    %2140 = vmatprep.subr.mxu0 0.0
    %2141 = vmatpush1.msra.mxu0 %v2093
    %2142 = vmatprep.subr.mxu0 0.0
    %2143 = vmatpush1.msra.mxu0 %v2095
    %2144 = vmatprep.subr.mxu0 0.0
    %2145 = vmatpush1.msra.mxu0 0.0
    %2146 = vmatprep.subr.mxu0 0.0
    %2147 = vmatpush1.msra.mxu0 0.0
    %2148 = vmatprep.subr.mxu0 0.0
    %2149 = vmatpush1.msra.mxu0 0.0
    %2150 = vmatprep.subr.mxu0 0.0
    %2151 = vmatpush1.msra.mxu0 0.0
    %2152 = vmatprep.subr.mxu0 0.0
    %2153 = vmatpush1.msra.mxu0 0.0
    %2154 = vmatprep.subr.mxu0 0.0
    %2155 = vmatpush1.msra.mxu0 0.0
    %2156 = vmatprep.subr.mxu0 0.0
    %2157 = vmatpush1.msra.mxu0 0.0
    %2158 = vmatprep.subr.mxu0 0.0
    %2159 = vmatpush1.msra.mxu0 0.0
    %2160 = vmatprep.subr.mxu0 0.0
    %2161 = vmatpush1.msra.mxu0 0.0
    %2162 = vmatprep.subr.mxu0 0.0
    %2163 = vmatpush1.msra.mxu0 0.0
    %2164 = vmatprep.subr.mxu0 0.0
    %2165 = vmatpush1.msra.mxu0 0.0
    %2166 = vmatprep.subr.mxu0 0.0
    %2167 = vmatpush1.msra.mxu0 0.0
    %2168 = vmatprep.subr.mxu0 0.0
    %2169 = vmatpush1.msra.mxu0 0.0
    %2170 = vmatprep.subr.mxu0 0.0
    %2171 = vmatpush1.msra.mxu0 0.0
    %2172 = vmatprep.subr.mxu0 0.0
    %2173 = vmatpush1.msra.mxu0 0.0
    %2174 = vmatprep.subr.mxu0 0.0
    %2175 = vmatpush1.msra.mxu0 0.0
    %2176 = vmatprep.mubr.f32.mxu0 0.0
    %2177 = vmatmul.mubr.f32.gmra.mrb[0].mxu0 %v2017
    %v2178 = vpop.f32.mrb[0].mxu0
    %v2179 = vadd.f32 0.0, %v2178
    %v2180 = vpop.f32.mrb[0].mxu0
    %2181 = vmatprep.mubr.f32.mxu0 0.0
    %2182 = vmatmul.mubr.f32.gmra.mrb[0].mxu0 %v2019
    %v2183 = vpop.f32.mrb[0].mxu0
    %v2184 = vadd.f32 0.0, %v2183
    %v2185 = vpop.f32.mrb[0].mxu0
    %2186 = vmatprep.mubr.f32.mxu0 0.0
    %2187 = vmatmul.mubr.f32.gmra.mrb[0].mxu0 %v2021
    %v2188 = vpop.f32.mrb[0].mxu0
    %v2189 = vadd.f32 0.0, %v2188
    %v2190 = vpop.f32.mrb[0].mxu0
    %2191 = vmatprep.mubr.f32.mxu0 0.0
    %2192 = vmatmul.mubr.f32.gmra.mrb[0].mxu0 %v2023
    %v2193 = vpop.f32.mrb[0].mxu0
    %v2194 = vadd.f32 0.0, %v2193
    %v2195 = vpop.f32.mrb[0].mxu0
    %2196 = vmatprep.mubr.f32.mxu0 0.0
    %2197 = vmatmul.mubr.f32.gmra.mrb[0].mxu0 %v2025
    %v2198 = vpop.f32.mrb[0].mxu0
    %v2199 = vadd.f32 0.0, %v2198
    %v2200 = vpop.f32.mrb[0].mxu0
    %2201 = vmatprep.mubr.f32.mxu0 0.0
    %2202 = vmatmul.mubr.f32.gmra.mrb[0].mxu0 %v2027
    %v2203 = vpop.f32.mrb[0].mxu0
    %v2204 = vadd.f32 0.0, %v2203
    %v2205 = vpop.f32.mrb[0].mxu0
    %2206 = vmatprep.mubr.f32.mxu0 0.0
    %2207 = vmatmul.mubr.f32.gmra.mrb[0].mxu0 %v2029
    %v2208 = vpop.f32.mrb[0].mxu0
    %v2209 = vadd.f32 0.0, %v2208
    %v2210 = vpop.f32.mrb[0].mxu0
    %2211 = vmatprep.mubr.f32.mxu0 0.0
    %2212 = vmatmul.mubr.f32.gmra.mrb[0].mxu0 %v2031
    %v2213 = vpop.f32.mrb[0].mxu0
    %v2214 = vadd.f32 0.0, %v2213
    %v2215 = vpop.f32.mrb[0].mxu0
    %2216 = vmatprep.mubr.f32.mxu0 0.0
    %2217 = vmatmul.mubr.f32.gmra.mrb[0].mxu0 %v2033
    %v2218 = vpop.f32.mrb[0].mxu0
    %v2219 = vadd.f32 0.0, %v2218
    %v2220 = vpop.f32.mrb[0].mxu0
    %2221 = vmatprep.mubr.f32.mxu0 0.0
    %2222 = vmatmul.mubr.f32.gmra.mrb[0].mxu0 %v2035
    %v2223 = vpop.f32.mrb[0].mxu0
    %v2224 = vadd.f32 0.0, %v2223
    %v2225 = vpop.f32.mrb[0].mxu0
    %2226 = vmatprep.mubr.f32.mxu0 0.0
    %2227 = vmatmul.mubr.f32.gmra.mrb[0].mxu0 %v2037
    %v2228 = vpop.f32.mrb[0].mxu0
    %v2229 = vadd.f32 0.0, %v2228
    %v2230 = vpop.f32.mrb[0].mxu0
    %2231 = vmatprep.mubr.f32.mxu0 0.0
    %2232 = vmatmul.mubr.f32.gmra.mrb[0].mxu0 %v2039
    %v2233 = vpop.f32.mrb[0].mxu0
    %v2234 = vadd.f32 0.0, %v2233
    %v2235 = vpop.f32.mrb[0].mxu0
    %2236 = vmatprep.mubr.f32.mxu0 0.0
    %2237 = vmatmul.mubr.f32.gmra.mrb[0].mxu0 %v2041
    %v2238 = vpop.f32.mrb[0].mxu0
    %v2239 = vadd.f32 0.0, %v2238
    %v2240 = vpop.f32.mrb[0].mxu0
    %2241 = vmatprep.mubr.f32.mxu0 0.0
    %2242 = vmatmul.mubr.f32.gmra.mrb[0].mxu0 %v2043
    %v2243 = vpop.f32.mrb[0].mxu0
    %v2244 = vadd.f32 0.0, %v2243
    %v2245 = vpop.f32.mrb[0].mxu0
    %2246 = vmatprep.mubr.f32.mxu0 0.0
    %2247 = vmatmul.mubr.f32.gmra.mrb[0].mxu0 %v2045
    %v2248 = vpop.f32.mrb[0].mxu0
    %v2249 = vadd.f32 0.0, %v2248
    %v2250 = vpop.f32.mrb[0].mxu0
    %2251 = vmatprep.mubr.f32.mxu0 0.0
    %2252 = vmatmul.mubr.f32.gmra.mrb[0].mxu0 %v2047
    %v2253 = vpop.f32.mrb[0].mxu0
    %v2254 = vadd.f32 0.0, %v2253
    %v2255 = vpop.f32.mrb[0].mxu0
    %2256 = vdwg.mxu0
    %v2257 = vadd.f32 %v2179, %v2199
    %v2258 = vadd.f32 %v2184, %v2204
    %v2259 = vadd.f32 %v2189, %v2209
    %v2260 = vadd.f32 %v2194, %v2214
    %v2261 = vadd.f32 %v2257, %v2219
    %v2262 = vadd.f32 %v2258, %v2224
    %v2263 = vadd.f32 %v2259, %v2229
    %v2264 = vadd.f32 %v2260, %v2234
    %v2265 = vadd.f32 %v2261, %v2239
    %v2266 = vadd.f32 %v2262, %v2244
    %v2267 = vadd.f32 %v2263, %v2249
    %v2268 = vadd.f32 %v2264, %v2254
    %s2269 = scalar_lea.vmem %s1, 128
    %v2270 = vld [vmem:[%s2269] sm:$0xff]
    %v2271 = vld [vmem:[%s2269 + $0x8] sm:$0xff]
    %v2272 = vld [vmem:[%s2269 + $0x10] sm:$0xff]
    %v2273 = vld [vmem:[%s2269 + $0x18] sm:$0xff]
    %v2275 = vsel %vm213, %v2265, 0
    %v2278 = vsel %vm213, %v2266, 0
    %v2281 = vsel %vm213, %v2267, 0
    %v2284 = vsel %vm213, %v2268, 0
    %2286 = vmatprep.subr.mxu0 0.0
    %2287 = vmatpush1.msra.mxu0 %v2270
    %2288 = vmatprep.subr.mxu0 0.0
    %2289 = vmatpush1.msra.mxu0 %v2271
    %2290 = vmatprep.subr.mxu0 0.0
    %2291 = vmatpush1.msra.mxu0 %v2272
    %2292 = vmatprep.subr.mxu0 0.0
    %2293 = vmatpush1.msra.mxu0 %v2273
    %2294 = vmatprep.subr.mxu0 0.0
    %2295 = vmatpush1.msra.mxu0 0.0
    %2296 = vmatprep.subr.mxu0 0.0
    %2297 = vmatpush1.msra.mxu0 0.0
    %2298 = vmatprep.subr.mxu0 0.0
    %2299 = vmatpush1.msra.mxu0 0.0
    %2300 = vmatprep.subr.mxu0 0.0
    %2301 = vmatpush1.msra.mxu0 0.0
    %2302 = vmatprep.subr.mxu0 0.0
    %2303 = vmatpush1.msra.mxu0 0.0
    %2304 = vmatprep.subr.mxu0 0.0
    %2305 = vmatpush1.msra.mxu0 0.0
    %2306 = vmatprep.subr.mxu0 0.0
    %2307 = vmatpush1.msra.mxu0 0.0
    %2308 = vmatprep.subr.mxu0 0.0
    %2309 = vmatpush1.msra.mxu0 0.0
    %2310 = vmatprep.subr.mxu0 0.0
    %2311 = vmatpush1.msra.mxu0 0.0
    %2312 = vmatprep.subr.mxu0 0.0
    %2313 = vmatpush1.msra.mxu0 0.0
    %2314 = vmatprep.subr.mxu0 0.0
    %2315 = vmatpush1.msra.mxu0 0.0
    %2316 = vmatprep.subr.mxu0 0.0
    %2317 = vmatpush1.msra.mxu0 0.0
    %2318 = vmatprep.subr.mxu0 0.0
    %2319 = vmatpush1.msra.mxu0 0.0
    %2320 = vmatprep.subr.mxu0 0.0
    %2321 = vmatpush1.msra.mxu0 0.0
    %2322 = vmatprep.subr.mxu0 0.0
    %2323 = vmatpush1.msra.mxu0 0.0
    %2324 = vmatprep.subr.mxu0 0.0
    %2325 = vmatpush1.msra.mxu0 0.0
    %2326 = vmatprep.subr.mxu0 0.0
    %2327 = vmatpush1.msra.mxu0 0.0
    %2328 = vmatprep.subr.mxu0 0.0
    %2329 = vmatpush1.msra.mxu0 0.0
    %2330 = vmatprep.subr.mxu0 0.0
    %2331 = vmatpush1.msra.mxu0 0.0
    %2332 = vmatprep.subr.mxu0 0.0
    %2333 = vmatpush1.msra.mxu0 0.0
    %2334 = vmatprep.subr.mxu0 0.0
    %2335 = vmatpush1.msra.mxu0 0.0
    %2336 = vmatprep.subr.mxu0 0.0
    %2337 = vmatpush1.msra.mxu0 0.0
    %2338 = vmatprep.subr.mxu0 0.0
    %2339 = vmatpush1.msra.mxu0 0.0
    %2340 = vmatprep.subr.mxu0 0.0
    %2341 = vmatpush1.msra.mxu0 0.0
    %2342 = vmatprep.subr.mxu0 0.0
    %2343 = vmatpush1.msra.mxu0 0.0
    %2344 = vmatprep.subr.mxu0 0.0
    %2345 = vmatpush1.msra.mxu0 0.0
    %2346 = vmatprep.subr.mxu0 0.0
    %2347 = vmatpush1.msra.mxu0 0.0
    %2348 = vmatprep.subr.mxu0 0.0
    %2349 = vmatpush1.msra.mxu0 0.0
    %2350 = vmatprep.mubr.f32.mxu0 0.0
    %2351 = vmatmul.mubr.f32.gmra.mrb[0].mxu0 %v2275
    %v2352 = vpop.f32.mrb[0].mxu0
    %v2353 = vadd.f32 0.0, %v2352
    %v2354 = vpop.f32.mrb[0].mxu0
    %2355 = vmatprep.mubr.f32.mxu0 0.0
    %2356 = vmatmul.mubr.f32.gmra.mrb[0].mxu0 %v2278
    %v2357 = vpop.f32.mrb[0].mxu0
    %v2358 = vadd.f32 0.0, %v2357
    %v2359 = vpop.f32.mrb[0].mxu0
    %2360 = vmatprep.mubr.f32.mxu0 0.0
    %2361 = vmatmul.mubr.f32.gmra.mrb[0].mxu0 %v2281
    %v2362 = vpop.f32.mrb[0].mxu0
    %v2363 = vadd.f32 0.0, %v2362
    %v2364 = vpop.f32.mrb[0].mxu0
    %2365 = vmatprep.mubr.f32.mxu0 0.0
    %2366 = vmatmul.mubr.f32.gmra.mrb[0].mxu0 %v2284
    %v2367 = vpop.f32.mrb[0].mxu0
    %v2368 = vadd.f32 0.0, %v2367
    %v2369 = vpop.f32.mrb[0].mxu0
    %2370 = vdwg.mxu0
    %v2371 = vlaneseq
    %v2372 = vshrl.u32 %v2371, 7
    %v2373 = vsub.s32 1, %v2372
    %v2374 = vrot.slane %v1528, %v2373
    %v2375 = vadd.f32 %v2353, %v2374
    %v2376 = vadd.f32 %v2358, %v2374
    %v2377 = vadd.f32 %v2363, %v2374
    %v2378 = vadd.f32 %v2368, %v2374
    %v2379 = vadd.f32 %v1523, %v2375
    %v2380 = vadd.f32 %v1524, %v2376
    %v2381 = vadd.f32 %v1525, %v2377
    %v2382 = vadd.f32 %v1526, %v2378
    %v2383 = vsel %vm213, %v2379, 0.0
    %2384 = vadd.xlane.f32.xlu0 %v2383
    %v2385 = vpop.xlane.xlu0 %2384
    %v2386 = vsel %vm213, %v2380, 0.0
    %2387 = vadd.xlane.f32.xlu0 %v2386
    %v2388 = vpop.xlane.xlu0 %2387
    %v2389 = vsel %vm213, %v2381, 0.0
    %2390 = vadd.xlane.f32.xlu0 %v2389
    %v2391 = vpop.xlane.xlu0 %2390
    %v2392 = vsel %vm213, %v2382, 0.0
    %2393 = vadd.xlane.f32.xlu0 %v2392
    %v2394 = vpop.xlane.xlu0 %2393
    %v2395 = vmul.f32 %v2385, %v1183
    %v2396 = vmul.f32 %v2388, %v1183
    %v2397 = vmul.f32 %v2391, %v1183
    %v2398 = vmul.f32 %v2394, %v1183
    %v2399 = vsub.f32 %v2379, %v2395
    %v2400 = vsub.f32 %v2380, %v2396
    %v2401 = vsub.f32 %v2381, %v2397
    %v2402 = vsub.f32 %v2382, %v2398
    %v2403 = vmul.f32 %v2399, %v2399
    %v2404 = vmul.f32 %v2400, %v2400
    %v2405 = vmul.f32 %v2401, %v2401
    %v2406 = vmul.f32 %v2402, %v2402
    %v2407 = vsel %vm213, %v2403, 0.0
    %2408 = vadd.xlane.f32.xlu0 %v2407
    %v2409 = vpop.xlane.xlu0 %2408
    %v2410 = vsel %vm213, %v2404, 0.0
    %2411 = vadd.xlane.f32.xlu0 %v2410
    %v2412 = vpop.xlane.xlu0 %2411
    %v2413 = vsel %vm213, %v2405, 0.0
    %2414 = vadd.xlane.f32.xlu0 %v2413
    %v2415 = vpop.xlane.xlu0 %2414
    %v2416 = vsel %vm213, %v2406, 0.0
    %2417 = vadd.xlane.f32.xlu0 %v2416
    %v2418 = vpop.xlane.xlu0 %2417
    %v2419 = vmul.f32 %v2409, %v1183
    %v2420 = vmul.f32 %v2412, %v1183
    %v2421 = vmul.f32 %v2415, %v1183
    %v2422 = vmul.f32 %v2418, %v1183
    %v2423 = vadd.f32 %v2419, 1e-05
    %v2424 = vadd.f32 %v2420, 1e-05
    %v2425 = vadd.f32 %v2421, 1e-05
    %v2426 = vadd.f32 %v2422, 1e-05
    %v2427 = vrsqrt.pop %v2423
    %v2428 = vrsqrt.pop %v2424
    %v2429 = vrsqrt.pop %v2425
    %v2430 = vrsqrt.pop %v2426
    %v2431 = vmul.f32 %v2399, %v2427
    %v2432 = vmul.f32 %v2400, %v2428
    %v2433 = vmul.f32 %v2401, %v2429
    %v2434 = vmul.f32 %v2402, %v2430
    %v2435 = vlaneseq
    %v2436 = vshrl.u32 %v2435, 7
    %v2437 = vsub.s32 4, %v2436
    %v2438 = vrot.slane %v1528, %v2437
    %v2439 = vmul.f32 %v2431, %v2438
    %v2440 = vmul.f32 %v2432, %v2438
    %v2441 = vmul.f32 %v2433, %v2438
    %v2442 = vmul.f32 %v2434, %v2438
    %v2443 = vlaneseq
    %v2444 = vshrl.u32 %v2443, 7
    %v2445 = vsub.s32 5, %v2444
    %v2446 = vrot.slane %v1528, %v2445
    %v2447 = vadd.f32 %v2439, %v2446
    %v2448 = vadd.f32 %v2440, %v2446
    %v2449 = vadd.f32 %v2441, %v2446
    %v2450 = vadd.f32 %v2442, %v2446
    %s2451 = scalar_lea.vmem %s1, 160
    %v2452 = vld [vmem:[%s2451] sm:$0xff]
    %v2453 = vld [vmem:[%s2451 + $0x8] sm:$0xff]
    %v2454 = vld [vmem:[%s2451 + $0x10] sm:$0xff]
    %v2455 = vld [vmem:[%s2451 + $0x18] sm:$0xff]
    %v2456 = vlaneseq
    %v2457 = vshrl.u32 %v2456, 7
    %v2458 = vsub.s32 2, %v2457
    %v2459 = vrot.slane %v1528, %v2458
    %v2461 = vsel %vm213, %v2447, 0
    %v2464 = vsel %vm213, %v2448, 0
    %v2467 = vsel %vm213, %v2449, 0
    %v2470 = vsel %vm213, %v2450, 0
    %2472 = vmatprep.subr.mxu0 0.0
    %2473 = vmatpush1.msra.mxu0 %v2452
    %2474 = vmatprep.subr.mxu0 0.0
    %2475 = vmatpush1.msra.mxu0 %v2453
    %2476 = vmatprep.subr.mxu0 0.0
    %2477 = vmatpush1.msra.mxu0 %v2454
    %2478 = vmatprep.subr.mxu0 0.0
    %2479 = vmatpush1.msra.mxu0 %v2455
    %2480 = vmatprep.subr.mxu0 0.0
    %2481 = vmatpush1.msra.mxu0 0.0
    %2482 = vmatprep.subr.mxu0 0.0
    %2483 = vmatpush1.msra.mxu0 0.0
    %2484 = vmatprep.subr.mxu0 0.0
    %2485 = vmatpush1.msra.mxu0 0.0
    %2486 = vmatprep.subr.mxu0 0.0
    %2487 = vmatpush1.msra.mxu0 0.0
    %2488 = vmatprep.subr.mxu0 0.0
    %2489 = vmatpush1.msra.mxu0 0.0
    %2490 = vmatprep.subr.mxu0 0.0
    %2491 = vmatpush1.msra.mxu0 0.0
    %2492 = vmatprep.subr.mxu0 0.0
    %2493 = vmatpush1.msra.mxu0 0.0
    %2494 = vmatprep.subr.mxu0 0.0
    %2495 = vmatpush1.msra.mxu0 0.0
    %2496 = vmatprep.subr.mxu0 0.0
    %2497 = vmatpush1.msra.mxu0 0.0
    %2498 = vmatprep.subr.mxu0 0.0
    %2499 = vmatpush1.msra.mxu0 0.0
    %2500 = vmatprep.subr.mxu0 0.0
    %2501 = vmatpush1.msra.mxu0 0.0
    %2502 = vmatprep.subr.mxu0 0.0
    %2503 = vmatpush1.msra.mxu0 0.0
    %2504 = vmatprep.subr.mxu0 0.0
    %2505 = vmatpush1.msra.mxu0 0.0
    %2506 = vmatprep.subr.mxu0 0.0
    %2507 = vmatpush1.msra.mxu0 0.0
    %2508 = vmatprep.subr.mxu0 0.0
    %2509 = vmatpush1.msra.mxu0 0.0
    %2510 = vmatprep.subr.mxu0 0.0
    %2511 = vmatpush1.msra.mxu0 0.0
    %2512 = vmatprep.subr.mxu0 0.0
    %2513 = vmatpush1.msra.mxu0 0.0
    %2514 = vmatprep.subr.mxu0 0.0
    %2515 = vmatpush1.msra.mxu0 0.0
    %2516 = vmatprep.subr.mxu0 0.0
    %2517 = vmatpush1.msra.mxu0 0.0
    %2518 = vmatprep.subr.mxu0 0.0
    %2519 = vmatpush1.msra.mxu0 0.0
    %2520 = vmatprep.subr.mxu0 0.0
    %2521 = vmatpush1.msra.mxu0 0.0
    %2522 = vmatprep.subr.mxu0 0.0
    %2523 = vmatpush1.msra.mxu0 0.0
    %2524 = vmatprep.subr.mxu0 0.0
    %2525 = vmatpush1.msra.mxu0 0.0
    %2526 = vmatprep.subr.mxu0 0.0
    %2527 = vmatpush1.msra.mxu0 0.0
    %2528 = vmatprep.subr.mxu0 0.0
    %2529 = vmatpush1.msra.mxu0 0.0
    %2530 = vmatprep.subr.mxu0 0.0
    %2531 = vmatpush1.msra.mxu0 0.0
    %2532 = vmatprep.subr.mxu0 0.0
    %2533 = vmatpush1.msra.mxu0 0.0
    %2534 = vmatprep.subr.mxu0 0.0
    %2535 = vmatpush1.msra.mxu0 0.0
    %2536 = vmatprep.mubr.f32.mxu0 0.0
    %2537 = vmatmul.mubr.f32.gmra.mrb[0].mxu0 %v2461
    %v2538 = vpop.f32.mrb[0].mxu0
    %v2539 = vadd.f32 %v2459, %v2538
    %v2540 = vpop.f32.mrb[0].mxu0
    %2541 = vmatprep.mubr.f32.mxu0 0.0
    %2542 = vmatmul.mubr.f32.gmra.mrb[0].mxu0 %v2464
    %v2543 = vpop.f32.mrb[0].mxu0
    %v2544 = vadd.f32 %v2459, %v2543
    %v2545 = vpop.f32.mrb[0].mxu0
    %2546 = vmatprep.mubr.f32.mxu0 0.0
    %2547 = vmatmul.mubr.f32.gmra.mrb[0].mxu0 %v2467
    %v2548 = vpop.f32.mrb[0].mxu0
    %v2549 = vadd.f32 %v2459, %v2548
    %v2550 = vpop.f32.mrb[0].mxu0
    %2551 = vmatprep.mubr.f32.mxu0 0.0
    %2552 = vmatmul.mubr.f32.gmra.mrb[0].mxu0 %v2470
    %v2553 = vpop.f32.mrb[0].mxu0
    %v2554 = vadd.f32 %v2459, %v2553
    %v2555 = vpop.f32.mrb[0].mxu0
    %2556 = vdwg.mxu0
    %v2557 = vmax.f32 %v2539, 0.0
    %v2558 = vmax.f32 %v2544, 0.0
    %v2559 = vmax.f32 %v2549, 0.0
    %v2560 = vmax.f32 %v2554, 0.0
    %s2561 = scalar_lea.vmem %s2, 128
    %v2562 = vld [vmem:[%s2561] sm:$0xff]
    %v2563 = vld [vmem:[%s2561 + $0x8] sm:$0xff]
    %v2564 = vld [vmem:[%s2561 + $0x10] sm:$0xff]
    %v2565 = vld [vmem:[%s2561 + $0x18] sm:$0xff]
    %v2566 = vld [vmem:[%s2561 + $0x20] sm:$0xff]
    %v2567 = vld [vmem:[%s2561 + $0x28] sm:$0xff]
    %v2568 = vld [vmem:[%s2561 + $0x30] sm:$0xff]
    %v2569 = vld [vmem:[%s2561 + $0x38] sm:$0xff]
    %v2570 = vld [vmem:[%s2561 + $0x40] sm:$0xff]
    %v2571 = vld [vmem:[%s2561 + $0x48] sm:$0xff]
    %v2572 = vld [vmem:[%s2561 + $0x50] sm:$0xff]
    %v2573 = vld [vmem:[%s2561 + $0x58] sm:$0xff]
    %v2574 = vld [vmem:[%s2561 + $0x60] sm:$0xff]
    %v2575 = vld [vmem:[%s2561 + $0x68] sm:$0xff]
    %v2576 = vld [vmem:[%s2561 + $0x70] sm:$0xff]
    %v2577 = vld [vmem:[%s2561 + $0x78] sm:$0xff]
    %v2578 = vlaneseq
    %v2579 = vshrl.u32 %v2578, 7
    %v2580 = vsub.s32 3, %v2579
    %v2581 = vrot.slane %v1528, %v2580
    %2582 = vmatprep.subr.mxu0 0.0
    %2583 = vmatpush1.msra.mxu0 %v2562
    %2584 = vmatprep.subr.mxu0 0.0
    %2585 = vmatpush1.msra.mxu0 %v2563
    %2586 = vmatprep.subr.mxu0 0.0
    %2587 = vmatpush1.msra.mxu0 %v2564
    %2588 = vmatprep.subr.mxu0 0.0
    %2589 = vmatpush1.msra.mxu0 %v2565
    %2590 = vmatprep.subr.mxu0 0.0
    %2591 = vmatpush1.msra.mxu0 %v2566
    %2592 = vmatprep.subr.mxu0 0.0
    %2593 = vmatpush1.msra.mxu0 %v2567
    %2594 = vmatprep.subr.mxu0 0.0
    %2595 = vmatpush1.msra.mxu0 %v2568
    %2596 = vmatprep.subr.mxu0 0.0
    %2597 = vmatpush1.msra.mxu0 %v2569
    %2598 = vmatprep.subr.mxu0 0.0
    %2599 = vmatpush1.msra.mxu0 %v2570
    %2600 = vmatprep.subr.mxu0 0.0
    %2601 = vmatpush1.msra.mxu0 %v2571
    %2602 = vmatprep.subr.mxu0 0.0
    %2603 = vmatpush1.msra.mxu0 %v2572
    %2604 = vmatprep.subr.mxu0 0.0
    %2605 = vmatpush1.msra.mxu0 %v2573
    %2606 = vmatprep.subr.mxu0 0.0
    %2607 = vmatpush1.msra.mxu0 %v2574
    %2608 = vmatprep.subr.mxu0 0.0
    %2609 = vmatpush1.msra.mxu0 %v2575
    %2610 = vmatprep.subr.mxu0 0.0
    %2611 = vmatpush1.msra.mxu0 %v2576
    %2612 = vmatprep.subr.mxu0 0.0
    %2613 = vmatpush1.msra.mxu0 %v2577
    %2614 = vmatprep.subr.mxu0 0.0
    %2615 = vmatpush1.msra.mxu0 0.0
    %2616 = vmatprep.subr.mxu0 0.0
    %2617 = vmatpush1.msra.mxu0 0.0
    %2618 = vmatprep.subr.mxu0 0.0
    %2619 = vmatpush1.msra.mxu0 0.0
    %2620 = vmatprep.subr.mxu0 0.0
    %2621 = vmatpush1.msra.mxu0 0.0
    %2622 = vmatprep.subr.mxu0 0.0
    %2623 = vmatpush1.msra.mxu0 0.0
    %2624 = vmatprep.subr.mxu0 0.0
    %2625 = vmatpush1.msra.mxu0 0.0
    %2626 = vmatprep.subr.mxu0 0.0
    %2627 = vmatpush1.msra.mxu0 0.0
    %2628 = vmatprep.subr.mxu0 0.0
    %2629 = vmatpush1.msra.mxu0 0.0
    %2630 = vmatprep.subr.mxu0 0.0
    %2631 = vmatpush1.msra.mxu0 0.0
    %2632 = vmatprep.subr.mxu0 0.0
    %2633 = vmatpush1.msra.mxu0 0.0
    %2634 = vmatprep.subr.mxu0 0.0
    %2635 = vmatpush1.msra.mxu0 0.0
    %2636 = vmatprep.subr.mxu0 0.0
    %2637 = vmatpush1.msra.mxu0 0.0
    %2638 = vmatprep.subr.mxu0 0.0
    %2639 = vmatpush1.msra.mxu0 0.0
    %2640 = vmatprep.subr.mxu0 0.0
    %2641 = vmatpush1.msra.mxu0 0.0
    %2642 = vmatprep.subr.mxu0 0.0
    %2643 = vmatpush1.msra.mxu0 0.0
    %2644 = vmatprep.subr.mxu0 0.0
    %2645 = vmatpush1.msra.mxu0 0.0
    %2646 = vmatprep.mubr.f32.mxu0 0.0
    %2647 = vmatmul.mubr.f32.gmra.mrb[0].mxu0 %v2557
    %v2648 = vpop.f32.mrb[0].mxu0
    %v2649 = vadd.f32 %v2581, %v2648
    %v2650 = vpop.f32.mrb[0].mxu0
    %2651 = vmatprep.mubr.f32.mxu0 0.0
    %2652 = vmatmul.mubr.f32.gmra.mrb[0].mxu0 %v2558
    %v2653 = vpop.f32.mrb[0].mxu0
    %v2654 = vadd.f32 %v2581, %v2653
    %v2655 = vpop.f32.mrb[0].mxu0
    %2656 = vmatprep.mubr.f32.mxu0 0.0
    %2657 = vmatmul.mubr.f32.gmra.mrb[0].mxu0 %v2559
    %v2658 = vpop.f32.mrb[0].mxu0
    %v2659 = vadd.f32 %v2581, %v2658
    %v2660 = vpop.f32.mrb[0].mxu0
    %2661 = vmatprep.mubr.f32.mxu0 0.0
    %2662 = vmatmul.mubr.f32.gmra.mrb[0].mxu0 %v2560
    %v2663 = vpop.f32.mrb[0].mxu0
    %v2664 = vadd.f32 %v2581, %v2663
    %v2665 = vpop.f32.mrb[0].mxu0
    %2666 = vdwg.mxu0
    %v2667 = vadd.f32 %v2447, %v2649
    %v2668 = vadd.f32 %v2448, %v2654
    %v2669 = vadd.f32 %v2449, %v2659
    %v2670 = vadd.f32 %v2450, %v2664
    %v2671 = vsel %vm213, %v2667, 0.0
    %2672 = vadd.xlane.f32.xlu0 %v2671
    %v2673 = vpop.xlane.xlu0 %2672
    %v2674 = vsel %vm213, %v2668, 0.0
    %2675 = vadd.xlane.f32.xlu0 %v2674
    %v2676 = vpop.xlane.xlu0 %2675
    %v2677 = vsel %vm213, %v2669, 0.0
    %2678 = vadd.xlane.f32.xlu0 %v2677
    %v2679 = vpop.xlane.xlu0 %2678
    %v2680 = vsel %vm213, %v2670, 0.0
    %2681 = vadd.xlane.f32.xlu0 %v2680
    %v2682 = vpop.xlane.xlu0 %2681
    %v2683 = vmul.f32 %v2673, %v1183
    %v2684 = vmul.f32 %v2676, %v1183
    %v2685 = vmul.f32 %v2679, %v1183
    %v2686 = vmul.f32 %v2682, %v1183
    %v2687 = vsub.f32 %v2667, %v2683
    %v2688 = vsub.f32 %v2668, %v2684
    %v2689 = vsub.f32 %v2669, %v2685
    %v2690 = vsub.f32 %v2670, %v2686
    %v2691 = vmul.f32 %v2687, %v2687
    %v2692 = vmul.f32 %v2688, %v2688
    %v2693 = vmul.f32 %v2689, %v2689
    %v2694 = vmul.f32 %v2690, %v2690
    %v2695 = vsel %vm213, %v2691, 0.0
    %2696 = vadd.xlane.f32.xlu0 %v2695
    %v2697 = vpop.xlane.xlu0 %2696
    %v2698 = vsel %vm213, %v2692, 0.0
    %2699 = vadd.xlane.f32.xlu0 %v2698
    %v2700 = vpop.xlane.xlu0 %2699
    %v2701 = vsel %vm213, %v2693, 0.0
    %2702 = vadd.xlane.f32.xlu0 %v2701
    %v2703 = vpop.xlane.xlu0 %2702
    %v2704 = vsel %vm213, %v2694, 0.0
    %2705 = vadd.xlane.f32.xlu0 %v2704
    %v2706 = vpop.xlane.xlu0 %2705
    %v2707 = vmul.f32 %v2697, %v1183
    %v2708 = vmul.f32 %v2700, %v1183
    %v2709 = vmul.f32 %v2703, %v1183
    %v2710 = vmul.f32 %v2706, %v1183
    %v2711 = vadd.f32 %v2707, 1e-05
    %v2712 = vadd.f32 %v2708, 1e-05
    %v2713 = vadd.f32 %v2709, 1e-05
    %v2714 = vadd.f32 %v2710, 1e-05
    %v2715 = vrsqrt.pop %v2711
    %v2716 = vrsqrt.pop %v2712
    %v2717 = vrsqrt.pop %v2713
    %v2718 = vrsqrt.pop %v2714
    %v2719 = vmul.f32 %v2687, %v2715
    %v2720 = vmul.f32 %v2688, %v2716
    %v2721 = vmul.f32 %v2689, %v2717
    %v2722 = vmul.f32 %v2690, %v2718
    %v2723 = vlaneseq
    %v2724 = vshrl.u32 %v2723, 7
    %v2725 = vsub.s32 6, %v2724
    %v2726 = vrot.slane %v1528, %v2725
    %v2727 = vmul.f32 %v2719, %v2726
    %v2728 = vmul.f32 %v2720, %v2726
    %v2729 = vmul.f32 %v2721, %v2726
    %v2730 = vmul.f32 %v2722, %v2726
    %v2731 = vlaneseq
    %v2732 = vshrl.u32 %v2731, 7
    %v2733 = vsub.s32 7, %v2732
    %v2734 = vrot.slane %v1528, %v2733
    %v2735 = vadd.f32 %v2727, %v2734
    %v2736 = vadd.f32 %v2728, %v2734
    %v2737 = vadd.f32 %v2729, %v2734
    %v2738 = vadd.f32 %v2730, %v2734
    %s2739 = scalar_lea.vmem %s1, 192
    %v2740 = vld [vmem:[%s2739] sm:$0xff]
    %v2741 = vld [vmem:[%s2739 + $0x8] sm:$0xff]
    %v2742 = vld [vmem:[%s2739 + $0x10] sm:$0xff]
    %v2743 = vld [vmem:[%s2739 + $0x18] sm:$0xff]
    %v2745 = vsel %vm213, %v2735, 0
    %v2748 = vsel %vm213, %v2736, 0
    %v2751 = vsel %vm213, %v2737, 0
    %v2754 = vsel %vm213, %v2738, 0
    %2756 = vmatprep.subr.mxu0 0.0
    %2757 = vmatpush1.msra.mxu0 %v2740
    %2758 = vmatprep.subr.mxu0 0.0
    %2759 = vmatpush1.msra.mxu0 %v2741
    %2760 = vmatprep.subr.mxu0 0.0
    %2761 = vmatpush1.msra.mxu0 %v2742
    %2762 = vmatprep.subr.mxu0 0.0
    %2763 = vmatpush1.msra.mxu0 %v2743
    %2764 = vmatprep.subr.mxu0 0.0
    %2765 = vmatpush1.msra.mxu0 0.0
    %2766 = vmatprep.subr.mxu0 0.0
    %2767 = vmatpush1.msra.mxu0 0.0
    %2768 = vmatprep.subr.mxu0 0.0
    %2769 = vmatpush1.msra.mxu0 0.0
    %2770 = vmatprep.subr.mxu0 0.0
    %2771 = vmatpush1.msra.mxu0 0.0
    %2772 = vmatprep.subr.mxu0 0.0
    %2773 = vmatpush1.msra.mxu0 0.0
    %2774 = vmatprep.subr.mxu0 0.0
    %2775 = vmatpush1.msra.mxu0 0.0
    %2776 = vmatprep.subr.mxu0 0.0
    %2777 = vmatpush1.msra.mxu0 0.0
    %2778 = vmatprep.subr.mxu0 0.0
    %2779 = vmatpush1.msra.mxu0 0.0
    %2780 = vmatprep.subr.mxu0 0.0
    %2781 = vmatpush1.msra.mxu0 0.0
    %2782 = vmatprep.subr.mxu0 0.0
    %2783 = vmatpush1.msra.mxu0 0.0
    %2784 = vmatprep.subr.mxu0 0.0
    %2785 = vmatpush1.msra.mxu0 0.0
    %2786 = vmatprep.subr.mxu0 0.0
    %2787 = vmatpush1.msra.mxu0 0.0
    %2788 = vmatprep.subr.mxu0 0.0
    %2789 = vmatpush1.msra.mxu0 0.0
    %2790 = vmatprep.subr.mxu0 0.0
    %2791 = vmatpush1.msra.mxu0 0.0
    %2792 = vmatprep.subr.mxu0 0.0
    %2793 = vmatpush1.msra.mxu0 0.0
    %2794 = vmatprep.subr.mxu0 0.0
    %2795 = vmatpush1.msra.mxu0 0.0
    %2796 = vmatprep.subr.mxu0 0.0
    %2797 = vmatpush1.msra.mxu0 0.0
    %2798 = vmatprep.subr.mxu0 0.0
    %2799 = vmatpush1.msra.mxu0 0.0
    %2800 = vmatprep.subr.mxu0 0.0
    %2801 = vmatpush1.msra.mxu0 0.0
    %2802 = vmatprep.subr.mxu0 0.0
    %2803 = vmatpush1.msra.mxu0 0.0
    %2804 = vmatprep.subr.mxu0 0.0
    %2805 = vmatpush1.msra.mxu0 0.0
    %2806 = vmatprep.subr.mxu0 0.0
    %2807 = vmatpush1.msra.mxu0 0.0
    %2808 = vmatprep.subr.mxu0 0.0
    %2809 = vmatpush1.msra.mxu0 0.0
    %2810 = vmatprep.subr.mxu0 0.0
    %2811 = vmatpush1.msra.mxu0 0.0
    %2812 = vmatprep.subr.mxu0 0.0
    %2813 = vmatpush1.msra.mxu0 0.0
    %2814 = vmatprep.subr.mxu0 0.0
    %2815 = vmatpush1.msra.mxu0 0.0
    %2816 = vmatprep.subr.mxu0 0.0
    %2817 = vmatpush1.msra.mxu0 0.0
    %2818 = vmatprep.subr.mxu0 0.0
    %2819 = vmatpush1.msra.mxu0 0.0
    %2820 = vmatprep.mubr.f32.mxu0 0.0
    %2821 = vmatmul.mubr.f32.gmra.mrb[0].mxu0 %v2745
    %v2822 = vpop.f32.mrb[0].mxu0
    %v2823 = vadd.f32 0.0, %v2822
    %v2824 = vpop.f32.mrb[0].mxu0
    %2825 = vmatprep.mubr.f32.mxu0 0.0
    %2826 = vmatmul.mubr.f32.gmra.mrb[0].mxu0 %v2748
    %v2827 = vpop.f32.mrb[0].mxu0
    %v2828 = vadd.f32 0.0, %v2827
    %v2829 = vpop.f32.mrb[0].mxu0
    %2830 = vmatprep.mubr.f32.mxu0 0.0
    %2831 = vmatmul.mubr.f32.gmra.mrb[0].mxu0 %v2751
    %v2832 = vpop.f32.mrb[0].mxu0
    %v2833 = vadd.f32 0.0, %v2832
    %v2834 = vpop.f32.mrb[0].mxu0
    %2835 = vmatprep.mubr.f32.mxu0 0.0
    %2836 = vmatmul.mubr.f32.gmra.mrb[0].mxu0 %v2754
    %v2837 = vpop.f32.mrb[0].mxu0
    %v2838 = vadd.f32 0.0, %v2837
    %v2839 = vpop.f32.mrb[0].mxu0
    %2840 = vdwg.mxu0
    %2841 = vst [vmem:[#allocation2] sm:$0xff] %v2823
    %2842 = vst [vmem:[#allocation2 + $0x8] sm:$0xff] %v2828
    %2843 = vst [vmem:[#allocation2 + $0x10] sm:$0xff] %v2833
    %2844 = vst [vmem:[#allocation2 + $0x18] sm:$0xff] %v2838
    // Predicated region
    $region18: #{grid_transformer_forward.1} parent=1 // pred_check
      _
    $region19: #{grid_transformer_forward.1} parent=1 // pred_check_branch
      %2846 = sbr.rel (0) target = $region21
    $region20: #{grid_transformer_forward.1} parent=1 // pred_region
      %s2848 = ssub.s32 512, 512
      %2849 = vsyncadd [#allocation3], %s2848
      %s2850 = sshll.u32 [#allocation2], 4
      %s2851 = int_to_ptr.vmem [resolvable:$true] %s2850
      %2856 = dma.vmem_to_hbm [thread:$0]  %s2851, 512, %s4, [#allocation3], 128, 128, 8
    $region21: #{grid_transformer_forward.1} parent=1 // pred_fallthru
      _
    // Predicated region
    $region22: #{grid_transformer_forward.1} parent=1 // pred_check
      _
    $region23: #{grid_transformer_forward.1} parent=1 // pred_check_branch
      %2858 = sbr.rel (0) target = $region25
    $region24: #{grid_transformer_forward.1} parent=1 // pred_region
      %2859 = dma.done [#allocation3], 512
    $region25: #{grid_transformer_forward.1} parent=1 // pred_fallthru
      _
    %2860 = vsyncpa [#allocation3], 1

</llo_original>
